<compile_context>
chip_gen: v6e
topology: v6e:2x2x1
jax: 0.10.0
libtpu: 0.0.40
codegen_flags: <defaults>
</compile_context>

<pallas_src>
import functools
import math

import jax
import jax.numpy as jnp
from jax.experimental import pallas as pl
from jax.experimental.pallas import tpu as pltpu


# ----------------------------------------------------------------------------
# Fused kernel: the whole discriminator forward for ONE image per grid step.
#   refs = [x, (w_l, b_l) for l=0..L-1, out, (act_l, patch_l) for l=0..L-1]
#     x      : (1, W0*H0, C0)      image block, rows are w-major (row = w*H0+h)
#     w_l    : (16*C_l, C_{l+1})   tap-major conv weights (spectral-normed;
#                                  last layer folded with the final 1x1 conv)
#     b_l    : (1, C_{l+1})
#     out    : (1, H_L*W_L, C_L)   rows w-major
#     act_l  : (W_l/2+1, H_l+2, 2*C_l)  VMEM scratch: zero-padded layer input,
#              W-parity blocked:  act[w2, hp, wp*C+c] = A_pad[hp, 2*w2+wp, c]
#     patch_l: (W_l/2, H_l/2, 16*C_l)   VMEM scratch: im2col patch matrix
# ----------------------------------------------------------------------------
def _disc_kernel(*refs, layer_dims, neg_slope):
    L = len(layer_dims)
    x_ref = refs[0]
    w_refs = [refs[1 + 2 * l] for l in range(L)]
    b_refs = [refs[2 + 2 * l] for l in range(L)]
    o_ref = refs[1 + 2 * L]
    s_refs = [refs[2 + 2 * L + 2 * l] for l in range(L)]
    p_refs = [refs[3 + 2 * L + 2 * l] for l in range(L)]

    neg = jnp.float32(neg_slope)

    # Current activation as a 2-D (rows, channels) value, rows w-major
    # (row = w * H + h).  For layer 0 this is just the input image block.
    a2d = x_ref[0]

    for l in range(L):
        Hin, Win, Cin = layer_dims[l]
        Hout, Wout = Hin // 2, Win // 2
        s_ref, p_ref = s_refs[l], p_refs[l]

        # -- 1) zero-padded activation -> W-parity-blocked layer scratch.
        #       Column writes are unit-stride window stores; the padding is the
        #       untouched zeros.
        s_ref[...] = jnp.zeros(s_ref.shape, s_ref.dtype)
        for wcol in range(Win):                              # activation col w
            blk = a2d[wcol * Hin:(wcol + 1) * Hin, :]        # (Hin, Cin)
            w2, wp = (wcol + 1) // 2, (wcol + 1) % 2         # padded col index
            s_ref[w2, 1:1 + Hin, wp * Cin:(wp + 1) * Cin] = blk

        # -- 2) in-kernel im2col: 16 taps -> one (M, 16*Cin) patch matrix.
        #       Tap (dh, dw) needs A_pad[2*ho+dh, 2*wo+dw, :]; in the blocked
        #       layout this is a sublane-strided row read (stride 2) plus
        #       static unit slices.  This replaces the old 0/1 gather-matrix
        #       matmuls (16x the conv's MXU work, quadratic memory).
        for dh in range(4):
            rows = s_ref[:, pl.ds(dh, Hout, 2), :]           # (Wp2, Hout, 2Cin)
            for dw in range(4):
                t = dh * 4 + dw
                tap = rows[dw // 2:dw // 2 + Wout, :,
                           (dw % 2) * Cin:(dw % 2) * Cin + Cin]
                p_ref[:, :, t * Cin:(t + 1) * Cin] = tap     # (Wout, Hout, Cin)

        # -- 3) ONE MXU matmul per layer, K = 16*Cin (instead of 16 tiny
        #       K=Cin matmuls): conv + bias (+ LeakyReLU except last layer).
        patches = p_ref[...].reshape(Wout * Hout, 16 * Cin)
        h = jnp.dot(patches, w_refs[l][...],
                    preferred_element_type=jnp.float32) + b_refs[l][...]
        if l < L - 1:
            h = jnp.where(h >= 0, h, neg * h)
        a2d = h                                              # (Wout*Hout, Cout)

    o_ref[0] = a2d.astype(o_ref.dtype)


# ----------------------------------------------------------------------------
# Spectral norm (mirrors torch.nn.utils.spectral_norm, one power iteration).
# ----------------------------------------------------------------------------
def spectral_normalize(w_oihw, u, n_power_iterations=1, eps=1e-12):
    cout = w_oihw.shape[0]
    wm = w_oihw.reshape(cout, -1)

    def _l2n(v):
        return v / (jnp.linalg.norm(v) + eps)

    v = None
    for _ in range(n_power_iterations):
        v = _l2n(wm.T @ u)
        u = _l2n(wm @ v)
    sigma = u @ (wm @ v)
    return w_oihw / sigma


# ----------------------------------------------------------------------------
# Parameter construction (replicates Discriminator2D.__init__ layer plan).
# ----------------------------------------------------------------------------
def build_discriminator_params(key, nf_in, nf, patch_size, image_dims, patch,
                               use_bias, disc_loss_type='vanilla'):
    arf = [4, 10, 22, 46, 94, 190, 382, 766]
    num_layers = len(arf)
    if patch:
        for k in range(len(arf)):
            if patch_size < arf[k]:
                num_layers = k
                break
    assert num_layers >= 1
    dim = min(image_dims[0], image_dims[1])
    num = int(math.floor(math.log(dim, 2)))
    num_layers = min(num, num_layers)

    layer_out = [2 * nf]
    if num_layers > 1:
        layer_out.append(4 * nf)
    if num_layers > 2:
        layer_out.append(8 * nf)
    for _ in range(3, num_layers):
        layer_out.append(8 * nf)

    layers = []
    cin = nf_in
    n_params = 0
    for li, cout in enumerate(layer_out):
        key, k1, k2, k3 = jax.random.split(key, 4)
        w = jax.random.normal(k1, (cout, cin, 4, 4), jnp.float32) * 0.05
        u = jax.random.normal(k2, (cout,), jnp.float32)
        u = u / (jnp.linalg.norm(u) + 1e-12)
        b = (jax.random.normal(k3, (cout,), jnp.float32) * 0.05
             if use_bias else None)
        apply_act = (li != num_layers - 1)   # last layer: activation=None
        layers.append(dict(w=w, b=b, u=u, apply_act=apply_act))
        n_params += w.size + (b.size if b is not None else 0)
        cin = cout

    final = None
    if (not patch) or disc_loss_type != 'hinge':
        key, k1, k2 = jax.random.split(key, 3)
        fw = jax.random.normal(k1, (1, nf * 8, 1, 1), jnp.float32) * 0.05
        fb = jax.random.normal(k2, (1,), jnp.float32) * 0.05
        final = (fw, fb)

    print('#params discriminator', n_params)
    return layers, final


# ----------------------------------------------------------------------------
# Fused forward builder: spectral-norm + weight reshape + 1x1 fold in the
# wrapper (all under one jit), then a single gridded pallas_call.
# ----------------------------------------------------------------------------
def make_fused_forward(N, H, W, nf_in, layers, final):
    L = len(layers)

    dims, couts = [], []
    h, w, c = H, W, nf_in
    for l in range(L):
        assert h % 2 == 0 and w % 2 == 0
        dims.append((h, w, c))
        couts.append(int(layers[l]['w'].shape[0]))
        h, w, c = h // 2, w // 2, couts[-1]
    H_out, W_out = h, w
    M_last = H_out * W_out
    c_last = 1 if final is not None else couts[-1]
    if final is not None:
        # Folding the final 1x1 conv into the last strided conv is only valid
        # because that conv has no activation.
        assert layers[-1]['apply_act'] is False
    couts_eff = couts[:-1] + [c_last]

    kernel = functools.partial(_disc_kernel, layer_dims=tuple(dims),
                               neg_slope=0.2)

    in_specs = [pl.BlockSpec((1, W * H, nf_in), lambda n: (n, 0, 0))]
    for l in range(L):
        cin_l = dims[l][2]
        cout_l = couts_eff[l]
        in_specs.append(pl.BlockSpec((16 * cin_l, cout_l), lambda n: (0, 0)))
        in_specs.append(pl.BlockSpec((1, cout_l), lambda n: (0, 0)))
    out_spec = pl.BlockSpec((1, M_last, c_last), lambda n: (n, 0, 0))

    scratch = []
    for l in range(L):
        hin, win, cin_l = dims[l]
        scratch.append(pltpu.VMEM((win // 2 + 1, hin + 2, 2 * cin_l),
                                  jnp.float32))
        scratch.append(pltpu.VMEM((win // 2, hin // 2, 16 * cin_l),
                                  jnp.float32))

    flops = 0
    wbytes = 0
    for (hin, win, cin_l), cout_l in zip(dims, couts_eff):
        flops += 2 * (hin // 2) * (win // 2) * (16 * cin_l) * cout_l
        wbytes += (16 * cin_l * cout_l + cout_l) * 4
    flops *= N
    bytes_accessed = N * H * W * nf_in * 4 + wbytes + N * M_last * c_last * 4
    cost = pl.CostEstimate(flops=flops, transcendentals=0,
                           bytes_accessed=bytes_accessed)

    call = pl.pallas_call(
        kernel,
        out_shape=jax.ShapeDtypeStruct((N, M_last, c_last), jnp.float32),
        grid=(N,),
        in_specs=in_specs,
        out_specs=out_spec,
        scratch_shapes=scratch,
        compiler_params=pltpu.CompilerParams(
            dimension_semantics=("parallel",),
            vmem_limit_bytes=32 * 1024 * 1024),
        cost_estimate=cost,
    )

    @jax.jit
    def forward(x_nchw, ws, bs, us, final_params):
        # -- tiny preprocessing, all fused by XLA under this single jit ------
        wmats, bvecs = [], []
        for l in range(L):
            w_sn = spectral_normalize(ws[l], us[l])
            cout_l, cin_l = w_sn.shape[0], w_sn.shape[1]
            # (Cout,Cin,KH,KW) -> (KH,KW,Cin,Cout) -> (16*Cin, Cout); rows are
            # tap-major ((dh*4+dw)*Cin + c), matching the in-kernel tap order.
            wmats.append(jnp.transpose(w_sn, (2, 3, 1, 0)).reshape(
                16 * cin_l, cout_l).astype(jnp.float32))
            b = bs[l]
            bvecs.append(b.astype(jnp.float32) if b is not None
                         else jnp.zeros((cout_l,), jnp.float32))

        # Fold the final 1x1 conv into the (activation-free) last conv.
        if final_params is not None:
            fw, fb = final_params
            wf = fw.reshape(fw.shape[0], fw.shape[1]).T          # (8*nf, 1)
            wmats[-1] = wmats[-1] @ wf
            bvecs[-1] = bvecs[-1] @ wf + fb

        # NCHW -> (N, W, H, C) -> (N, W*H, C): rows are w-major, matching the
        # kernel's in-kernel im2col (no 4x-expanded patch tensor in HBM).
        x2 = jnp.transpose(x_nchw, (0, 3, 2, 1)).reshape(N, W * H, nf_in)

        args = [x2.astype(jnp.float32)]
        for l in range(L):
            args += [wmats[l], bvecs[l].reshape(1, -1)]

        out = call(*args)                                        # (N, M, c)
        # rows are w-major per image -> NHWC (torch's permute(0,2,3,1)).
        out = out.reshape(N, W_out, H_out, c_last)
        return jnp.transpose(out, (0, 2, 1, 3))

    return forward


# ----------------------------------------------------------------------------
# Pure-JAX reference (for correctness check only).
# ----------------------------------------------------------------------------
def _ref_forward(x_nchw, layers, final):
    x = x_nchw
    for Lr in layers:
        w_sn = spectral_normalize(Lr['w'], Lr['u'])
        x = jax.lax.conv_general_dilated(
            x, w_sn, (2, 2), [(1, 1), (1, 1)],
            dimension_numbers=('NCHW', 'OIHW', 'NCHW'))
        if Lr['b'] is not None:
            x = x + Lr['b'][None, :, None, None]
        if Lr['apply_act']:
            x = jnp.where(x >= 0, x, 0.2 * x)
    if final is not None:
        fw, fb = final
        x = jax.lax.conv_general_dilated(
            x, fw, (1, 1), [(0, 0), (0, 0)],
            dimension_numbers=('NCHW', 'OIHW', 'NCHW'))
        x = x + fb[None, :, None, None]
    return jnp.transpose(x, (0, 2, 3, 1))


if __name__ == "__main__":
    key = jax.random.PRNGKey(0)
    key, kx, kp = jax.random.split(key, 3)

    # Small config consistent with the module.
    N, nf_in, H, W = 2, 4, 16, 16
    nf = 8
    x = jax.random.normal(kx, (N, nf_in, H, W), jnp.float32)   # NCHW like torch

    layers, final = build_discriminator_params(
        kp, nf_in=nf_in, nf=nf, patch_size=32, image_dims=(H, W),
        patch=True, use_bias=True, disc_loss_type='vanilla')

    forward = make_fused_forward(N, H, W, nf_in, layers, final)

    ws = tuple(L['w'] for L in layers)
    bs = tuple(L['b'] for L in layers)
    us = tuple(L['u'] for L in layers)

    out = forward(x, ws, bs, us, final)
    out = jax.block_until_ready(out)

    ref = jax.block_until_ready(_ref_forward(x, layers, final))
    assert out.shape == (N, 2, 2, 1), out.shape        # NHWC after permute
    assert jnp.allclose(out, ref, atol=1e-4, rtol=1e-4), (
        float(jnp.max(jnp.abs(out - ref))))

    print("KERNEL_OK")
</pallas_src>

<mosaic_0001>
module attributes {stable_mosaic.version = 11 : i64} {
  func.func @_disc_kernel(%arg0: i32, %arg1: memref<1x256x4xf32, #tpu.memory_space<vmem>>, %arg2: memref<64x16xf32, #tpu.memory_space<vmem>>, %arg3: memref<1x16xf32, #tpu.memory_space<vmem>>, %arg4: memref<256x32xf32, #tpu.memory_space<vmem>>, %arg5: memref<1x32xf32, #tpu.memory_space<vmem>>, %arg6: memref<512x1xf32, #tpu.memory_space<vmem>>, %arg7: memref<1x1xf32, #tpu.memory_space<vmem>>, %arg8: memref<1x4x1xf32, #tpu.memory_space<vmem>>, %arg9: memref<9x18x8xf32, #tpu.memory_space<vmem>>, %arg10: memref<8x8x64xf32, #tpu.memory_space<vmem>>, %arg11: memref<5x10x32xf32, #tpu.memory_space<vmem>>, %arg12: memref<4x4x256xf32, #tpu.memory_space<vmem>>, %arg13: memref<3x6x64xf32, #tpu.memory_space<vmem>>, %arg14: memref<2x2x512xf32, #tpu.memory_space<vmem>>) attributes {dimension_semantics = [#tpu.dimension_semantics<parallel>], iteration_bounds = array<i64: 2>, scalar_prefetch = 0 : i64, scratch_operands = 6 : i64, tpu.core_type = #tpu.core_type<tc>, window_params = [{transform_indices = @transform_0, window_bounds = array<i64: 1, 256, 4>}, {pipeline_mode = #tpu.pipeline_mode<synchronous>, transform_indices = @transform_1, window_bounds = array<i64: 64, 16>}, {pipeline_mode = #tpu.pipeline_mode<synchronous>, transform_indices = @transform_2, window_bounds = array<i64: 1, 16>}, {pipeline_mode = #tpu.pipeline_mode<synchronous>, transform_indices = @transform_3, window_bounds = array<i64: 256, 32>}, {pipeline_mode = #tpu.pipeline_mode<synchronous>, transform_indices = @transform_4, window_bounds = array<i64: 1, 32>}, {pipeline_mode = #tpu.pipeline_mode<synchronous>, transform_indices = @transform_5, window_bounds = array<i64: 512, 1>}, {pipeline_mode = #tpu.pipeline_mode<synchronous>, transform_indices = @transform_6, window_bounds = array<i64: 1, 1>}, {transform_indices = @transform_7, window_bounds = array<i64: 1, 4, 1>}]} {
    %c0 = arith.constant 0 : index
    %c0_0 = arith.constant 0 : index
    %c0_1 = arith.constant 0 : index
    %0 = vector.load %arg1[%c0, %c0_0, %c0_1] : memref<1x256x4xf32, #tpu.memory_space<vmem>>, vector<1x256x4xf32>
    %1 = vector.shape_cast %0 : vector<1x256x4xf32> to vector<256x4xf32>
    %cst = arith.constant 0.000000e+00 : f32
    %2 = vector.broadcast %cst : f32 to vector<9x18x8xf32>
    %c0_2 = arith.constant 0 : index
    %c0_3 = arith.constant 0 : index
    %c0_4 = arith.constant 0 : index
    %3 = vector.load %arg9[%c0_2, %c0_3, %c0_4] : memref<9x18x8xf32, #tpu.memory_space<vmem>>, vector<9x18x8xf32>
    tpu.vector_store %arg9[%c0_2, %c0_3, %c0_4], %2 {strides = array<i32>} : memref<9x18x8xf32, #tpu.memory_space<vmem>>, vector<9x18x8xf32>,
    %4 = vector.extract_strided_slice %1 {offsets = [0, 0], sizes = [16, 4], strides = [1, 1]} : vector<256x4xf32> to vector<16x4xf32>
    %c0_5 = arith.constant 0 : index
    %c1 = arith.constant 1 : index
    %c4 = arith.constant 4 : index
    %5 = vector.load %arg9[%c0_5, %c1, %c4] : memref<9x18x8xf32, #tpu.memory_space<vmem>>, vector<1x16x4xf32>
    %6 = vector.shape_cast %5 : vector<1x16x4xf32> to vector<16x4xf32>
    %7 = vector.shape_cast %4 : vector<16x4xf32> to vector<1x16x4xf32>
    tpu.vector_store %arg9[%c0_5, %c1, %c4], %7 {strides = array<i32>} : memref<9x18x8xf32, #tpu.memory_space<vmem>>, vector<1x16x4xf32>,
    %8 = vector.extract_strided_slice %1 {offsets = [16, 0], sizes = [16, 4], strides = [1, 1]} : vector<256x4xf32> to vector<16x4xf32>
    %c1_6 = arith.constant 1 : index
    %c1_7 = arith.constant 1 : index
    %c0_8 = arith.constant 0 : index
    %9 = vector.load %arg9[%c1_6, %c1_7, %c0_8] : memref<9x18x8xf32, #tpu.memory_space<vmem>>, vector<1x16x4xf32>
    %10 = vector.shape_cast %9 : vector<1x16x4xf32> to vector<16x4xf32>
    %11 = vector.shape_cast %8 : vector<16x4xf32> to vector<1x16x4xf32>
    tpu.vector_store %arg9[%c1_6, %c1_7, %c0_8], %11 {strides = array<i32>} : memref<9x18x8xf32, #tpu.memory_space<vmem>>, vector<1x16x4xf32>,
    %12 = vector.extract_strided_slice %1 {offsets = [32, 0], sizes = [16, 4], strides = [1, 1]} : vector<256x4xf32> to vector<16x4xf32>
    %c1_9 = arith.constant 1 : index
    %c1_10 = arith.constant 1 : index
    %c4_11 = arith.constant 4 : index
    %13 = vector.load %arg9[%c1_9, %c1_10, %c4_11] : memref<9x18x8xf32, #tpu.memory_space<vmem>>, vector<1x16x4xf32>
    %14 = vector.shape_cast %13 : vector<1x16x4xf32> to vector<16x4xf32>
    %15 = vector.shape_cast %12 : vector<16x4xf32> to vector<1x16x4xf32>
    tpu.vector_store %arg9[%c1_9, %c1_10, %c4_11], %15 {strides = array<i32>} : memref<9x18x8xf32, #tpu.memory_space<vmem>>, vector<1x16x4xf32>,
    %16 = vector.extract_strided_slice %1 {offsets = [48, 0], sizes = [16, 4], strides = [1, 1]} : vector<256x4xf32> to vector<16x4xf32>
    %c2 = arith.constant 2 : index
    %c1_12 = arith.constant 1 : index
    %c0_13 = arith.constant 0 : index
    %17 = vector.load %arg9[%c2, %c1_12, %c0_13] : memref<9x18x8xf32, #tpu.memory_space<vmem>>, vector<1x16x4xf32>
    %18 = vector.shape_cast %17 : vector<1x16x4xf32> to vector<16x4xf32>
    %19 = vector.shape_cast %16 : vector<16x4xf32> to vector<1x16x4xf32>
    tpu.vector_store %arg9[%c2, %c1_12, %c0_13], %19 {strides = array<i32>} : memref<9x18x8xf32, #tpu.memory_space<vmem>>, vector<1x16x4xf32>,
    %20 = vector.extract_strided_slice %1 {offsets = [64, 0], sizes = [16, 4], strides = [1, 1]} : vector<256x4xf32> to vector<16x4xf32>
    %c2_14 = arith.constant 2 : index
    %c1_15 = arith.constant 1 : index
    %c4_16 = arith.constant 4 : index
    %21 = vector.load %arg9[%c2_14, %c1_15, %c4_16] : memref<9x18x8xf32, #tpu.memory_space<vmem>>, vector<1x16x4xf32>
    %22 = vector.shape_cast %21 : vector<1x16x4xf32> to vector<16x4xf32>
    %23 = vector.shape_cast %20 : vector<16x4xf32> to vector<1x16x4xf32>
    tpu.vector_store %arg9[%c2_14, %c1_15, %c4_16], %23 {strides = array<i32>} : memref<9x18x8xf32, #tpu.memory_space<vmem>>, vector<1x16x4xf32>,
    %24 = vector.extract_strided_slice %1 {offsets = [80, 0], sizes = [16, 4], strides = [1, 1]} : vector<256x4xf32> to vector<16x4xf32>
    %c3 = arith.constant 3 : index
    %c1_17 = arith.constant 1 : index
    %c0_18 = arith.constant 0 : index
    %25 = vector.load %arg9[%c3, %c1_17, %c0_18] : memref<9x18x8xf32, #tpu.memory_space<vmem>>, vector<1x16x4xf32>
    %26 = vector.shape_cast %25 : vector<1x16x4xf32> to vector<16x4xf32>
    %27 = vector.shape_cast %24 : vector<16x4xf32> to vector<1x16x4xf32>
    tpu.vector_store %arg9[%c3, %c1_17, %c0_18], %27 {strides = array<i32>} : memref<9x18x8xf32, #tpu.memory_space<vmem>>, vector<1x16x4xf32>,
    %28 = vector.extract_strided_slice %1 {offsets = [96, 0], sizes = [16, 4], strides = [1, 1]} : vector<256x4xf32> to vector<16x4xf32>
    %c3_19 = arith.constant 3 : index
    %c1_20 = arith.constant 1 : index
    %c4_21 = arith.constant 4 : index
    %29 = vector.load %arg9[%c3_19, %c1_20, %c4_21] : memref<9x18x8xf32, #tpu.memory_space<vmem>>, vector<1x16x4xf32>
    %30 = vector.shape_cast %29 : vector<1x16x4xf32> to vector<16x4xf32>
    %31 = vector.shape_cast %28 : vector<16x4xf32> to vector<1x16x4xf32>
    tpu.vector_store %arg9[%c3_19, %c1_20, %c4_21], %31 {strides = array<i32>} : memref<9x18x8xf32, #tpu.memory_space<vmem>>, vector<1x16x4xf32>,
    %32 = vector.extract_strided_slice %1 {offsets = [112, 0], sizes = [16, 4], strides = [1, 1]} : vector<256x4xf32> to vector<16x4xf32>
    %c4_22 = arith.constant 4 : index
    %c1_23 = arith.constant 1 : index
    %c0_24 = arith.constant 0 : index
    %33 = vector.load %arg9[%c4_22, %c1_23, %c0_24] : memref<9x18x8xf32, #tpu.memory_space<vmem>>, vector<1x16x4xf32>
    %34 = vector.shape_cast %33 : vector<1x16x4xf32> to vector<16x4xf32>
    %35 = vector.shape_cast %32 : vector<16x4xf32> to vector<1x16x4xf32>
    tpu.vector_store %arg9[%c4_22, %c1_23, %c0_24], %35 {strides = array<i32>} : memref<9x18x8xf32, #tpu.memory_space<vmem>>, vector<1x16x4xf32>,
    %36 = vector.extract_strided_slice %1 {offsets = [128, 0], sizes = [16, 4], strides = [1, 1]} : vector<256x4xf32> to vector<16x4xf32>
    %c4_25 = arith.constant 4 : index
    %c1_26 = arith.constant 1 : index
    %c4_27 = arith.constant 4 : index
    %37 = vector.load %arg9[%c4_25, %c1_26, %c4_27] : memref<9x18x8xf32, #tpu.memory_space<vmem>>, vector<1x16x4xf32>
    %38 = vector.shape_cast %37 : vector<1x16x4xf32> to vector<16x4xf32>
    %39 = vector.shape_cast %36 : vector<16x4xf32> to vector<1x16x4xf32>
    tpu.vector_store %arg9[%c4_25, %c1_26, %c4_27], %39 {strides = array<i32>} : memref<9x18x8xf32, #tpu.memory_space<vmem>>, vector<1x16x4xf32>,
    %40 = vector.extract_strided_slice %1 {offsets = [144, 0], sizes = [16, 4], strides = [1, 1]} : vector<256x4xf32> to vector<16x4xf32>
    %c5 = arith.constant 5 : index
    %c1_28 = arith.constant 1 : index
    %c0_29 = arith.constant 0 : index
    %41 = vector.load %arg9[%c5, %c1_28, %c0_29] : memref<9x18x8xf32, #tpu.memory_space<vmem>>, vector<1x16x4xf32>
    %42 = vector.shape_cast %41 : vector<1x16x4xf32> to vector<16x4xf32>
    %43 = vector.shape_cast %40 : vector<16x4xf32> to vector<1x16x4xf32>
    tpu.vector_store %arg9[%c5, %c1_28, %c0_29], %43 {strides = array<i32>} : memref<9x18x8xf32, #tpu.memory_space<vmem>>, vector<1x16x4xf32>,
    %44 = vector.extract_strided_slice %1 {offsets = [160, 0], sizes = [16, 4], strides = [1, 1]} : vector<256x4xf32> to vector<16x4xf32>
    %c5_30 = arith.constant 5 : index
    %c1_31 = arith.constant 1 : index
    %c4_32 = arith.constant 4 : index
    %45 = vector.load %arg9[%c5_30, %c1_31, %c4_32] : memref<9x18x8xf32, #tpu.memory_space<vmem>>, vector<1x16x4xf32>
    %46 = vector.shape_cast %45 : vector<1x16x4xf32> to vector<16x4xf32>
    %47 = vector.shape_cast %44 : vector<16x4xf32> to vector<1x16x4xf32>
    tpu.vector_store %arg9[%c5_30, %c1_31, %c4_32], %47 {strides = array<i32>} : memref<9x18x8xf32, #tpu.memory_space<vmem>>, vector<1x16x4xf32>,
    %48 = vector.extract_strided_slice %1 {offsets = [176, 0], sizes = [16, 4], strides = [1, 1]} : vector<256x4xf32> to vector<16x4xf32>
    %c6 = arith.constant 6 : index
    %c1_33 = arith.constant 1 : index
    %c0_34 = arith.constant 0 : index
    %49 = vector.load %arg9[%c6, %c1_33, %c0_34] : memref<9x18x8xf32, #tpu.memory_space<vmem>>, vector<1x16x4xf32>
    %50 = vector.shape_cast %49 : vector<1x16x4xf32> to vector<16x4xf32>
    %51 = vector.shape_cast %48 : vector<16x4xf32> to vector<1x16x4xf32>
    tpu.vector_store %arg9[%c6, %c1_33, %c0_34], %51 {strides = array<i32>} : memref<9x18x8xf32, #tpu.memory_space<vmem>>, vector<1x16x4xf32>,
    %52 = vector.extract_strided_slice %1 {offsets = [192, 0], sizes = [16, 4], strides = [1, 1]} : vector<256x4xf32> to vector<16x4xf32>
    %c6_35 = arith.constant 6 : index
    %c1_36 = arith.constant 1 : index
    %c4_37 = arith.constant 4 : index
    %53 = vector.load %arg9[%c6_35, %c1_36, %c4_37] : memref<9x18x8xf32, #tpu.memory_space<vmem>>, vector<1x16x4xf32>
    %54 = vector.shape_cast %53 : vector<1x16x4xf32> to vector<16x4xf32>
    %55 = vector.shape_cast %52 : vector<16x4xf32> to vector<1x16x4xf32>
    tpu.vector_store %arg9[%c6_35, %c1_36, %c4_37], %55 {strides = array<i32>} : memref<9x18x8xf32, #tpu.memory_space<vmem>>, vector<1x16x4xf32>,
    %56 = vector.extract_strided_slice %1 {offsets = [208, 0], sizes = [16, 4], strides = [1, 1]} : vector<256x4xf32> to vector<16x4xf32>
    %c7 = arith.constant 7 : index
    %c1_38 = arith.constant 1 : index
    %c0_39 = arith.constant 0 : index
    %57 = vector.load %arg9[%c7, %c1_38, %c0_39] : memref<9x18x8xf32, #tpu.memory_space<vmem>>, vector<1x16x4xf32>
    %58 = vector.shape_cast %57 : vector<1x16x4xf32> to vector<16x4xf32>
    %59 = vector.shape_cast %56 : vector<16x4xf32> to vector<1x16x4xf32>
    tpu.vector_store %arg9[%c7, %c1_38, %c0_39], %59 {strides = array<i32>} : memref<9x18x8xf32, #tpu.memory_space<vmem>>, vector<1x16x4xf32>,
    %60 = vector.extract_strided_slice %1 {offsets = [224, 0], sizes = [16, 4], strides = [1, 1]} : vector<256x4xf32> to vector<16x4xf32>
    %c7_40 = arith.constant 7 : index
    %c1_41 = arith.constant 1 : index
    %c4_42 = arith.constant 4 : index
    %61 = vector.load %arg9[%c7_40, %c1_41, %c4_42] : memref<9x18x8xf32, #tpu.memory_space<vmem>>, vector<1x16x4xf32>
    %62 = vector.shape_cast %61 : vector<1x16x4xf32> to vector<16x4xf32>
    %63 = vector.shape_cast %60 : vector<16x4xf32> to vector<1x16x4xf32>
    tpu.vector_store %arg9[%c7_40, %c1_41, %c4_42], %63 {strides = array<i32>} : memref<9x18x8xf32, #tpu.memory_space<vmem>>, vector<1x16x4xf32>,
    %64 = vector.extract_strided_slice %1 {offsets = [240, 0], sizes = [16, 4], strides = [1, 1]} : vector<256x4xf32> to vector<16x4xf32>
    %c8 = arith.constant 8 : index
    %c1_43 = arith.constant 1 : index
    %c0_44 = arith.constant 0 : index
    %65 = vector.load %arg9[%c8, %c1_43, %c0_44] : memref<9x18x8xf32, #tpu.memory_space<vmem>>, vector<1x16x4xf32>
    %66 = vector.shape_cast %65 : vector<1x16x4xf32> to vector<16x4xf32>
    %67 = vector.shape_cast %64 : vector<16x4xf32> to vector<1x16x4xf32>
    tpu.vector_store %arg9[%c8, %c1_43, %c0_44], %67 {strides = array<i32>} : memref<9x18x8xf32, #tpu.memory_space<vmem>>, vector<1x16x4xf32>,
    %c0_45 = arith.constant 0 : index
    %c0_46 = arith.constant 0 : index
    %c0_47 = arith.constant 0 : index
    %68 = tpu.strided_load %arg9[%c0_45, %c0_46, %c0_47] {strides = array<i32: 1, 2, 1>} : memref<9x18x8xf32, #tpu.memory_space<vmem>>, vector<9x8x8xf32>
    %69 = vector.extract_strided_slice %68 {offsets = [0, 0, 0], sizes = [8, 8, 4], strides = [1, 1, 1]} : vector<9x8x8xf32> to vector<8x8x4xf32>
    %c0_48 = arith.constant 0 : index
    %c0_49 = arith.constant 0 : index
    %c0_50 = arith.constant 0 : index
    %70 = vector.load %arg10[%c0_48, %c0_49, %c0_50] : memref<8x8x64xf32, #tpu.memory_space<vmem>>, vector<8x8x4xf32>
    tpu.vector_store %arg10[%c0_48, %c0_49, %c0_50], %69 {strides = array<i32>} : memref<8x8x64xf32, #tpu.memory_space<vmem>>, vector<8x8x4xf32>,
    %71 = vector.extract_strided_slice %68 {offsets = [0, 0, 4], sizes = [8, 8, 4], strides = [1, 1, 1]} : vector<9x8x8xf32> to vector<8x8x4xf32>
    %c0_51 = arith.constant 0 : index
    %c0_52 = arith.constant 0 : index
    %c4_53 = arith.constant 4 : index
    %72 = vector.load %arg10[%c0_51, %c0_52, %c4_53] : memref<8x8x64xf32, #tpu.memory_space<vmem>>, vector<8x8x4xf32>
    tpu.vector_store %arg10[%c0_51, %c0_52, %c4_53], %71 {strides = array<i32>} : memref<8x8x64xf32, #tpu.memory_space<vmem>>, vector<8x8x4xf32>,
    %73 = vector.extract_strided_slice %68 {offsets = [1, 0, 0], sizes = [8, 8, 4], strides = [1, 1, 1]} : vector<9x8x8xf32> to vector<8x8x4xf32>
    %c0_54 = arith.constant 0 : index
    %c0_55 = arith.constant 0 : index
    %c8_56 = arith.constant 8 : index
    %74 = vector.load %arg10[%c0_54, %c0_55, %c8_56] : memref<8x8x64xf32, #tpu.memory_space<vmem>>, vector<8x8x4xf32>
    tpu.vector_store %arg10[%c0_54, %c0_55, %c8_56], %73 {strides = array<i32>} : memref<8x8x64xf32, #tpu.memory_space<vmem>>, vector<8x8x4xf32>,
    %75 = vector.extract_strided_slice %68 {offsets = [1, 0, 4], sizes = [8, 8, 4], strides = [1, 1, 1]} : vector<9x8x8xf32> to vector<8x8x4xf32>
    %c0_57 = arith.constant 0 : index
    %c0_58 = arith.constant 0 : index
    %c12 = arith.constant 12 : index
    %76 = vector.load %arg10[%c0_57, %c0_58, %c12] : memref<8x8x64xf32, #tpu.memory_space<vmem>>, vector<8x8x4xf32>
    tpu.vector_store %arg10[%c0_57, %c0_58, %c12], %75 {strides = array<i32>} : memref<8x8x64xf32, #tpu.memory_space<vmem>>, vector<8x8x4xf32>,
    %c0_59 = arith.constant 0 : index
    %c1_60 = arith.constant 1 : index
    %c0_61 = arith.constant 0 : index
    %77 = tpu.strided_load %arg9[%c0_59, %c1_60, %c0_61] {strides = array<i32: 1, 2, 1>} : memref<9x18x8xf32, #tpu.memory_space<vmem>>, vector<9x8x8xf32>
    %78 = vector.extract_strided_slice %77 {offsets = [0, 0, 0], sizes = [8, 8, 4], strides = [1, 1, 1]} : vector<9x8x8xf32> to vector<8x8x4xf32>
    %c0_62 = arith.constant 0 : index
    %c0_63 = arith.constant 0 : index
    %c16 = arith.constant 16 : index
    %79 = vector.load %arg10[%c0_62, %c0_63, %c16] : memref<8x8x64xf32, #tpu.memory_space<vmem>>, vector<8x8x4xf32>
    tpu.vector_store %arg10[%c0_62, %c0_63, %c16], %78 {strides = array<i32>} : memref<8x8x64xf32, #tpu.memory_space<vmem>>, vector<8x8x4xf32>,
    %80 = vector.extract_strided_slice %77 {offsets = [0, 0, 4], sizes = [8, 8, 4], strides = [1, 1, 1]} : vector<9x8x8xf32> to vector<8x8x4xf32>
    %c0_64 = arith.constant 0 : index
    %c0_65 = arith.constant 0 : index
    %c20 = arith.constant 20 : index
    %81 = vector.load %arg10[%c0_64, %c0_65, %c20] : memref<8x8x64xf32, #tpu.memory_space<vmem>>, vector<8x8x4xf32>
    tpu.vector_store %arg10[%c0_64, %c0_65, %c20], %80 {strides = array<i32>} : memref<8x8x64xf32, #tpu.memory_space<vmem>>, vector<8x8x4xf32>,
    %82 = vector.extract_strided_slice %77 {offsets = [1, 0, 0], sizes = [8, 8, 4], strides = [1, 1, 1]} : vector<9x8x8xf32> to vector<8x8x4xf32>
    %c0_66 = arith.constant 0 : index
    %c0_67 = arith.constant 0 : index
    %c24 = arith.constant 24 : index
    %83 = vector.load %arg10[%c0_66, %c0_67, %c24] : memref<8x8x64xf32, #tpu.memory_space<vmem>>, vector<8x8x4xf32>
    tpu.vector_store %arg10[%c0_66, %c0_67, %c24], %82 {strides = array<i32>} : memref<8x8x64xf32, #tpu.memory_space<vmem>>, vector<8x8x4xf32>,
    %84 = vector.extract_strided_slice %77 {offsets = [1, 0, 4], sizes = [8, 8, 4], strides = [1, 1, 1]} : vector<9x8x8xf32> to vector<8x8x4xf32>
    %c0_68 = arith.constant 0 : index
    %c0_69 = arith.constant 0 : index
    %c28 = arith.constant 28 : index
    %85 = vector.load %arg10[%c0_68, %c0_69, %c28] : memref<8x8x64xf32, #tpu.memory_space<vmem>>, vector<8x8x4xf32>
    tpu.vector_store %arg10[%c0_68, %c0_69, %c28], %84 {strides = array<i32>} : memref<8x8x64xf32, #tpu.memory_space<vmem>>, vector<8x8x4xf32>,
    %c0_70 = arith.constant 0 : index
    %c2_71 = arith.constant 2 : index
    %c0_72 = arith.constant 0 : index
    %86 = tpu.strided_load %arg9[%c0_70, %c2_71, %c0_72] {strides = array<i32: 1, 2, 1>} : memref<9x18x8xf32, #tpu.memory_space<vmem>>, vector<9x8x8xf32>
    %87 = vector.extract_strided_slice %86 {offsets = [0, 0, 0], sizes = [8, 8, 4], strides = [1, 1, 1]} : vector<9x8x8xf32> to vector<8x8x4xf32>
    %c0_73 = arith.constant 0 : index
    %c0_74 = arith.constant 0 : index
    %c32 = arith.constant 32 : index
    %88 = vector.load %arg10[%c0_73, %c0_74, %c32] : memref<8x8x64xf32, #tpu.memory_space<vmem>>, vector<8x8x4xf32>
    tpu.vector_store %arg10[%c0_73, %c0_74, %c32], %87 {strides = array<i32>} : memref<8x8x64xf32, #tpu.memory_space<vmem>>, vector<8x8x4xf32>,
    %89 = vector.extract_strided_slice %86 {offsets = [0, 0, 4], sizes = [8, 8, 4], strides = [1, 1, 1]} : vector<9x8x8xf32> to vector<8x8x4xf32>
    %c0_75 = arith.constant 0 : index
    %c0_76 = arith.constant 0 : index
    %c36 = arith.constant 36 : index
    %90 = vector.load %arg10[%c0_75, %c0_76, %c36] : memref<8x8x64xf32, #tpu.memory_space<vmem>>, vector<8x8x4xf32>
    tpu.vector_store %arg10[%c0_75, %c0_76, %c36], %89 {strides = array<i32>} : memref<8x8x64xf32, #tpu.memory_space<vmem>>, vector<8x8x4xf32>,
    %91 = vector.extract_strided_slice %86 {offsets = [1, 0, 0], sizes = [8, 8, 4], strides = [1, 1, 1]} : vector<9x8x8xf32> to vector<8x8x4xf32>
    %c0_77 = arith.constant 0 : index
    %c0_78 = arith.constant 0 : index
    %c40 = arith.constant 40 : index
    %92 = vector.load %arg10[%c0_77, %c0_78, %c40] : memref<8x8x64xf32, #tpu.memory_space<vmem>>, vector<8x8x4xf32>
    tpu.vector_store %arg10[%c0_77, %c0_78, %c40], %91 {strides = array<i32>} : memref<8x8x64xf32, #tpu.memory_space<vmem>>, vector<8x8x4xf32>,
    %93 = vector.extract_strided_slice %86 {offsets = [1, 0, 4], sizes = [8, 8, 4], strides = [1, 1, 1]} : vector<9x8x8xf32> to vector<8x8x4xf32>
    %c0_79 = arith.constant 0 : index
    %c0_80 = arith.constant 0 : index
    %c44 = arith.constant 44 : index
    %94 = vector.load %arg10[%c0_79, %c0_80, %c44] : memref<8x8x64xf32, #tpu.memory_space<vmem>>, vector<8x8x4xf32>
    tpu.vector_store %arg10[%c0_79, %c0_80, %c44], %93 {strides = array<i32>} : memref<8x8x64xf32, #tpu.memory_space<vmem>>, vector<8x8x4xf32>,
    %c0_81 = arith.constant 0 : index
    %c3_82 = arith.constant 3 : index
    %c0_83 = arith.constant 0 : index
    %95 = tpu.strided_load %arg9[%c0_81, %c3_82, %c0_83] {strides = array<i32: 1, 2, 1>} : memref<9x18x8xf32, #tpu.memory_space<vmem>>, vector<9x8x8xf32>
    %96 = vector.extract_strided_slice %95 {offsets = [0, 0, 0], sizes = [8, 8, 4], strides = [1, 1, 1]} : vector<9x8x8xf32> to vector<8x8x4xf32>
    %c0_84 = arith.constant 0 : index
    %c0_85 = arith.constant 0 : index
    %c48 = arith.constant 48 : index
    %97 = vector.load %arg10[%c0_84, %c0_85, %c48] : memref<8x8x64xf32, #tpu.memory_space<vmem>>, vector<8x8x4xf32>
    tpu.vector_store %arg10[%c0_84, %c0_85, %c48], %96 {strides = array<i32>} : memref<8x8x64xf32, #tpu.memory_space<vmem>>, vector<8x8x4xf32>,
    %98 = vector.extract_strided_slice %95 {offsets = [0, 0, 4], sizes = [8, 8, 4], strides = [1, 1, 1]} : vector<9x8x8xf32> to vector<8x8x4xf32>
    %c0_86 = arith.constant 0 : index
    %c0_87 = arith.constant 0 : index
    %c52 = arith.constant 52 : index
    %99 = vector.load %arg10[%c0_86, %c0_87, %c52] : memref<8x8x64xf32, #tpu.memory_space<vmem>>, vector<8x8x4xf32>
    tpu.vector_store %arg10[%c0_86, %c0_87, %c52], %98 {strides = array<i32>} : memref<8x8x64xf32, #tpu.memory_space<vmem>>, vector<8x8x4xf32>,
    %100 = vector.extract_strided_slice %95 {offsets = [1, 0, 0], sizes = [8, 8, 4], strides = [1, 1, 1]} : vector<9x8x8xf32> to vector<8x8x4xf32>
    %c0_88 = arith.constant 0 : index
    %c0_89 = arith.constant 0 : index
    %c56 = arith.constant 56 : index
    %101 = vector.load %arg10[%c0_88, %c0_89, %c56] : memref<8x8x64xf32, #tpu.memory_space<vmem>>, vector<8x8x4xf32>
    tpu.vector_store %arg10[%c0_88, %c0_89, %c56], %100 {strides = array<i32>} : memref<8x8x64xf32, #tpu.memory_space<vmem>>, vector<8x8x4xf32>,
    %102 = vector.extract_strided_slice %95 {offsets = [1, 0, 4], sizes = [8, 8, 4], strides = [1, 1, 1]} : vector<9x8x8xf32> to vector<8x8x4xf32>
    %c0_90 = arith.constant 0 : index
    %c0_91 = arith.constant 0 : index
    %c60 = arith.constant 60 : index
    %103 = vector.load %arg10[%c0_90, %c0_91, %c60] : memref<8x8x64xf32, #tpu.memory_space<vmem>>, vector<8x8x4xf32>
    tpu.vector_store %arg10[%c0_90, %c0_91, %c60], %102 {strides = array<i32>} : memref<8x8x64xf32, #tpu.memory_space<vmem>>, vector<8x8x4xf32>,
    %c0_92 = arith.constant 0 : index
    %c0_93 = arith.constant 0 : index
    %c0_94 = arith.constant 0 : index
    %104 = vector.load %arg10[%c0_92, %c0_93, %c0_94] : memref<8x8x64xf32, #tpu.memory_space<vmem>>, vector<8x8x64xf32>
    %105 = vector.shape_cast %104 : vector<8x8x64xf32> to vector<64x64xf32>
    %c0_95 = arith.constant 0 : index
    %c0_96 = arith.constant 0 : index
    %106 = vector.load %arg2[%c0_95, %c0_96] : memref<64x16xf32, #tpu.memory_space<vmem>>, vector<64x16xf32>
    %cst_97 = arith.constant dense<0.000000e+00> : vector<64x16xf32>
    %107 = tpu.matmul %105, %106, %cst_97 {dimension_numbers = #tpu.dot_dimension_numbers<[1], [0], [0], [1], [0, 0, 1, 1], [], []>} : vector<64x64xf32>, vector<64x16xf32>, vector<64x16xf32> -> vector<64x16xf32>
    %c0_98 = arith.constant 0 : index
    %c0_99 = arith.constant 0 : index
    %108 = vector.load %arg3[%c0_98, %c0_99] : memref<1x16xf32, #tpu.memory_space<vmem>>, vector<1x16xf32>
    %109 = vector.broadcast %108 : vector<1x16xf32> to vector<64x16xf32>
    %110 = arith.addf %107, %109 : vector<64x16xf32>
    %cst_100 = arith.constant 0.000000e+00 : f32
    %111 = vector.broadcast %cst_100 : f32 to vector<64x16xf32>
    %112 = arith.cmpf oge, %110, %111 : vector<64x16xf32>
    %cst_101 = arith.constant 2.000000e-01 : f32
    %113 = vector.broadcast %cst_101 : f32 to vector<64x16xf32>
    %114 = arith.mulf %113, %110 : vector<64x16xf32>
    %115 = arith.select %112, %110, %114 : vector<64x16xi1>, vector<64x16xf32>
    %cst_102 = arith.constant 0.000000e+00 : f32
    %116 = vector.broadcast %cst_102 : f32 to vector<5x10x32xf32>
    %c0_103 = arith.constant 0 : index
    %c0_104 = arith.constant 0 : index
    %c0_105 = arith.constant 0 : index
    %117 = vector.load %arg11[%c0_103, %c0_104, %c0_105] : memref<5x10x32xf32, #tpu.memory_space<vmem>>, vector<5x10x32xf32>
    tpu.vector_store %arg11[%c0_103, %c0_104, %c0_105], %116 {strides = array<i32>} : memref<5x10x32xf32, #tpu.memory_space<vmem>>, vector<5x10x32xf32>,
    %118 = vector.extract_strided_slice %115 {offsets = [0, 0], sizes = [8, 16], strides = [1, 1]} : vector<64x16xf32> to vector<8x16xf32>
    %c0_106 = arith.constant 0 : index
    %c1_107 = arith.constant 1 : index
    %c16_108 = arith.constant 16 : index
    %119 = vector.load %arg11[%c0_106, %c1_107, %c16_108] : memref<5x10x32xf32, #tpu.memory_space<vmem>>, vector<1x8x16xf32>
    %120 = vector.shape_cast %119 : vector<1x8x16xf32> to vector<8x16xf32>
    %121 = vector.shape_cast %118 : vector<8x16xf32> to vector<1x8x16xf32>
    tpu.vector_store %arg11[%c0_106, %c1_107, %c16_108], %121 {strides = array<i32>} : memref<5x10x32xf32, #tpu.memory_space<vmem>>, vector<1x8x16xf32>,
    %122 = vector.extract_strided_slice %115 {offsets = [8, 0], sizes = [8, 16], strides = [1, 1]} : vector<64x16xf32> to vector<8x16xf32>
    %c1_109 = arith.constant 1 : index
    %c1_110 = arith.constant 1 : index
    %c0_111 = arith.constant 0 : index
    %123 = vector.load %arg11[%c1_109, %c1_110, %c0_111] : memref<5x10x32xf32, #tpu.memory_space<vmem>>, vector<1x8x16xf32>
    %124 = vector.shape_cast %123 : vector<1x8x16xf32> to vector<8x16xf32>
    %125 = vector.shape_cast %122 : vector<8x16xf32> to vector<1x8x16xf32>
    tpu.vector_store %arg11[%c1_109, %c1_110, %c0_111], %125 {strides = array<i32>} : memref<5x10x32xf32, #tpu.memory_space<vmem>>, vector<1x8x16xf32>,
    %126 = vector.extract_strided_slice %115 {offsets = [16, 0], sizes = [8, 16], strides = [1, 1]} : vector<64x16xf32> to vector<8x16xf32>
    %c1_112 = arith.constant 1 : index
    %c1_113 = arith.constant 1 : index
    %c16_114 = arith.constant 16 : index
    %127 = vector.load %arg11[%c1_112, %c1_113, %c16_114] : memref<5x10x32xf32, #tpu.memory_space<vmem>>, vector<1x8x16xf32>
    %128 = vector.shape_cast %127 : vector<1x8x16xf32> to vector<8x16xf32>
    %129 = vector.shape_cast %126 : vector<8x16xf32> to vector<1x8x16xf32>
    tpu.vector_store %arg11[%c1_112, %c1_113, %c16_114], %129 {strides = array<i32>} : memref<5x10x32xf32, #tpu.memory_space<vmem>>, vector<1x8x16xf32>,
    %130 = vector.extract_strided_slice %115 {offsets = [24, 0], sizes = [8, 16], strides = [1, 1]} : vector<64x16xf32> to vector<8x16xf32>
    %c2_115 = arith.constant 2 : index
    %c1_116 = arith.constant 1 : index
    %c0_117 = arith.constant 0 : index
    %131 = vector.load %arg11[%c2_115, %c1_116, %c0_117] : memref<5x10x32xf32, #tpu.memory_space<vmem>>, vector<1x8x16xf32>
    %132 = vector.shape_cast %131 : vector<1x8x16xf32> to vector<8x16xf32>
    %133 = vector.shape_cast %130 : vector<8x16xf32> to vector<1x8x16xf32>
    tpu.vector_store %arg11[%c2_115, %c1_116, %c0_117], %133 {strides = array<i32>} : memref<5x10x32xf32, #tpu.memory_space<vmem>>, vector<1x8x16xf32>,
    %134 = vector.extract_strided_slice %115 {offsets = [32, 0], sizes = [8, 16], strides = [1, 1]} : vector<64x16xf32> to vector<8x16xf32>
    %c2_118 = arith.constant 2 : index
    %c1_119 = arith.constant 1 : index
    %c16_120 = arith.constant 16 : index
    %135 = vector.load %arg11[%c2_118, %c1_119, %c16_120] : memref<5x10x32xf32, #tpu.memory_space<vmem>>, vector<1x8x16xf32>
    %136 = vector.shape_cast %135 : vector<1x8x16xf32> to vector<8x16xf32>
    %137 = vector.shape_cast %134 : vector<8x16xf32> to vector<1x8x16xf32>
    tpu.vector_store %arg11[%c2_118, %c1_119, %c16_120], %137 {strides = array<i32>} : memref<5x10x32xf32, #tpu.memory_space<vmem>>, vector<1x8x16xf32>,
    %138 = vector.extract_strided_slice %115 {offsets = [40, 0], sizes = [8, 16], strides = [1, 1]} : vector<64x16xf32> to vector<8x16xf32>
    %c3_121 = arith.constant 3 : index
    %c1_122 = arith.constant 1 : index
    %c0_123 = arith.constant 0 : index
    %139 = vector.load %arg11[%c3_121, %c1_122, %c0_123] : memref<5x10x32xf32, #tpu.memory_space<vmem>>, vector<1x8x16xf32>
    %140 = vector.shape_cast %139 : vector<1x8x16xf32> to vector<8x16xf32>
    %141 = vector.shape_cast %138 : vector<8x16xf32> to vector<1x8x16xf32>
    tpu.vector_store %arg11[%c3_121, %c1_122, %c0_123], %141 {strides = array<i32>} : memref<5x10x32xf32, #tpu.memory_space<vmem>>, vector<1x8x16xf32>,
    %142 = vector.extract_strided_slice %115 {offsets = [48, 0], sizes = [8, 16], strides = [1, 1]} : vector<64x16xf32> to vector<8x16xf32>
    %c3_124 = arith.constant 3 : index
    %c1_125 = arith.constant 1 : index
    %c16_126 = arith.constant 16 : index
    %143 = vector.load %arg11[%c3_124, %c1_125, %c16_126] : memref<5x10x32xf32, #tpu.memory_space<vmem>>, vector<1x8x16xf32>
    %144 = vector.shape_cast %143 : vector<1x8x16xf32> to vector<8x16xf32>
    %145 = vector.shape_cast %142 : vector<8x16xf32> to vector<1x8x16xf32>
    tpu.vector_store %arg11[%c3_124, %c1_125, %c16_126], %145 {strides = array<i32>} : memref<5x10x32xf32, #tpu.memory_space<vmem>>, vector<1x8x16xf32>,
    %146 = vector.extract_strided_slice %115 {offsets = [56, 0], sizes = [8, 16], strides = [1, 1]} : vector<64x16xf32> to vector<8x16xf32>
    %c4_127 = arith.constant 4 : index
    %c1_128 = arith.constant 1 : index
    %c0_129 = arith.constant 0 : index
    %147 = vector.load %arg11[%c4_127, %c1_128, %c0_129] : memref<5x10x32xf32, #tpu.memory_space<vmem>>, vector<1x8x16xf32>
    %148 = vector.shape_cast %147 : vector<1x8x16xf32> to vector<8x16xf32>
    %149 = vector.shape_cast %146 : vector<8x16xf32> to vector<1x8x16xf32>
    tpu.vector_store %arg11[%c4_127, %c1_128, %c0_129], %149 {strides = array<i32>} : memref<5x10x32xf32, #tpu.memory_space<vmem>>, vector<1x8x16xf32>,
    %c0_130 = arith.constant 0 : index
    %c0_131 = arith.constant 0 : index
    %c0_132 = arith.constant 0 : index
    %150 = tpu.strided_load %arg11[%c0_130, %c0_131, %c0_132] {strides = array<i32: 1, 2, 1>} : memref<5x10x32xf32, #tpu.memory_space<vmem>>, vector<5x4x32xf32>
    %151 = vector.extract_strided_slice %150 {offsets = [0, 0, 0], sizes = [4, 4, 16], strides = [1, 1, 1]} : vector<5x4x32xf32> to vector<4x4x16xf32>
    %c0_133 = arith.constant 0 : index
    %c0_134 = arith.constant 0 : index
    %c0_135 = arith.constant 0 : index
    %152 = vector.load %arg12[%c0_133, %c0_134, %c0_135] : memref<4x4x256xf32, #tpu.memory_space<vmem>>, vector<4x4x16xf32>
    tpu.vector_store %arg12[%c0_133, %c0_134, %c0_135], %151 {strides = array<i32>} : memref<4x4x256xf32, #tpu.memory_space<vmem>>, vector<4x4x16xf32>,
    %153 = vector.extract_strided_slice %150 {offsets = [0, 0, 16], sizes = [4, 4, 16], strides = [1, 1, 1]} : vector<5x4x32xf32> to vector<4x4x16xf32>
    %c0_136 = arith.constant 0 : index
    %c0_137 = arith.constant 0 : index
    %c16_138 = arith.constant 16 : index
    %154 = vector.load %arg12[%c0_136, %c0_137, %c16_138] : memref<4x4x256xf32, #tpu.memory_space<vmem>>, vector<4x4x16xf32>
    tpu.vector_store %arg12[%c0_136, %c0_137, %c16_138], %153 {strides = array<i32>} : memref<4x4x256xf32, #tpu.memory_space<vmem>>, vector<4x4x16xf32>,
    %155 = vector.extract_strided_slice %150 {offsets = [1, 0, 0], sizes = [4, 4, 16], strides = [1, 1, 1]} : vector<5x4x32xf32> to vector<4x4x16xf32>
    %c0_139 = arith.constant 0 : index
    %c0_140 = arith.constant 0 : index
    %c32_141 = arith.constant 32 : index
    %156 = vector.load %arg12[%c0_139, %c0_140, %c32_141] : memref<4x4x256xf32, #tpu.memory_space<vmem>>, vector<4x4x16xf32>
    tpu.vector_store %arg12[%c0_139, %c0_140, %c32_141], %155 {strides = array<i32>} : memref<4x4x256xf32, #tpu.memory_space<vmem>>, vector<4x4x16xf32>,
    %157 = vector.extract_strided_slice %150 {offsets = [1, 0, 16], sizes = [4, 4, 16], strides = [1, 1, 1]} : vector<5x4x32xf32> to vector<4x4x16xf32>
    %c0_142 = arith.constant 0 : index
    %c0_143 = arith.constant 0 : index
    %c48_144 = arith.constant 48 : index
    %158 = vector.load %arg12[%c0_142, %c0_143, %c48_144] : memref<4x4x256xf32, #tpu.memory_space<vmem>>, vector<4x4x16xf32>
    tpu.vector_store %arg12[%c0_142, %c0_143, %c48_144], %157 {strides = array<i32>} : memref<4x4x256xf32, #tpu.memory_space<vmem>>, vector<4x4x16xf32>,
    %c0_145 = arith.constant 0 : index
    %c1_146 = arith.constant 1 : index
    %c0_147 = arith.constant 0 : index
    %159 = tpu.strided_load %arg11[%c0_145, %c1_146, %c0_147] {strides = array<i32: 1, 2, 1>} : memref<5x10x32xf32, #tpu.memory_space<vmem>>, vector<5x4x32xf32>
    %160 = vector.extract_strided_slice %159 {offsets = [0, 0, 0], sizes = [4, 4, 16], strides = [1, 1, 1]} : vector<5x4x32xf32> to vector<4x4x16xf32>
    %c0_148 = arith.constant 0 : index
    %c0_149 = arith.constant 0 : index
    %c64 = arith.constant 64 : index
    %161 = vector.load %arg12[%c0_148, %c0_149, %c64] : memref<4x4x256xf32, #tpu.memory_space<vmem>>, vector<4x4x16xf32>
    tpu.vector_store %arg12[%c0_148, %c0_149, %c64], %160 {strides = array<i32>} : memref<4x4x256xf32, #tpu.memory_space<vmem>>, vector<4x4x16xf32>,
    %162 = vector.extract_strided_slice %159 {offsets = [0, 0, 16], sizes = [4, 4, 16], strides = [1, 1, 1]} : vector<5x4x32xf32> to vector<4x4x16xf32>
    %c0_150 = arith.constant 0 : index
    %c0_151 = arith.constant 0 : index
    %c80 = arith.constant 80 : index
    %163 = vector.load %arg12[%c0_150, %c0_151, %c80] : memref<4x4x256xf32, #tpu.memory_space<vmem>>, vector<4x4x16xf32>
    tpu.vector_store %arg12[%c0_150, %c0_151, %c80], %162 {strides = array<i32>} : memref<4x4x256xf32, #tpu.memory_space<vmem>>, vector<4x4x16xf32>,
    %164 = vector.extract_strided_slice %159 {offsets = [1, 0, 0], sizes = [4, 4, 16], strides = [1, 1, 1]} : vector<5x4x32xf32> to vector<4x4x16xf32>
    %c0_152 = arith.constant 0 : index
    %c0_153 = arith.constant 0 : index
    %c96 = arith.constant 96 : index
    %165 = vector.load %arg12[%c0_152, %c0_153, %c96] : memref<4x4x256xf32, #tpu.memory_space<vmem>>, vector<4x4x16xf32>
    tpu.vector_store %arg12[%c0_152, %c0_153, %c96], %164 {strides = array<i32>} : memref<4x4x256xf32, #tpu.memory_space<vmem>>, vector<4x4x16xf32>,
    %166 = vector.extract_strided_slice %159 {offsets = [1, 0, 16], sizes = [4, 4, 16], strides = [1, 1, 1]} : vector<5x4x32xf32> to vector<4x4x16xf32>
    %c0_154 = arith.constant 0 : index
    %c0_155 = arith.constant 0 : index
    %c112 = arith.constant 112 : index
    %167 = vector.load %arg12[%c0_154, %c0_155, %c112] : memref<4x4x256xf32, #tpu.memory_space<vmem>>, vector<4x4x16xf32>
    tpu.vector_store %arg12[%c0_154, %c0_155, %c112], %166 {strides = array<i32>} : memref<4x4x256xf32, #tpu.memory_space<vmem>>, vector<4x4x16xf32>,
    %c0_156 = arith.constant 0 : index
    %c2_157 = arith.constant 2 : index
    %c0_158 = arith.constant 0 : index
    %168 = tpu.strided_load %arg11[%c0_156, %c2_157, %c0_158] {strides = array<i32: 1, 2, 1>} : memref<5x10x32xf32, #tpu.memory_space<vmem>>, vector<5x4x32xf32>
    %169 = vector.extract_strided_slice %168 {offsets = [0, 0, 0], sizes = [4, 4, 16], strides = [1, 1, 1]} : vector<5x4x32xf32> to vector<4x4x16xf32>
    %c0_159 = arith.constant 0 : index
    %c0_160 = arith.constant 0 : index
    %c128 = arith.constant 128 : index
    %170 = vector.load %arg12[%c0_159, %c0_160, %c128] : memref<4x4x256xf32, #tpu.memory_space<vmem>>, vector<4x4x16xf32>
    tpu.vector_store %arg12[%c0_159, %c0_160, %c128], %169 {strides = array<i32>} : memref<4x4x256xf32, #tpu.memory_space<vmem>>, vector<4x4x16xf32>,
    %171 = vector.extract_strided_slice %168 {offsets = [0, 0, 16], sizes = [4, 4, 16], strides = [1, 1, 1]} : vector<5x4x32xf32> to vector<4x4x16xf32>
    %c0_161 = arith.constant 0 : index
    %c0_162 = arith.constant 0 : index
    %c144 = arith.constant 144 : index
    %172 = vector.load %arg12[%c0_161, %c0_162, %c144] : memref<4x4x256xf32, #tpu.memory_space<vmem>>, vector<4x4x16xf32>
    tpu.vector_store %arg12[%c0_161, %c0_162, %c144], %171 {strides = array<i32>} : memref<4x4x256xf32, #tpu.memory_space<vmem>>, vector<4x4x16xf32>,
    %173 = vector.extract_strided_slice %168 {offsets = [1, 0, 0], sizes = [4, 4, 16], strides = [1, 1, 1]} : vector<5x4x32xf32> to vector<4x4x16xf32>
    %c0_163 = arith.constant 0 : index
    %c0_164 = arith.constant 0 : index
    %c160 = arith.constant 160 : index
    %174 = vector.load %arg12[%c0_163, %c0_164, %c160] : memref<4x4x256xf32, #tpu.memory_space<vmem>>, vector<4x4x16xf32>
    tpu.vector_store %arg12[%c0_163, %c0_164, %c160], %173 {strides = array<i32>} : memref<4x4x256xf32, #tpu.memory_space<vmem>>, vector<4x4x16xf32>,
    %175 = vector.extract_strided_slice %168 {offsets = [1, 0, 16], sizes = [4, 4, 16], strides = [1, 1, 1]} : vector<5x4x32xf32> to vector<4x4x16xf32>
    %c0_165 = arith.constant 0 : index
    %c0_166 = arith.constant 0 : index
    %c176 = arith.constant 176 : index
    %176 = vector.load %arg12[%c0_165, %c0_166, %c176] : memref<4x4x256xf32, #tpu.memory_space<vmem>>, vector<4x4x16xf32>
    tpu.vector_store %arg12[%c0_165, %c0_166, %c176], %175 {strides = array<i32>} : memref<4x4x256xf32, #tpu.memory_space<vmem>>, vector<4x4x16xf32>,
    %c0_167 = arith.constant 0 : index
    %c3_168 = arith.constant 3 : index
    %c0_169 = arith.constant 0 : index
    %177 = tpu.strided_load %arg11[%c0_167, %c3_168, %c0_169] {strides = array<i32: 1, 2, 1>} : memref<5x10x32xf32, #tpu.memory_space<vmem>>, vector<5x4x32xf32>
    %178 = vector.extract_strided_slice %177 {offsets = [0, 0, 0], sizes = [4, 4, 16], strides = [1, 1, 1]} : vector<5x4x32xf32> to vector<4x4x16xf32>
    %c0_170 = arith.constant 0 : index
    %c0_171 = arith.constant 0 : index
    %c192 = arith.constant 192 : index
    %179 = vector.load %arg12[%c0_170, %c0_171, %c192] : memref<4x4x256xf32, #tpu.memory_space<vmem>>, vector<4x4x16xf32>
    tpu.vector_store %arg12[%c0_170, %c0_171, %c192], %178 {strides = array<i32>} : memref<4x4x256xf32, #tpu.memory_space<vmem>>, vector<4x4x16xf32>,
    %180 = vector.extract_strided_slice %177 {offsets = [0, 0, 16], sizes = [4, 4, 16], strides = [1, 1, 1]} : vector<5x4x32xf32> to vector<4x4x16xf32>
    %c0_172 = arith.constant 0 : index
    %c0_173 = arith.constant 0 : index
    %c208 = arith.constant 208 : index
    %181 = vector.load %arg12[%c0_172, %c0_173, %c208] : memref<4x4x256xf32, #tpu.memory_space<vmem>>, vector<4x4x16xf32>
    tpu.vector_store %arg12[%c0_172, %c0_173, %c208], %180 {strides = array<i32>} : memref<4x4x256xf32, #tpu.memory_space<vmem>>, vector<4x4x16xf32>,
    %182 = vector.extract_strided_slice %177 {offsets = [1, 0, 0], sizes = [4, 4, 16], strides = [1, 1, 1]} : vector<5x4x32xf32> to vector<4x4x16xf32>
    %c0_174 = arith.constant 0 : index
    %c0_175 = arith.constant 0 : index
    %c224 = arith.constant 224 : index
    %183 = vector.load %arg12[%c0_174, %c0_175, %c224] : memref<4x4x256xf32, #tpu.memory_space<vmem>>, vector<4x4x16xf32>
    tpu.vector_store %arg12[%c0_174, %c0_175, %c224], %182 {strides = array<i32>} : memref<4x4x256xf32, #tpu.memory_space<vmem>>, vector<4x4x16xf32>,
    %184 = vector.extract_strided_slice %177 {offsets = [1, 0, 16], sizes = [4, 4, 16], strides = [1, 1, 1]} : vector<5x4x32xf32> to vector<4x4x16xf32>
    %c0_176 = arith.constant 0 : index
    %c0_177 = arith.constant 0 : index
    %c240 = arith.constant 240 : index
    %185 = vector.load %arg12[%c0_176, %c0_177, %c240] : memref<4x4x256xf32, #tpu.memory_space<vmem>>, vector<4x4x16xf32>
    tpu.vector_store %arg12[%c0_176, %c0_177, %c240], %184 {strides = array<i32>} : memref<4x4x256xf32, #tpu.memory_space<vmem>>, vector<4x4x16xf32>,
    %c0_178 = arith.constant 0 : index
    %c0_179 = arith.constant 0 : index
    %c0_180 = arith.constant 0 : index
    %186 = vector.load %arg12[%c0_178, %c0_179, %c0_180] : memref<4x4x256xf32, #tpu.memory_space<vmem>>, vector<4x4x256xf32>
    %187 = vector.shape_cast %186 : vector<4x4x256xf32> to vector<16x256xf32>
    %c0_181 = arith.constant 0 : index
    %c0_182 = arith.constant 0 : index
    %188 = vector.load %arg4[%c0_181, %c0_182] : memref<256x32xf32, #tpu.memory_space<vmem>>, vector<256x32xf32>
    %cst_183 = arith.constant dense<0.000000e+00> : vector<16x32xf32>
    %189 = tpu.matmul %187, %188, %cst_183 {dimension_numbers = #tpu.dot_dimension_numbers<[1], [0], [0], [1], [0, 0, 1, 1], [], []>} : vector<16x256xf32>, vector<256x32xf32>, vector<16x32xf32> -> vector<16x32xf32>
    %c0_184 = arith.constant 0 : index
    %c0_185 = arith.constant 0 : index
    %190 = vector.load %arg5[%c0_184, %c0_185] : memref<1x32xf32, #tpu.memory_space<vmem>>, vector<1x32xf32>
    %191 = vector.broadcast %190 : vector<1x32xf32> to vector<16x32xf32>
    %192 = arith.addf %189, %191 : vector<16x32xf32>
    %cst_186 = arith.constant 0.000000e+00 : f32
    %193 = vector.broadcast %cst_186 : f32 to vector<16x32xf32>
    %194 = arith.cmpf oge, %192, %193 : vector<16x32xf32>
    %cst_187 = arith.constant 2.000000e-01 : f32
    %195 = vector.broadcast %cst_187 : f32 to vector<16x32xf32>
    %196 = arith.mulf %195, %192 : vector<16x32xf32>
    %197 = arith.select %194, %192, %196 : vector<16x32xi1>, vector<16x32xf32>
    %cst_188 = arith.constant 0.000000e+00 : f32
    %198 = vector.broadcast %cst_188 : f32 to vector<3x6x64xf32>
    %c0_189 = arith.constant 0 : index
    %c0_190 = arith.constant 0 : index
    %c0_191 = arith.constant 0 : index
    %199 = vector.load %arg13[%c0_189, %c0_190, %c0_191] : memref<3x6x64xf32, #tpu.memory_space<vmem>>, vector<3x6x64xf32>
    tpu.vector_store %arg13[%c0_189, %c0_190, %c0_191], %198 {strides = array<i32>} : memref<3x6x64xf32, #tpu.memory_space<vmem>>, vector<3x6x64xf32>,
    %200 = vector.extract_strided_slice %197 {offsets = [0, 0], sizes = [4, 32], strides = [1, 1]} : vector<16x32xf32> to vector<4x32xf32>
    %c0_192 = arith.constant 0 : index
    %c1_193 = arith.constant 1 : index
    %c32_194 = arith.constant 32 : index
    %201 = vector.load %arg13[%c0_192, %c1_193, %c32_194] : memref<3x6x64xf32, #tpu.memory_space<vmem>>, vector<1x4x32xf32>
    %202 = vector.shape_cast %201 : vector<1x4x32xf32> to vector<4x32xf32>
    %203 = vector.shape_cast %200 : vector<4x32xf32> to vector<1x4x32xf32>
    tpu.vector_store %arg13[%c0_192, %c1_193, %c32_194], %203 {strides = array<i32>} : memref<3x6x64xf32, #tpu.memory_space<vmem>>, vector<1x4x32xf32>,
    %204 = vector.extract_strided_slice %197 {offsets = [4, 0], sizes = [4, 32], strides = [1, 1]} : vector<16x32xf32> to vector<4x32xf32>
    %c1_195 = arith.constant 1 : index
    %c1_196 = arith.constant 1 : index
    %c0_197 = arith.constant 0 : index
    %205 = vector.load %arg13[%c1_195, %c1_196, %c0_197] : memref<3x6x64xf32, #tpu.memory_space<vmem>>, vector<1x4x32xf32>
    %206 = vector.shape_cast %205 : vector<1x4x32xf32> to vector<4x32xf32>
    %207 = vector.shape_cast %204 : vector<4x32xf32> to vector<1x4x32xf32>
    tpu.vector_store %arg13[%c1_195, %c1_196, %c0_197], %207 {strides = array<i32>} : memref<3x6x64xf32, #tpu.memory_space<vmem>>, vector<1x4x32xf32>,
    %208 = vector.extract_strided_slice %197 {offsets = [8, 0], sizes = [4, 32], strides = [1, 1]} : vector<16x32xf32> to vector<4x32xf32>
    %c1_198 = arith.constant 1 : index
    %c1_199 = arith.constant 1 : index
    %c32_200 = arith.constant 32 : index
    %209 = vector.load %arg13[%c1_198, %c1_199, %c32_200] : memref<3x6x64xf32, #tpu.memory_space<vmem>>, vector<1x4x32xf32>
    %210 = vector.shape_cast %209 : vector<1x4x32xf32> to vector<4x32xf32>
    %211 = vector.shape_cast %208 : vector<4x32xf32> to vector<1x4x32xf32>
    tpu.vector_store %arg13[%c1_198, %c1_199, %c32_200], %211 {strides = array<i32>} : memref<3x6x64xf32, #tpu.memory_space<vmem>>, vector<1x4x32xf32>,
    %212 = vector.extract_strided_slice %197 {offsets = [12, 0], sizes = [4, 32], strides = [1, 1]} : vector<16x32xf32> to vector<4x32xf32>
    %c2_201 = arith.constant 2 : index
    %c1_202 = arith.constant 1 : index
    %c0_203 = arith.constant 0 : index
    %213 = vector.load %arg13[%c2_201, %c1_202, %c0_203] : memref<3x6x64xf32, #tpu.memory_space<vmem>>, vector<1x4x32xf32>
    %214 = vector.shape_cast %213 : vector<1x4x32xf32> to vector<4x32xf32>
    %215 = vector.shape_cast %212 : vector<4x32xf32> to vector<1x4x32xf32>
    tpu.vector_store %arg13[%c2_201, %c1_202, %c0_203], %215 {strides = array<i32>} : memref<3x6x64xf32, #tpu.memory_space<vmem>>, vector<1x4x32xf32>,
    %c0_204 = arith.constant 0 : index
    %c0_205 = arith.constant 0 : index
    %c0_206 = arith.constant 0 : index
    %216 = tpu.strided_load %arg13[%c0_204, %c0_205, %c0_206] {strides = array<i32: 1, 2, 1>} : memref<3x6x64xf32, #tpu.memory_space<vmem>>, vector<3x2x64xf32>
    %217 = vector.extract_strided_slice %216 {offsets = [0, 0, 0], sizes = [2, 2, 32], strides = [1, 1, 1]} : vector<3x2x64xf32> to vector<2x2x32xf32>
    %c0_207 = arith.constant 0 : index
    %c0_208 = arith.constant 0 : index
    %c0_209 = arith.constant 0 : index
    %218 = vector.load %arg14[%c0_207, %c0_208, %c0_209] : memref<2x2x512xf32, #tpu.memory_space<vmem>>, vector<2x2x32xf32>
    tpu.vector_store %arg14[%c0_207, %c0_208, %c0_209], %217 {strides = array<i32>} : memref<2x2x512xf32, #tpu.memory_space<vmem>>, vector<2x2x32xf32>,
    %219 = vector.extract_strided_slice %216 {offsets = [0, 0, 32], sizes = [2, 2, 32], strides = [1, 1, 1]} : vector<3x2x64xf32> to vector<2x2x32xf32>
    %c0_210 = arith.constant 0 : index
    %c0_211 = arith.constant 0 : index
    %c32_212 = arith.constant 32 : index
    %220 = vector.load %arg14[%c0_210, %c0_211, %c32_212] : memref<2x2x512xf32, #tpu.memory_space<vmem>>, vector<2x2x32xf32>
    tpu.vector_store %arg14[%c0_210, %c0_211, %c32_212], %219 {strides = array<i32>} : memref<2x2x512xf32, #tpu.memory_space<vmem>>, vector<2x2x32xf32>,
    %221 = vector.extract_strided_slice %216 {offsets = [1, 0, 0], sizes = [2, 2, 32], strides = [1, 1, 1]} : vector<3x2x64xf32> to vector<2x2x32xf32>
    %c0_213 = arith.constant 0 : index
    %c0_214 = arith.constant 0 : index
    %c64_215 = arith.constant 64 : index
    %222 = vector.load %arg14[%c0_213, %c0_214, %c64_215] : memref<2x2x512xf32, #tpu.memory_space<vmem>>, vector<2x2x32xf32>
    tpu.vector_store %arg14[%c0_213, %c0_214, %c64_215], %221 {strides = array<i32>} : memref<2x2x512xf32, #tpu.memory_space<vmem>>, vector<2x2x32xf32>,
    %223 = vector.extract_strided_slice %216 {offsets = [1, 0, 32], sizes = [2, 2, 32], strides = [1, 1, 1]} : vector<3x2x64xf32> to vector<2x2x32xf32>
    %c0_216 = arith.constant 0 : index
    %c0_217 = arith.constant 0 : index
    %c96_218 = arith.constant 96 : index
    %224 = vector.load %arg14[%c0_216, %c0_217, %c96_218] : memref<2x2x512xf32, #tpu.memory_space<vmem>>, vector<2x2x32xf32>
    tpu.vector_store %arg14[%c0_216, %c0_217, %c96_218], %223 {strides = array<i32>} : memref<2x2x512xf32, #tpu.memory_space<vmem>>, vector<2x2x32xf32>,
    %c0_219 = arith.constant 0 : index
    %c1_220 = arith.constant 1 : index
    %c0_221 = arith.constant 0 : index
    %225 = tpu.strided_load %arg13[%c0_219, %c1_220, %c0_221] {strides = array<i32: 1, 2, 1>} : memref<3x6x64xf32, #tpu.memory_space<vmem>>, vector<3x2x64xf32>
    %226 = vector.extract_strided_slice %225 {offsets = [0, 0, 0], sizes = [2, 2, 32], strides = [1, 1, 1]} : vector<3x2x64xf32> to vector<2x2x32xf32>
    %c0_222 = arith.constant 0 : index
    %c0_223 = arith.constant 0 : index
    %c128_224 = arith.constant 128 : index
    %227 = vector.load %arg14[%c0_222, %c0_223, %c128_224] : memref<2x2x512xf32, #tpu.memory_space<vmem>>, vector<2x2x32xf32>
    tpu.vector_store %arg14[%c0_222, %c0_223, %c128_224], %226 {strides = array<i32>} : memref<2x2x512xf32, #tpu.memory_space<vmem>>, vector<2x2x32xf32>,
    %228 = vector.extract_strided_slice %225 {offsets = [0, 0, 32], sizes = [2, 2, 32], strides = [1, 1, 1]} : vector<3x2x64xf32> to vector<2x2x32xf32>
    %c0_225 = arith.constant 0 : index
    %c0_226 = arith.constant 0 : index
    %c160_227 = arith.constant 160 : index
    %229 = vector.load %arg14[%c0_225, %c0_226, %c160_227] : memref<2x2x512xf32, #tpu.memory_space<vmem>>, vector<2x2x32xf32>
    tpu.vector_store %arg14[%c0_225, %c0_226, %c160_227], %228 {strides = array<i32>} : memref<2x2x512xf32, #tpu.memory_space<vmem>>, vector<2x2x32xf32>,
    %230 = vector.extract_strided_slice %225 {offsets = [1, 0, 0], sizes = [2, 2, 32], strides = [1, 1, 1]} : vector<3x2x64xf32> to vector<2x2x32xf32>
    %c0_228 = arith.constant 0 : index
    %c0_229 = arith.constant 0 : index
    %c192_230 = arith.constant 192 : index
    %231 = vector.load %arg14[%c0_228, %c0_229, %c192_230] : memref<2x2x512xf32, #tpu.memory_space<vmem>>, vector<2x2x32xf32>
    tpu.vector_store %arg14[%c0_228, %c0_229, %c192_230], %230 {strides = array<i32>} : memref<2x2x512xf32, #tpu.memory_space<vmem>>, vector<2x2x32xf32>,
    %232 = vector.extract_strided_slice %225 {offsets = [1, 0, 32], sizes = [2, 2, 32], strides = [1, 1, 1]} : vector<3x2x64xf32> to vector<2x2x32xf32>
    %c0_231 = arith.constant 0 : index
    %c0_232 = arith.constant 0 : index
    %c224_233 = arith.constant 224 : index
    %233 = vector.load %arg14[%c0_231, %c0_232, %c224_233] : memref<2x2x512xf32, #tpu.memory_space<vmem>>, vector<2x2x32xf32>
    tpu.vector_store %arg14[%c0_231, %c0_232, %c224_233], %232 {strides = array<i32>} : memref<2x2x512xf32, #tpu.memory_space<vmem>>, vector<2x2x32xf32>,
    %c0_234 = arith.constant 0 : index
    %c2_235 = arith.constant 2 : index
    %c0_236 = arith.constant 0 : index
    %234 = tpu.strided_load %arg13[%c0_234, %c2_235, %c0_236] {strides = array<i32: 1, 2, 1>} : memref<3x6x64xf32, #tpu.memory_space<vmem>>, vector<3x2x64xf32>
    %235 = vector.extract_strided_slice %234 {offsets = [0, 0, 0], sizes = [2, 2, 32], strides = [1, 1, 1]} : vector<3x2x64xf32> to vector<2x2x32xf32>
    %c0_237 = arith.constant 0 : index
    %c0_238 = arith.constant 0 : index
    %c256 = arith.constant 256 : index
    %236 = vector.load %arg14[%c0_237, %c0_238, %c256] : memref<2x2x512xf32, #tpu.memory_space<vmem>>, vector<2x2x32xf32>
    tpu.vector_store %arg14[%c0_237, %c0_238, %c256], %235 {strides = array<i32>} : memref<2x2x512xf32, #tpu.memory_space<vmem>>, vector<2x2x32xf32>,
    %237 = vector.extract_strided_slice %234 {offsets = [0, 0, 32], sizes = [2, 2, 32], strides = [1, 1, 1]} : vector<3x2x64xf32> to vector<2x2x32xf32>
    %c0_239 = arith.constant 0 : index
    %c0_240 = arith.constant 0 : index
    %c288 = arith.constant 288 : index
    %238 = vector.load %arg14[%c0_239, %c0_240, %c288] : memref<2x2x512xf32, #tpu.memory_space<vmem>>, vector<2x2x32xf32>
    tpu.vector_store %arg14[%c0_239, %c0_240, %c288], %237 {strides = array<i32>} : memref<2x2x512xf32, #tpu.memory_space<vmem>>, vector<2x2x32xf32>,
    %239 = vector.extract_strided_slice %234 {offsets = [1, 0, 0], sizes = [2, 2, 32], strides = [1, 1, 1]} : vector<3x2x64xf32> to vector<2x2x32xf32>
    %c0_241 = arith.constant 0 : index
    %c0_242 = arith.constant 0 : index
    %c320 = arith.constant 320 : index
    %240 = vector.load %arg14[%c0_241, %c0_242, %c320] : memref<2x2x512xf32, #tpu.memory_space<vmem>>, vector<2x2x32xf32>
    tpu.vector_store %arg14[%c0_241, %c0_242, %c320], %239 {strides = array<i32>} : memref<2x2x512xf32, #tpu.memory_space<vmem>>, vector<2x2x32xf32>,
    %241 = vector.extract_strided_slice %234 {offsets = [1, 0, 32], sizes = [2, 2, 32], strides = [1, 1, 1]} : vector<3x2x64xf32> to vector<2x2x32xf32>
    %c0_243 = arith.constant 0 : index
    %c0_244 = arith.constant 0 : index
    %c352 = arith.constant 352 : index
    %242 = vector.load %arg14[%c0_243, %c0_244, %c352] : memref<2x2x512xf32, #tpu.memory_space<vmem>>, vector<2x2x32xf32>
    tpu.vector_store %arg14[%c0_243, %c0_244, %c352], %241 {strides = array<i32>} : memref<2x2x512xf32, #tpu.memory_space<vmem>>, vector<2x2x32xf32>,
    %c0_245 = arith.constant 0 : index
    %c3_246 = arith.constant 3 : index
    %c0_247 = arith.constant 0 : index
    %243 = tpu.strided_load %arg13[%c0_245, %c3_246, %c0_247] {strides = array<i32: 1, 2, 1>} : memref<3x6x64xf32, #tpu.memory_space<vmem>>, vector<3x2x64xf32>
    %244 = vector.extract_strided_slice %243 {offsets = [0, 0, 0], sizes = [2, 2, 32], strides = [1, 1, 1]} : vector<3x2x64xf32> to vector<2x2x32xf32>
    %c0_248 = arith.constant 0 : index
    %c0_249 = arith.constant 0 : index
    %c384 = arith.constant 384 : index
    %245 = vector.load %arg14[%c0_248, %c0_249, %c384] : memref<2x2x512xf32, #tpu.memory_space<vmem>>, vector<2x2x32xf32>
    tpu.vector_store %arg14[%c0_248, %c0_249, %c384], %244 {strides = array<i32>} : memref<2x2x512xf32, #tpu.memory_space<vmem>>, vector<2x2x32xf32>,
    %246 = vector.extract_strided_slice %243 {offsets = [0, 0, 32], sizes = [2, 2, 32], strides = [1, 1, 1]} : vector<3x2x64xf32> to vector<2x2x32xf32>
    %c0_250 = arith.constant 0 : index
    %c0_251 = arith.constant 0 : index
    %c416 = arith.constant 416 : index
    %247 = vector.load %arg14[%c0_250, %c0_251, %c416] : memref<2x2x512xf32, #tpu.memory_space<vmem>>, vector<2x2x32xf32>
    tpu.vector_store %arg14[%c0_250, %c0_251, %c416], %246 {strides = array<i32>} : memref<2x2x512xf32, #tpu.memory_space<vmem>>, vector<2x2x32xf32>,
    %248 = vector.extract_strided_slice %243 {offsets = [1, 0, 0], sizes = [2, 2, 32], strides = [1, 1, 1]} : vector<3x2x64xf32> to vector<2x2x32xf32>
    %c0_252 = arith.constant 0 : index
    %c0_253 = arith.constant 0 : index
    %c448 = arith.constant 448 : index
    %249 = vector.load %arg14[%c0_252, %c0_253, %c448] : memref<2x2x512xf32, #tpu.memory_space<vmem>>, vector<2x2x32xf32>
    tpu.vector_store %arg14[%c0_252, %c0_253, %c448], %248 {strides = array<i32>} : memref<2x2x512xf32, #tpu.memory_space<vmem>>, vector<2x2x32xf32>,
    %250 = vector.extract_strided_slice %243 {offsets = [1, 0, 32], sizes = [2, 2, 32], strides = [1, 1, 1]} : vector<3x2x64xf32> to vector<2x2x32xf32>
    %c0_254 = arith.constant 0 : index
    %c0_255 = arith.constant 0 : index
    %c480 = arith.constant 480 : index
    %251 = vector.load %arg14[%c0_254, %c0_255, %c480] : memref<2x2x512xf32, #tpu.memory_space<vmem>>, vector<2x2x32xf32>
    tpu.vector_store %arg14[%c0_254, %c0_255, %c480], %250 {strides = array<i32>} : memref<2x2x512xf32, #tpu.memory_space<vmem>>, vector<2x2x32xf32>,
    %c0_256 = arith.constant 0 : index
    %c0_257 = arith.constant 0 : index
    %c0_258 = arith.constant 0 : index
    %252 = vector.load %arg14[%c0_256, %c0_257, %c0_258] : memref<2x2x512xf32, #tpu.memory_space<vmem>>, vector<2x2x512xf32>
    %253 = vector.shape_cast %252 : vector<2x2x512xf32> to vector<4x512xf32>
    %c0_259 = arith.constant 0 : index
    %c0_260 = arith.constant 0 : index
    %254 = vector.load %arg6[%c0_259, %c0_260] : memref<512x1xf32, #tpu.memory_space<vmem>>, vector<512x1xf32>
    %cst_261 = arith.constant dense<0.000000e+00> : vector<4x1xf32>
    %255 = tpu.matmul %253, %254, %cst_261 {dimension_numbers = #tpu.dot_dimension_numbers<[1], [0], [0], [1], [0, 0, 1, 1], [], []>} : vector<4x512xf32>, vector<512x1xf32>, vector<4x1xf32> -> vector<4x1xf32>
    %c0_262 = arith.constant 0 : index
    %c0_263 = arith.constant 0 : index
    %256 = vector.load %arg7[%c0_262, %c0_263] : memref<1x1xf32, #tpu.memory_space<vmem>>, vector<1x1xf32>
    %257 = vector.broadcast %256 : vector<1x1xf32> to vector<4x1xf32>
    %258 = arith.addf %255, %257 : vector<4x1xf32>
    %c0_264 = arith.constant 0 : index
    %c0_265 = arith.constant 0 : index
    %c0_266 = arith.constant 0 : index
    %259 = vector.load %arg8[%c0_264, %c0_265, %c0_266] : memref<1x4x1xf32, #tpu.memory_space<vmem>>, vector<1x4x1xf32>
    %260 = vector.shape_cast %259 : vector<1x4x1xf32> to vector<4x1xf32>
    %261 = vector.shape_cast %258 : vector<4x1xf32> to vector<1x4x1xf32>
    tpu.vector_store %arg8[%c0_264, %c0_265, %c0_266], %261 {strides = array<i32>} : memref<1x4x1xf32, #tpu.memory_space<vmem>>, vector<1x4x1xf32>,
    return
  }
  func.func @transform_0(%arg0: i32) -> (i32, i32, i32) {
    %c0_i32 = arith.constant 0 : i32
    %c0_i32_0 = arith.constant 0 : i32
    %c0_i32_1 = arith.constant 0 : i32
    return %arg0, %c0_i32, %c0_i32_0 : i32, i32, i32
  }
  func.func @transform_1(%arg0: i32) -> (i32, i32) {
    %c0_i32 = arith.constant 0 : i32
    %c0_i32_0 = arith.constant 0 : i32
    %c0_i32_1 = arith.constant 0 : i32
    return %c0_i32, %c0_i32_0 : i32, i32
  }
  func.func @transform_2(%arg0: i32) -> (i32, i32) {
    %c0_i32 = arith.constant 0 : i32
    %c0_i32_0 = arith.constant 0 : i32
    %c0_i32_1 = arith.constant 0 : i32
    return %c0_i32, %c0_i32_0 : i32, i32
  }
  func.func @transform_3(%arg0: i32) -> (i32, i32) {
    %c0_i32 = arith.constant 0 : i32
    %c0_i32_0 = arith.constant 0 : i32
    %c0_i32_1 = arith.constant 0 : i32
    return %c0_i32, %c0_i32_0 : i32, i32
  }
  func.func @transform_4(%arg0: i32) -> (i32, i32) {
    %c0_i32 = arith.constant 0 : i32
    %c0_i32_0 = arith.constant 0 : i32
    %c0_i32_1 = arith.constant 0 : i32
    return %c0_i32, %c0_i32_0 : i32, i32
  }
  func.func @transform_5(%arg0: i32) -> (i32, i32) {
    %c0_i32 = arith.constant 0 : i32
    %c0_i32_0 = arith.constant 0 : i32
    %c0_i32_1 = arith.constant 0 : i32
    return %c0_i32, %c0_i32_0 : i32, i32
  }
  func.func @transform_6(%arg0: i32) -> (i32, i32) {
    %c0_i32 = arith.constant 0 : i32
    %c0_i32_0 = arith.constant 0 : i32
    %c0_i32_1 = arith.constant 0 : i32
    return %c0_i32, %c0_i32_0 : i32, i32
  }
  func.func @transform_7(%arg0: i32) -> (i32, i32, i32) {
    %c0_i32 = arith.constant 0 : i32
    %c0_i32_0 = arith.constant 0 : i32
    %c0_i32_1 = arith.constant 0 : i32
    return %arg0, %c0_i32, %c0_i32_0 : i32, i32, i32
  }
}

</mosaic_0001>

<llo_original>
// kernel: forward.1
$region0: #{forward.1}
  #allocation0 [shape = 'u32[]', space=smem, size = 0x4, offset = 0x4, fixed_abs, tag = 'smem constant byte address 0x4 - core index']
  #allocation1 [shape = 'u32[144,128]{1,0:T(1,128)}', space=vmem, size = 0x12000, scoped, tag = 'internal scratch']
  #allocation2 [shape = 'f32[9,18,8]{2,1,0:T(8,128)}', space=vmem, size = 0x1b000, scoped, tag = 'scratch operand']
  #allocation3 [shape = 'f32[8,8,64]{2,1,0:T(8,128)}', space=vmem, size = 0x8000, scoped, tag = 'scratch operand']
  #allocation4 [shape = 'f32[5,10,32]{2,1,0:T(8,128)}', space=vmem, size = 0xa000, scoped, tag = 'scratch operand']
  #allocation5 [shape = 'f32[4,4,256]{2,1,0:T(4,128)}', space=vmem, size = 0x4000, scoped, tag = 'scratch operand']
  #allocation6 [shape = 'f32[3,6,64]{2,1,0:T(8,128)}', space=vmem, size = 0x3000, scoped, tag = 'scratch operand']
  #allocation7 [shape = 'f32[2,2,512]{2,1,0:T(2,128)}', space=vmem, size = 0x2000, scoped, tag = 'scratch operand']
  #allocation8 [shape = 'f32[1,1]{1,0:T(1,128)S(1)}', space=vmem, size = 0x200, scoped, tag = 'scoped memory for forward.1']
  %s0 = inlined_call_operand.vmem [shape: f32[2,256,4], index: 0, kind: input, shape index: {}]
  %s1 = inlined_call_operand.vmem [shape: f32[64,16], index: 1, kind: input, shape index: {}]
  %s2 = inlined_call_operand.vmem [shape: f32[1,16], index: 2, kind: input, shape index: {}]
  %s3 = inlined_call_operand.vmem [shape: f32[256,32], index: 3, kind: input, shape index: {}]
  %s4 = inlined_call_operand.vmem [shape: f32[1,32], index: 4, kind: input, shape index: {}]
  %s5 = inlined_call_operand.vmem [shape: f32[512,1], index: 5, kind: input, shape index: {}]
  %s6 = inlined_call_operand.<no memory space> [shape: f32[1,1], index: 6, kind: input, shape index: {}]
  %s7 = inlined_call_operand.vmem [shape: f32[2,4,1], index: 7, kind: output, shape index: {}]
  %s8 = sld [smem:[#allocation0]]
  $region61: #{forward.1} parent=0
    _
  %s10 = ssub.s32 1, %s8
  %s11 = scalar_select 0, %s10, %s8
  %v12 = vstv %s6
  %13 = vst [vmem:[#allocation8] sm:$0x1] %v12
  loop: start=0, step=1, limit=4
  $region2: #{forward.1} parent=0 // loop_pre_header
    _
  $region3: #{forward.1} parent=0 // loop_header
    %s15 = sphi 0, %s19
    %p16 = scmp.ge.s32.totalorder %s15, 4
    %s25 = sphi 0, %s27
    %s28 = sphi 0, %s25
    %s29 = sphi 0, %s28
    %s45 = sphi 0, %s29
    %s49 = sphi 0, %s49
    %s51 = sphi 0, %s49
    %s52 = sphi 0, %s51
    %s66 = sphi 0, %s52
    %s70 = sphi 0, %s70
    %s72 = sphi 0, %s70
    %s73 = sphi 0, %s72
    %s87 = sphi 0, %s73
    %s91 = sphi 0, %s91
    %s93 = sphi 0, %s91
    %s94 = sphi 0, %s93
    %s108 = sphi 0, %s94
    %s112 = sphi 0, %s112
    %s114 = sphi 0, %s112
    %s115 = sphi 0, %s114
    %s129 = sphi 0, %s115
    %s133 = sphi 0, %s133
    %s135 = sphi 0, %s133
    %s136 = sphi 0, %s135
    %s150 = sphi 0, %s136
    %s154 = sphi 0, %s154
    %s156 = sphi 0, %s154
    %s157 = sphi 0, %s156
    %s171 = sphi 0, %s157
    %s177 = sphi 0, %s179
    %s180 = sphi 0, %s177
    %s181 = sphi 0, %s180
    %s197 = sphi 0, %s181
  $region4: #{forward.1} parent=0 // loop_header_branch
    %18 = sbr.rel (%p16) target = $region8
  $region5: #{forward.1} parent=0 // loop_body
    %s20 = ssub.s32 %s15, 1
    %s21 = ssub.s32 %s15, 2
    %s22 = sadd.s32 %s15, 1
    %s23 = ssub.s32 %s15, %s22
    %p24 = scmp.eq.s32.totalorder %s23, 0
    %s26 = sadd.s32 %s25, 1
    %s27 = scalar_select %p24, %s25, %s26
    %p30 = pneg %p24
    %p31 = scmp.eq.s32.totalorder %s15, 1
    %p32 = por %p30, %p31
    %p33 = scmp.ne.s32.totalorder %s25, %s28
    %p34 = scmp.eq.s32.totalorder %s15, 0
    %p35 = por %p33, %p34
    %p36 = scmp.ne.s32.totalorder %s25, %s28
    %p37 = scmp.eq.s32.totalorder %s20, 1
    %p38 = por %p36, %p37
    %p39 = scmp.ne.s32.totalorder %s28, %s29
    %p40 = scmp.eq.s32.totalorder %s20, 0
    %p41 = por %p39, %p40
    %p42 = scmp.ne.s32.totalorder %s28, %s29
    %p43 = scmp.eq.s32.totalorder %s21, 1
    %p44 = por %p42, %p43
    %p46 = scmp.ne.s32.totalorder %s29, %s45
    %p47 = scmp.eq.s32.totalorder %s21, 0
    %p48 = por %p46, %p47
    %s50 = sadd.s32 %s49, 1
    %p53 = scmp.eq.s32.totalorder %s15, 1
    %p54 = scmp.ne.s32.totalorder %s49, %s51
    %p55 = scmp.eq.s32.totalorder %s15, 0
    %p56 = por %p54, %p55
    %p57 = scmp.ne.s32.totalorder %s49, %s51
    %p58 = scmp.eq.s32.totalorder %s20, 1
    %p59 = por %p57, %p58
    %p60 = scmp.ne.s32.totalorder %s51, %s52
    %p61 = scmp.eq.s32.totalorder %s20, 0
    %p62 = por %p60, %p61
    %p63 = scmp.ne.s32.totalorder %s51, %s52
    %p64 = scmp.eq.s32.totalorder %s21, 1
    %p65 = por %p63, %p64
    %p67 = scmp.ne.s32.totalorder %s52, %s66
    %p68 = scmp.eq.s32.totalorder %s21, 0
    %p69 = por %p67, %p68
    %s71 = sadd.s32 %s70, 1
    %p74 = scmp.eq.s32.totalorder %s15, 1
    %p75 = scmp.ne.s32.totalorder %s70, %s72
    %p76 = scmp.eq.s32.totalorder %s15, 0
    %p77 = por %p75, %p76
    %p78 = scmp.ne.s32.totalorder %s70, %s72
    %p79 = scmp.eq.s32.totalorder %s20, 1
    %p80 = por %p78, %p79
    %p81 = scmp.ne.s32.totalorder %s72, %s73
    %p82 = scmp.eq.s32.totalorder %s20, 0
    %p83 = por %p81, %p82
    %p84 = scmp.ne.s32.totalorder %s72, %s73
    %p85 = scmp.eq.s32.totalorder %s21, 1
    %p86 = por %p84, %p85
    %p88 = scmp.ne.s32.totalorder %s73, %s87
    %p89 = scmp.eq.s32.totalorder %s21, 0
    %p90 = por %p88, %p89
    %s92 = sadd.s32 %s91, 1
    %p95 = scmp.eq.s32.totalorder %s15, 1
    %p96 = scmp.ne.s32.totalorder %s91, %s93
    %p97 = scmp.eq.s32.totalorder %s15, 0
    %p98 = por %p96, %p97
    %p99 = scmp.ne.s32.totalorder %s91, %s93
    %p100 = scmp.eq.s32.totalorder %s20, 1
    %p101 = por %p99, %p100
    %p102 = scmp.ne.s32.totalorder %s93, %s94
    %p103 = scmp.eq.s32.totalorder %s20, 0
    %p104 = por %p102, %p103
    %p105 = scmp.ne.s32.totalorder %s93, %s94
    %p106 = scmp.eq.s32.totalorder %s21, 1
    %p107 = por %p105, %p106
    %p109 = scmp.ne.s32.totalorder %s94, %s108
    %p110 = scmp.eq.s32.totalorder %s21, 0
    %p111 = por %p109, %p110
    %s113 = sadd.s32 %s112, 1
    %p116 = scmp.eq.s32.totalorder %s15, 1
    %p117 = scmp.ne.s32.totalorder %s112, %s114
    %p118 = scmp.eq.s32.totalorder %s15, 0
    %p119 = por %p117, %p118
    %p120 = scmp.ne.s32.totalorder %s112, %s114
    %p121 = scmp.eq.s32.totalorder %s20, 1
    %p122 = por %p120, %p121
    %p123 = scmp.ne.s32.totalorder %s114, %s115
    %p124 = scmp.eq.s32.totalorder %s20, 0
    %p125 = por %p123, %p124
    %p126 = scmp.ne.s32.totalorder %s114, %s115
    %p127 = scmp.eq.s32.totalorder %s21, 1
    %p128 = por %p126, %p127
    %p130 = scmp.ne.s32.totalorder %s115, %s129
    %p131 = scmp.eq.s32.totalorder %s21, 0
    %p132 = por %p130, %p131
    %s134 = sadd.s32 %s133, 1
    %p137 = scmp.eq.s32.totalorder %s15, 1
    %p138 = scmp.ne.s32.totalorder %s133, %s135
    %p139 = scmp.eq.s32.totalorder %s15, 0
    %p140 = por %p138, %p139
    %p141 = scmp.ne.s32.totalorder %s133, %s135
    %p142 = scmp.eq.s32.totalorder %s20, 1
    %p143 = por %p141, %p142
    %p144 = scmp.ne.s32.totalorder %s135, %s136
    %p145 = scmp.eq.s32.totalorder %s20, 0
    %p146 = por %p144, %p145
    %p147 = scmp.ne.s32.totalorder %s135, %s136
    %p148 = scmp.eq.s32.totalorder %s21, 1
    %p149 = por %p147, %p148
    %p151 = scmp.ne.s32.totalorder %s136, %s150
    %p152 = scmp.eq.s32.totalorder %s21, 0
    %p153 = por %p151, %p152
    %s155 = sadd.s32 %s154, 1
    %p158 = scmp.eq.s32.totalorder %s15, 1
    %p159 = scmp.ne.s32.totalorder %s154, %s156
    %p160 = scmp.eq.s32.totalorder %s15, 0
    %p161 = por %p159, %p160
    %p162 = scmp.ne.s32.totalorder %s154, %s156
    %p163 = scmp.eq.s32.totalorder %s20, 1
    %p164 = por %p162, %p163
    %p165 = scmp.ne.s32.totalorder %s156, %s157
    %p166 = scmp.eq.s32.totalorder %s20, 0
    %p167 = por %p165, %p166
    %p168 = scmp.ne.s32.totalorder %s156, %s157
    %p169 = scmp.eq.s32.totalorder %s21, 1
    %p170 = por %p168, %p169
    %p172 = scmp.ne.s32.totalorder %s157, %s171
    %p173 = scmp.eq.s32.totalorder %s21, 0
    %p174 = por %p172, %p173
    %s175 = ssub.s32 %s15, %s22
    %p176 = scmp.eq.s32.totalorder %s175, 0
    %s178 = sadd.s32 %s177, 1
    %s179 = scalar_select %p176, %s177, %s178
    %p182 = pneg %p176
    %p183 = scmp.eq.s32.totalorder %s15, 1
    %p184 = por %p182, %p183
    %p185 = scmp.ne.s32.totalorder %s177, %s180
    %p186 = scmp.eq.s32.totalorder %s15, 0
    %p187 = por %p185, %p186
    %p188 = scmp.ne.s32.totalorder %s177, %s180
    %p189 = scmp.eq.s32.totalorder %s20, 1
    %p190 = por %p188, %p189
    %p191 = scmp.ne.s32.totalorder %s180, %s181
    %p192 = scmp.eq.s32.totalorder %s20, 0
    %p193 = por %p191, %p192
    %p194 = scmp.ne.s32.totalorder %s180, %s181
    %p195 = scmp.eq.s32.totalorder %s21, 1
    %p196 = por %p194, %p195
    %p198 = scmp.ne.s32.totalorder %s181, %s197
    %p199 = scmp.eq.s32.totalorder %s21, 0
    %p200 = por %p198, %p199
    %p201 = scmp.le.s32.totalorder 1, %s15
    %p202 = scmp.lt.s32.totalorder %s15, 3
    %p203 = pnand %p201, %p202
    %p204 = pneg %p203
    // Predicated region
    $region9: #{forward.1} parent=5 // pred_check
      _
    $region10: #{forward.1} parent=5 // pred_check_branch
      %206 = sbr.rel (%p203) target = $region12
    $region11: #{forward.1} parent=5 // pred_region
      %s207 = ssub.s32 %s15, 1
      // Predicated region
      $region13: #{forward.1} parent=11 // pred_check
        %p208 = pneg %p62
      $region14: #{forward.1} parent=11 // pred_check_branch
        %210 = sbr.rel (%p208) target = $region16
      $region15: #{forward.1} parent=11 // pred_region
        _
      $region16: #{forward.1} parent=11 // pred_fallthru
        _
      // Predicated region
      $region17: #{forward.1} parent=11 // pred_check
        %p211 = pneg %p83
      $region18: #{forward.1} parent=11 // pred_check_branch
        %213 = sbr.rel (%p211) target = $region20
      $region19: #{forward.1} parent=11 // pred_region
        _
      $region20: #{forward.1} parent=11 // pred_fallthru
        _
      // Predicated region
      $region21: #{forward.1} parent=11 // pred_check
        %p214 = pneg %p104
      $region22: #{forward.1} parent=11 // pred_check_branch
        %216 = sbr.rel (%p214) target = $region24
      $region23: #{forward.1} parent=11 // pred_region
        _
      $region24: #{forward.1} parent=11 // pred_fallthru
        _
      // Predicated region
      $region25: #{forward.1} parent=11 // pred_check
        %p217 = pneg %p125
      $region26: #{forward.1} parent=11 // pred_check_branch
        %219 = sbr.rel (%p217) target = $region28
      $region27: #{forward.1} parent=11 // pred_region
        _
      $region28: #{forward.1} parent=11 // pred_fallthru
        _
      // Predicated region
      $region29: #{forward.1} parent=11 // pred_check
        %p220 = pneg %p146
      $region30: #{forward.1} parent=11 // pred_check_branch
        %222 = sbr.rel (%p220) target = $region32
      $region31: #{forward.1} parent=11 // pred_region
        _
      $region32: #{forward.1} parent=11 // pred_fallthru
        _
      // Predicated region
      $region33: #{forward.1} parent=11 // pred_check
        %p223 = pneg %p167
      $region34: #{forward.1} parent=11 // pred_check_branch
        %225 = sbr.rel (%p223) target = $region36
      $region35: #{forward.1} parent=11 // pred_region
        _
      $region36: #{forward.1} parent=11 // pred_fallthru
        _
    $region12: #{forward.1} parent=5 // pred_fallthru
      _
    %p226 = scmp.lt.s32.totalorder %s15, 2
    // Predicated region
    $region37: #{forward.1} parent=5 // pred_check
      %p227 = pneg %p226
    $region38: #{forward.1} parent=5 // pred_check_branch
      %229 = sbr.rel (%p227) target = $region40
    $region39: #{forward.1} parent=5 // pred_region
      // Predicated region
      $region41: #{forward.1} parent=39 // pred_check
        %p230 = pneg %p35
      $region42: #{forward.1} parent=39 // pred_check_branch
        %232 = sbr.rel (%p230) target = $region44
      $region43: #{forward.1} parent=39 // pred_region
        %p233 = scmp.lt.s32.totalorder %s15, 1
        %s234 = scalar_select %p233, %s15, 1
        %s235 = smul.addr %s234, 32
        %s236 = smul.addr %s235, 8
        %s237 = scalar_lea.vmem %s0, %s236
      $region44: #{forward.1} parent=39 // pred_fallthru
        _
    $region40: #{forward.1} parent=5 // pred_fallthru
      _
    %p238 = scmp.le.s32.totalorder 1, %s15
    %p239 = scmp.lt.s32.totalorder %s15, 3
    %p240 = pnand %p238, %p239
    %p241 = pneg %p240
    // Predicated region
    $region45: #{forward.1} parent=5 // pred_check
      _
    $region46: #{forward.1} parent=5 // pred_check_branch
      %243 = sbr.rel (%p240) target = $region48
    $region47: #{forward.1} parent=5 // pred_region
      %s244 = ssub.s32 %s15, 1
      %p245 = scmp.lt.s32.totalorder %s20, 1
      %s246 = scalar_select %p245, %s20, 1
      %s247 = smul.addr %s246, 32
      %s248 = smul.addr %s247, 8
      %s249 = scalar_lea.vmem %s0, %s248
      %p250 = pneg %p41
      %p251 = pneg %p38
      %p252 = pneg %p62
      %p253 = pneg %p59
      %p254 = pneg %p83
      %p255 = pneg %p80
      %p256 = pneg %p104
      %p257 = pneg %p101
      %p258 = pneg %p125
      %p259 = pneg %p122
      %p260 = pneg %p146
      %p261 = pneg %p143
      %p262 = pneg %p167
      %p263 = pneg %p164
      %p264 = pneg %p193
      %p265 = pneg %p190
      %p266 = scmp.lt.s32.totalorder %s20, 1
      %s267 = scalar_select %p266, %s20, 1
      %s268 = smul.addr %s267, 4
      %s269 = scalar_lea.vmem %s7, %s268
      %p270 = scmp.lt.s32.totalorder %s20, 1
      %s271 = scalar_select %p270, %s20, 1
      %s272 = smul.addr %s271, 32
      %s273 = smul.addr %s272, 8
      %s274 = scalar_lea.vmem %s0, %s273
      %p275 = scmp.lt.s32.totalorder %s20, 1
      %s276 = scalar_select %p275, %s20, 1
      %s277 = smul.addr %s276, 4
      %s278 = scalar_lea.vmem %s7, %s277
      %v279 = vld [vmem:[%s274] sm:$0xff]
      %v280 = vld [vmem:[%s274 + $0x8] sm:$0xff]
      %v281 = vld [vmem:[%s274 + $0x10] sm:$0xff]
      %v282 = vld [vmem:[%s274 + $0x18] sm:$0xff]
      %v283 = vld [vmem:[%s274 + $0x20] sm:$0xff]
      %v284 = vld [vmem:[%s274 + $0x28] sm:$0xff]
      %v285 = vld [vmem:[%s274 + $0x30] sm:$0xff]
      %v286 = vld [vmem:[%s274 + $0x38] sm:$0xff]
      %v287 = vld [vmem:[%s274 + $0x40] sm:$0xff]
      %v288 = vld [vmem:[%s274 + $0x48] sm:$0xff]
      %v289 = vld [vmem:[%s274 + $0x50] sm:$0xff]
      %v290 = vld [vmem:[%s274 + $0x58] sm:$0xff]
      %v291 = vld [vmem:[%s274 + $0x60] sm:$0xff]
      %v292 = vld [vmem:[%s274 + $0x68] sm:$0xff]
      %v293 = vld [vmem:[%s274 + $0x70] sm:$0xff]
      %v294 = vld [vmem:[%s274 + $0x78] sm:$0xff]
      %v295 = vld [vmem:[%s274 + $0x80] sm:$0xff]
      %v296 = vld [vmem:[%s274 + $0x88] sm:$0xff]
      %v297 = vld [vmem:[%s274 + $0x90] sm:$0xff]
      %v298 = vld [vmem:[%s274 + $0x98] sm:$0xff]
      %v299 = vld [vmem:[%s274 + $0xa0] sm:$0xff]
      %v300 = vld [vmem:[%s274 + $0xa8] sm:$0xff]
      %v301 = vld [vmem:[%s274 + $0xb0] sm:$0xff]
      %v302 = vld [vmem:[%s274 + $0xb8] sm:$0xff]
      %v303 = vld [vmem:[%s274 + $0xc0] sm:$0xff]
      %v304 = vld [vmem:[%s274 + $0xc8] sm:$0xff]
      %v305 = vld [vmem:[%s274 + $0xd0] sm:$0xff]
      %v306 = vld [vmem:[%s274 + $0xd8] sm:$0xff]
      %v307 = vld [vmem:[%s274 + $0xe0] sm:$0xff]
      %v308 = vld [vmem:[%s274 + $0xe8] sm:$0xff]
      %v309 = vld [vmem:[%s274 + $0xf0] sm:$0xff]
      %v310 = vld [vmem:[%s274 + $0xf8] sm:$0xff]
      %vm311 = vcmask 64512
      %312 = vst.msk [vmem:[#allocation2] sm:$0xff] %vm311, 0.0
      %313 = vst.msk [vmem:[#allocation2 + $0x8] sm:$0xff] %vm311, 0.0
      %vm314 = vcmask 58368
      %315 = vst.msk [vmem:[#allocation2 + $0x10] sm:$0x3] %vm314, 0.0
      %316 = vst.msk [vmem:[#allocation2 + $0x18] sm:$0xff] %vm311, 0.0
      %317 = vst.msk [vmem:[#allocation2 + $0x20] sm:$0xff] %vm311, 0.0
      %318 = vst.msk [vmem:[#allocation2 + $0x28] sm:$0x3] %vm314, 0.0
      %319 = vst.msk [vmem:[#allocation2 + $0x30] sm:$0xff] %vm311, 0.0
      %320 = vst.msk [vmem:[#allocation2 + $0x38] sm:$0xff] %vm311, 0.0
      %321 = vst.msk [vmem:[#allocation2 + $0x40] sm:$0x3] %vm314, 0.0
      %322 = vst.msk [vmem:[#allocation2 + $0x48] sm:$0xff] %vm311, 0.0
      %323 = vst.msk [vmem:[#allocation2 + $0x50] sm:$0xff] %vm311, 0.0
      %324 = vst.msk [vmem:[#allocation2 + $0x58] sm:$0x3] %vm314, 0.0
      %325 = vst.msk [vmem:[#allocation2 + $0x60] sm:$0xff] %vm311, 0.0
      %326 = vst.msk [vmem:[#allocation2 + $0x68] sm:$0xff] %vm311, 0.0
      %327 = vst.msk [vmem:[#allocation2 + $0x70] sm:$0x3] %vm314, 0.0
      %328 = vst.msk [vmem:[#allocation2 + $0x78] sm:$0xff] %vm311, 0.0
      %329 = vst.msk [vmem:[#allocation2 + $0x80] sm:$0xff] %vm311, 0.0
      %330 = vst.msk [vmem:[#allocation2 + $0x88] sm:$0x3] %vm314, 0.0
      %331 = vst.msk [vmem:[#allocation2 + $0x90] sm:$0xff] %vm311, 0.0
      %332 = vst.msk [vmem:[#allocation2 + $0x98] sm:$0xff] %vm311, 0.0
      %333 = vst.msk [vmem:[#allocation2 + $0xa0] sm:$0x3] %vm314, 0.0
      %334 = vst.msk [vmem:[#allocation2 + $0xa8] sm:$0xff] %vm311, 0.0
      %335 = vst.msk [vmem:[#allocation2 + $0xb0] sm:$0xff] %vm311, 0.0
      %336 = vst.msk [vmem:[#allocation2 + $0xb8] sm:$0x3] %vm314, 0.0
      %337 = vst.msk [vmem:[#allocation2 + $0xc0] sm:$0xff] %vm311, 0.0
      %338 = vst.msk [vmem:[#allocation2 + $0xc8] sm:$0xff] %vm311, 0.0
      %339 = vst.msk [vmem:[#allocation2 + $0xd0] sm:$0x3] %vm314, 0.0
      %342 = vrot.lane.b32.xlu0 %v279, 4
      %v343 = vpop.permute.xlu0 %342
      %344 = vrot.lane.b32.xlu0 %v280, 4
      %v345 = vpop.permute.xlu0 %344
      %vm348 = vcmask 64544
      %349 = vst.msk [vmem:[#allocation2 + $0x1] sm:$0xff] %vm348, %v343
      %350 = vst.msk [vmem:[#allocation2 + $0x9] sm:$0xff] %vm348, %v345
      %s351 = scalar_lea.vmem [#allocation2], 24
      %vm352 = vcmask 31744
      %353 = vst.msk [vmem:[%s351 + $0x1] sm:$0xff] %vm352, %v281
      %354 = vst.msk [vmem:[%s351 + $0x9] sm:$0xff] %vm352, %v282
      %357 = vrot.lane.b32.xlu0 %v283, 4
      %v358 = vpop.permute.xlu0 %357
      %359 = vrot.lane.b32.xlu0 %v284, 4
      %v360 = vpop.permute.xlu0 %359
      %363 = vst.msk [vmem:[%s351 + $0x1] sm:$0xff] %vm348, %v358
      %364 = vst.msk [vmem:[%s351 + $0x9] sm:$0xff] %vm348, %v360
      %s365 = scalar_lea.vmem [#allocation2], 48
      %366 = vst.msk [vmem:[%s365 + $0x1] sm:$0xff] %vm352, %v285
      %367 = vst.msk [vmem:[%s365 + $0x9] sm:$0xff] %vm352, %v286
      %370 = vrot.lane.b32.xlu0 %v287, 4
      %v371 = vpop.permute.xlu0 %370
      %372 = vrot.lane.b32.xlu0 %v288, 4
      %v373 = vpop.permute.xlu0 %372
      %376 = vst.msk [vmem:[%s365 + $0x1] sm:$0xff] %vm348, %v371
      %377 = vst.msk [vmem:[%s365 + $0x9] sm:$0xff] %vm348, %v373
      %s378 = scalar_lea.vmem [#allocation2], 72
      %379 = vst.msk [vmem:[%s378 + $0x1] sm:$0xff] %vm352, %v289
      %380 = vst.msk [vmem:[%s378 + $0x9] sm:$0xff] %vm352, %v290
      %383 = vrot.lane.b32.xlu0 %v291, 4
      %v384 = vpop.permute.xlu0 %383
      %385 = vrot.lane.b32.xlu0 %v292, 4
      %v386 = vpop.permute.xlu0 %385
      %389 = vst.msk [vmem:[%s378 + $0x1] sm:$0xff] %vm348, %v384
      %390 = vst.msk [vmem:[%s378 + $0x9] sm:$0xff] %vm348, %v386
      %s391 = scalar_lea.vmem [#allocation2], 96
      %392 = vst.msk [vmem:[%s391 + $0x1] sm:$0xff] %vm352, %v293
      %393 = vst.msk [vmem:[%s391 + $0x9] sm:$0xff] %vm352, %v294
      %396 = vrot.lane.b32.xlu0 %v295, 4
      %v397 = vpop.permute.xlu0 %396
      %398 = vrot.lane.b32.xlu0 %v296, 4
      %v399 = vpop.permute.xlu0 %398
      %402 = vst.msk [vmem:[%s391 + $0x1] sm:$0xff] %vm348, %v397
      %403 = vst.msk [vmem:[%s391 + $0x9] sm:$0xff] %vm348, %v399
      %s404 = scalar_lea.vmem [#allocation2], 120
      %405 = vst.msk [vmem:[%s404 + $0x1] sm:$0xff] %vm352, %v297
      %406 = vst.msk [vmem:[%s404 + $0x9] sm:$0xff] %vm352, %v298
      %409 = vrot.lane.b32.xlu0 %v299, 4
      %v410 = vpop.permute.xlu0 %409
      %411 = vrot.lane.b32.xlu0 %v300, 4
      %v412 = vpop.permute.xlu0 %411
      %415 = vst.msk [vmem:[%s404 + $0x1] sm:$0xff] %vm348, %v410
      %416 = vst.msk [vmem:[%s404 + $0x9] sm:$0xff] %vm348, %v412
      %s417 = scalar_lea.vmem [#allocation2], 144
      %418 = vst.msk [vmem:[%s417 + $0x1] sm:$0xff] %vm352, %v301
      %419 = vst.msk [vmem:[%s417 + $0x9] sm:$0xff] %vm352, %v302
      %422 = vrot.lane.b32.xlu0 %v303, 4
      %v423 = vpop.permute.xlu0 %422
      %424 = vrot.lane.b32.xlu0 %v304, 4
      %v425 = vpop.permute.xlu0 %424
      %428 = vst.msk [vmem:[%s417 + $0x1] sm:$0xff] %vm348, %v423
      %429 = vst.msk [vmem:[%s417 + $0x9] sm:$0xff] %vm348, %v425
      %s430 = scalar_lea.vmem [#allocation2], 168
      %431 = vst.msk [vmem:[%s430 + $0x1] sm:$0xff] %vm352, %v305
      %432 = vst.msk [vmem:[%s430 + $0x9] sm:$0xff] %vm352, %v306
      %435 = vrot.lane.b32.xlu0 %v307, 4
      %v436 = vpop.permute.xlu0 %435
      %437 = vrot.lane.b32.xlu0 %v308, 4
      %v438 = vpop.permute.xlu0 %437
      %441 = vst.msk [vmem:[%s430 + $0x1] sm:$0xff] %vm348, %v436
      %442 = vst.msk [vmem:[%s430 + $0x9] sm:$0xff] %vm348, %v438
      %s443 = scalar_lea.vmem [#allocation2], 192
      %444 = vst.msk [vmem:[%s443 + $0x1] sm:$0xff] %vm352, %v309
      %445 = vst.msk [vmem:[%s443 + $0x9] sm:$0xff] %vm352, %v310
      %v446 = vld [vmem:[#allocation2] ss:$2 sm:$0xff]
      %s447 = scalar_lea.vmem [#allocation2], 24
      %v448 = vld [vmem:[%s447] ss:$2 sm:$0xff]
      %s449 = scalar_lea.vmem [#allocation2], 48
      %v450 = vld [vmem:[%s449] ss:$2 sm:$0xff]
      %s451 = scalar_lea.vmem [#allocation2], 72
      %v452 = vld [vmem:[%s451] ss:$2 sm:$0xff]
      %s453 = scalar_lea.vmem [#allocation2], 96
      %v454 = vld [vmem:[%s453] ss:$2 sm:$0xff]
      %s455 = scalar_lea.vmem [#allocation2], 120
      %v456 = vld [vmem:[%s455] ss:$2 sm:$0xff]
      %s457 = scalar_lea.vmem [#allocation2], 144
      %v458 = vld [vmem:[%s457] ss:$2 sm:$0xff]
      %s459 = scalar_lea.vmem [#allocation2], 168
      %v460 = vld [vmem:[%s459] ss:$2 sm:$0xff]
      %s461 = scalar_lea.vmem [#allocation2], 192
      %v462 = vld [vmem:[%s461] ss:$2 sm:$0xff]
      %463 = vst.msk [vmem:[#allocation3] sm:$0xff] %vm352, %v446
      %464 = vst.msk [vmem:[#allocation3 + $0x8] sm:$0xff] %vm352, %v448
      %465 = vst.msk [vmem:[#allocation3 + $0x10] sm:$0xff] %vm352, %v450
      %466 = vst.msk [vmem:[#allocation3 + $0x18] sm:$0xff] %vm352, %v452
      %467 = vst.msk [vmem:[#allocation3 + $0x20] sm:$0xff] %vm352, %v454
      %468 = vst.msk [vmem:[#allocation3 + $0x28] sm:$0xff] %vm352, %v456
      %469 = vst.msk [vmem:[#allocation3 + $0x30] sm:$0xff] %vm352, %v458
      %470 = vst.msk [vmem:[#allocation3 + $0x38] sm:$0xff] %vm352, %v460
      %471 = vst.msk [vmem:[#allocation3] sm:$0xff] %vm348, %v446
      %472 = vst.msk [vmem:[#allocation3 + $0x8] sm:$0xff] %vm348, %v448
      %473 = vst.msk [vmem:[#allocation3 + $0x10] sm:$0xff] %vm348, %v450
      %474 = vst.msk [vmem:[#allocation3 + $0x18] sm:$0xff] %vm348, %v452
      %475 = vst.msk [vmem:[#allocation3 + $0x20] sm:$0xff] %vm348, %v454
      %476 = vst.msk [vmem:[#allocation3 + $0x28] sm:$0xff] %vm348, %v456
      %477 = vst.msk [vmem:[#allocation3 + $0x30] sm:$0xff] %vm348, %v458
      %478 = vst.msk [vmem:[#allocation3 + $0x38] sm:$0xff] %vm348, %v460
      %487 = vrot.lane.b32.xlu0 %v448, 8
      %v488 = vpop.permute.xlu0 %487
      %489 = vrot.lane.b32.xlu0 %v450, 8
      %v490 = vpop.permute.xlu0 %489
      %491 = vrot.lane.b32.xlu0 %v452, 8
      %v492 = vpop.permute.xlu0 %491
      %493 = vrot.lane.b32.xlu0 %v454, 8
      %v494 = vpop.permute.xlu0 %493
      %495 = vrot.lane.b32.xlu0 %v456, 8
      %v496 = vpop.permute.xlu0 %495
      %497 = vrot.lane.b32.xlu0 %v458, 8
      %v498 = vpop.permute.xlu0 %497
      %499 = vrot.lane.b32.xlu0 %v460, 8
      %v500 = vpop.permute.xlu0 %499
      %501 = vrot.lane.b32.xlu0 %v462, 8
      %v502 = vpop.permute.xlu0 %501
      %vm511 = vcmask 97344
      %512 = vst.msk [vmem:[#allocation3] sm:$0xff] %vm511, %v488
      %513 = vst.msk [vmem:[#allocation3 + $0x8] sm:$0xff] %vm511, %v490
      %514 = vst.msk [vmem:[#allocation3 + $0x10] sm:$0xff] %vm511, %v492
      %515 = vst.msk [vmem:[#allocation3 + $0x18] sm:$0xff] %vm511, %v494
      %516 = vst.msk [vmem:[#allocation3 + $0x20] sm:$0xff] %vm511, %v496
      %517 = vst.msk [vmem:[#allocation3 + $0x28] sm:$0xff] %vm511, %v498
      %518 = vst.msk [vmem:[#allocation3 + $0x30] sm:$0xff] %vm511, %v500
      %519 = vst.msk [vmem:[#allocation3 + $0x38] sm:$0xff] %vm511, %v502
      %vm520 = vcmask 130144
      %521 = vst.msk [vmem:[#allocation3] sm:$0xff] %vm520, %v488
      %522 = vst.msk [vmem:[#allocation3 + $0x8] sm:$0xff] %vm520, %v490
      %523 = vst.msk [vmem:[#allocation3 + $0x10] sm:$0xff] %vm520, %v492
      %524 = vst.msk [vmem:[#allocation3 + $0x18] sm:$0xff] %vm520, %v494
      %525 = vst.msk [vmem:[#allocation3 + $0x20] sm:$0xff] %vm520, %v496
      %526 = vst.msk [vmem:[#allocation3 + $0x28] sm:$0xff] %vm520, %v498
      %527 = vst.msk [vmem:[#allocation3 + $0x30] sm:$0xff] %vm520, %v500
      %528 = vst.msk [vmem:[#allocation3 + $0x38] sm:$0xff] %vm520, %v502
      %s529 = scalar_lea.vmem [#allocation2], 1
      %v530 = vld [vmem:[%s529] ss:$2 sm:$0xff]
      %s531 = scalar_lea.vmem [#allocation2], 25
      %v532 = vld [vmem:[%s531] ss:$2 sm:$0xff]
      %s533 = scalar_lea.vmem [#allocation2], 49
      %v534 = vld [vmem:[%s533] ss:$2 sm:$0xff]
      %s535 = scalar_lea.vmem [#allocation2], 73
      %v536 = vld [vmem:[%s535] ss:$2 sm:$0xff]
      %s537 = scalar_lea.vmem [#allocation2], 97
      %v538 = vld [vmem:[%s537] ss:$2 sm:$0xff]
      %s539 = scalar_lea.vmem [#allocation2], 121
      %v540 = vld [vmem:[%s539] ss:$2 sm:$0xff]
      %s541 = scalar_lea.vmem [#allocation2], 145
      %v542 = vld [vmem:[%s541] ss:$2 sm:$0xff]
      %s543 = scalar_lea.vmem [#allocation2], 169
      %v544 = vld [vmem:[%s543] ss:$2 sm:$0xff]
      %s545 = scalar_lea.vmem [#allocation2], 193
      %v546 = vld [vmem:[%s545] ss:$2 sm:$0xff]
      %555 = vrot.lane.b32.xlu0 %v530, 16
      %v556 = vpop.permute.xlu0 %555
      %557 = vrot.lane.b32.xlu0 %v532, 16
      %v558 = vpop.permute.xlu0 %557
      %559 = vrot.lane.b32.xlu0 %v534, 16
      %v560 = vpop.permute.xlu0 %559
      %561 = vrot.lane.b32.xlu0 %v536, 16
      %v562 = vpop.permute.xlu0 %561
      %563 = vrot.lane.b32.xlu0 %v538, 16
      %v564 = vpop.permute.xlu0 %563
      %565 = vrot.lane.b32.xlu0 %v540, 16
      %v566 = vpop.permute.xlu0 %565
      %567 = vrot.lane.b32.xlu0 %v542, 16
      %v568 = vpop.permute.xlu0 %567
      %569 = vrot.lane.b32.xlu0 %v544, 16
      %v570 = vpop.permute.xlu0 %569
      %vm579 = vcmask 162944
      %580 = vst.msk [vmem:[#allocation3] sm:$0xff] %vm579, %v556
      %581 = vst.msk [vmem:[#allocation3 + $0x8] sm:$0xff] %vm579, %v558
      %582 = vst.msk [vmem:[#allocation3 + $0x10] sm:$0xff] %vm579, %v560
      %583 = vst.msk [vmem:[#allocation3 + $0x18] sm:$0xff] %vm579, %v562
      %584 = vst.msk [vmem:[#allocation3 + $0x20] sm:$0xff] %vm579, %v564
      %585 = vst.msk [vmem:[#allocation3 + $0x28] sm:$0xff] %vm579, %v566
      %586 = vst.msk [vmem:[#allocation3 + $0x30] sm:$0xff] %vm579, %v568
      %587 = vst.msk [vmem:[#allocation3 + $0x38] sm:$0xff] %vm579, %v570
      %vm588 = vcmask 195744
      %589 = vst.msk [vmem:[#allocation3] sm:$0xff] %vm588, %v556
      %590 = vst.msk [vmem:[#allocation3 + $0x8] sm:$0xff] %vm588, %v558
      %591 = vst.msk [vmem:[#allocation3 + $0x10] sm:$0xff] %vm588, %v560
      %592 = vst.msk [vmem:[#allocation3 + $0x18] sm:$0xff] %vm588, %v562
      %593 = vst.msk [vmem:[#allocation3 + $0x20] sm:$0xff] %vm588, %v564
      %594 = vst.msk [vmem:[#allocation3 + $0x28] sm:$0xff] %vm588, %v566
      %595 = vst.msk [vmem:[#allocation3 + $0x30] sm:$0xff] %vm588, %v568
      %596 = vst.msk [vmem:[#allocation3 + $0x38] sm:$0xff] %vm588, %v570
      %598 = vrot.lane.b32.xlu0 %v532, 24
      %v599 = vpop.permute.xlu0 %598
      %600 = vrot.lane.b32.xlu0 %v534, 24
      %v601 = vpop.permute.xlu0 %600
      %602 = vrot.lane.b32.xlu0 %v536, 24
      %v603 = vpop.permute.xlu0 %602
      %604 = vrot.lane.b32.xlu0 %v538, 24
      %v605 = vpop.permute.xlu0 %604
      %606 = vrot.lane.b32.xlu0 %v540, 24
      %v607 = vpop.permute.xlu0 %606
      %608 = vrot.lane.b32.xlu0 %v542, 24
      %v609 = vpop.permute.xlu0 %608
      %610 = vrot.lane.b32.xlu0 %v544, 24
      %v611 = vpop.permute.xlu0 %610
      %612 = vrot.lane.b32.xlu0 %v546, 24
      %v613 = vpop.permute.xlu0 %612
      %vm622 = vcmask 228544
      %623 = vst.msk [vmem:[#allocation3] sm:$0xff] %vm622, %v599
      %624 = vst.msk [vmem:[#allocation3 + $0x8] sm:$0xff] %vm622, %v601
      %625 = vst.msk [vmem:[#allocation3 + $0x10] sm:$0xff] %vm622, %v603
      %626 = vst.msk [vmem:[#allocation3 + $0x18] sm:$0xff] %vm622, %v605
      %627 = vst.msk [vmem:[#allocation3 + $0x20] sm:$0xff] %vm622, %v607
      %628 = vst.msk [vmem:[#allocation3 + $0x28] sm:$0xff] %vm622, %v609
      %629 = vst.msk [vmem:[#allocation3 + $0x30] sm:$0xff] %vm622, %v611
      %630 = vst.msk [vmem:[#allocation3 + $0x38] sm:$0xff] %vm622, %v613
      %vm631 = vcmask 261344
      %632 = vst.msk [vmem:[#allocation3] sm:$0xff] %vm631, %v599
      %633 = vst.msk [vmem:[#allocation3 + $0x8] sm:$0xff] %vm631, %v601
      %634 = vst.msk [vmem:[#allocation3 + $0x10] sm:$0xff] %vm631, %v603
      %635 = vst.msk [vmem:[#allocation3 + $0x18] sm:$0xff] %vm631, %v605
      %636 = vst.msk [vmem:[#allocation3 + $0x20] sm:$0xff] %vm631, %v607
      %637 = vst.msk [vmem:[#allocation3 + $0x28] sm:$0xff] %vm631, %v609
      %638 = vst.msk [vmem:[#allocation3 + $0x30] sm:$0xff] %vm631, %v611
      %639 = vst.msk [vmem:[#allocation3 + $0x38] sm:$0xff] %vm631, %v613
      %s640 = scalar_lea.vmem [#allocation2], 2
      %v641 = vld [vmem:[%s640] ss:$2 sm:$0xff]
      %s642 = scalar_lea.vmem [#allocation2], 26
      %v643 = vld [vmem:[%s642] ss:$2 sm:$0xff]
      %s644 = scalar_lea.vmem [#allocation2], 50
      %v645 = vld [vmem:[%s644] ss:$2 sm:$0xff]
      %s646 = scalar_lea.vmem [#allocation2], 74
      %v647 = vld [vmem:[%s646] ss:$2 sm:$0xff]
      %s648 = scalar_lea.vmem [#allocation2], 98
      %v649 = vld [vmem:[%s648] ss:$2 sm:$0xff]
      %s650 = scalar_lea.vmem [#allocation2], 122
      %v651 = vld [vmem:[%s650] ss:$2 sm:$0xff]
      %s652 = scalar_lea.vmem [#allocation2], 146
      %v653 = vld [vmem:[%s652] ss:$2 sm:$0xff]
      %s654 = scalar_lea.vmem [#allocation2], 170
      %v655 = vld [vmem:[%s654] ss:$2 sm:$0xff]
      %s656 = scalar_lea.vmem [#allocation2], 194
      %v657 = vld [vmem:[%s656] ss:$2 sm:$0xff]
      %666 = vrot.lane.b32.xlu0 %v641, 32
      %v667 = vpop.permute.xlu0 %666
      %668 = vrot.lane.b32.xlu0 %v643, 32
      %v669 = vpop.permute.xlu0 %668
      %670 = vrot.lane.b32.xlu0 %v645, 32
      %v671 = vpop.permute.xlu0 %670
      %672 = vrot.lane.b32.xlu0 %v647, 32
      %v673 = vpop.permute.xlu0 %672
      %674 = vrot.lane.b32.xlu0 %v649, 32
      %v675 = vpop.permute.xlu0 %674
      %676 = vrot.lane.b32.xlu0 %v651, 32
      %v677 = vpop.permute.xlu0 %676
      %678 = vrot.lane.b32.xlu0 %v653, 32
      %v679 = vpop.permute.xlu0 %678
      %680 = vrot.lane.b32.xlu0 %v655, 32
      %v681 = vpop.permute.xlu0 %680
      %vm690 = vcmask 294144
      %691 = vst.msk [vmem:[#allocation3] sm:$0xff] %vm690, %v667
      %692 = vst.msk [vmem:[#allocation3 + $0x8] sm:$0xff] %vm690, %v669
      %693 = vst.msk [vmem:[#allocation3 + $0x10] sm:$0xff] %vm690, %v671
      %694 = vst.msk [vmem:[#allocation3 + $0x18] sm:$0xff] %vm690, %v673
      %695 = vst.msk [vmem:[#allocation3 + $0x20] sm:$0xff] %vm690, %v675
      %696 = vst.msk [vmem:[#allocation3 + $0x28] sm:$0xff] %vm690, %v677
      %697 = vst.msk [vmem:[#allocation3 + $0x30] sm:$0xff] %vm690, %v679
      %698 = vst.msk [vmem:[#allocation3 + $0x38] sm:$0xff] %vm690, %v681
      %vm699 = vcmask 326944
      %700 = vst.msk [vmem:[#allocation3] sm:$0xff] %vm699, %v667
      %701 = vst.msk [vmem:[#allocation3 + $0x8] sm:$0xff] %vm699, %v669
      %702 = vst.msk [vmem:[#allocation3 + $0x10] sm:$0xff] %vm699, %v671
      %703 = vst.msk [vmem:[#allocation3 + $0x18] sm:$0xff] %vm699, %v673
      %704 = vst.msk [vmem:[#allocation3 + $0x20] sm:$0xff] %vm699, %v675
      %705 = vst.msk [vmem:[#allocation3 + $0x28] sm:$0xff] %vm699, %v677
      %706 = vst.msk [vmem:[#allocation3 + $0x30] sm:$0xff] %vm699, %v679
      %707 = vst.msk [vmem:[#allocation3 + $0x38] sm:$0xff] %vm699, %v681
      %709 = vrot.lane.b32.xlu0 %v643, 40
      %v710 = vpop.permute.xlu0 %709
      %711 = vrot.lane.b32.xlu0 %v645, 40
      %v712 = vpop.permute.xlu0 %711
      %713 = vrot.lane.b32.xlu0 %v647, 40
      %v714 = vpop.permute.xlu0 %713
      %715 = vrot.lane.b32.xlu0 %v649, 40
      %v716 = vpop.permute.xlu0 %715
      %717 = vrot.lane.b32.xlu0 %v651, 40
      %v718 = vpop.permute.xlu0 %717
      %719 = vrot.lane.b32.xlu0 %v653, 40
      %v720 = vpop.permute.xlu0 %719
      %721 = vrot.lane.b32.xlu0 %v655, 40
      %v722 = vpop.permute.xlu0 %721
      %723 = vrot.lane.b32.xlu0 %v657, 40
      %v724 = vpop.permute.xlu0 %723
      %vm733 = vcmask 359744
      %734 = vst.msk [vmem:[#allocation3] sm:$0xff] %vm733, %v710
      %735 = vst.msk [vmem:[#allocation3 + $0x8] sm:$0xff] %vm733, %v712
      %736 = vst.msk [vmem:[#allocation3 + $0x10] sm:$0xff] %vm733, %v714
      %737 = vst.msk [vmem:[#allocation3 + $0x18] sm:$0xff] %vm733, %v716
      %738 = vst.msk [vmem:[#allocation3 + $0x20] sm:$0xff] %vm733, %v718
      %739 = vst.msk [vmem:[#allocation3 + $0x28] sm:$0xff] %vm733, %v720
      %740 = vst.msk [vmem:[#allocation3 + $0x30] sm:$0xff] %vm733, %v722
      %741 = vst.msk [vmem:[#allocation3 + $0x38] sm:$0xff] %vm733, %v724
      %vm742 = vcmask 392544
      %743 = vst.msk [vmem:[#allocation3] sm:$0xff] %vm742, %v710
      %744 = vst.msk [vmem:[#allocation3 + $0x8] sm:$0xff] %vm742, %v712
      %745 = vst.msk [vmem:[#allocation3 + $0x10] sm:$0xff] %vm742, %v714
      %746 = vst.msk [vmem:[#allocation3 + $0x18] sm:$0xff] %vm742, %v716
      %747 = vst.msk [vmem:[#allocation3 + $0x20] sm:$0xff] %vm742, %v718
      %748 = vst.msk [vmem:[#allocation3 + $0x28] sm:$0xff] %vm742, %v720
      %749 = vst.msk [vmem:[#allocation3 + $0x30] sm:$0xff] %vm742, %v722
      %750 = vst.msk [vmem:[#allocation3 + $0x38] sm:$0xff] %vm742, %v724
      %s751 = scalar_lea.vmem [#allocation2], 3
      %v752 = vld [vmem:[%s751] ss:$2 sm:$0xff]
      %s753 = scalar_lea.vmem [#allocation2], 27
      %v754 = vld [vmem:[%s753] ss:$2 sm:$0xff]
      %s755 = scalar_lea.vmem [#allocation2], 51
      %v756 = vld [vmem:[%s755] ss:$2 sm:$0xff]
      %s757 = scalar_lea.vmem [#allocation2], 75
      %v758 = vld [vmem:[%s757] ss:$2 sm:$0xff]
      %s759 = scalar_lea.vmem [#allocation2], 99
      %v760 = vld [vmem:[%s759] ss:$2 sm:$0xff]
      %s761 = scalar_lea.vmem [#allocation2], 123
      %v762 = vld [vmem:[%s761] ss:$2 sm:$0xff]
      %s763 = scalar_lea.vmem [#allocation2], 147
      %v764 = vld [vmem:[%s763] ss:$2 sm:$0xff]
      %s765 = scalar_lea.vmem [#allocation2], 171
      %v766 = vld [vmem:[%s765] ss:$2 sm:$0xff]
      %s767 = scalar_lea.vmem [#allocation2], 195
      %v768 = vld [vmem:[%s767] ss:$2 sm:$0xff]
      %777 = vrot.lane.b32.xlu0 %v752, 48
      %v778 = vpop.permute.xlu0 %777
      %779 = vrot.lane.b32.xlu0 %v754, 48
      %v780 = vpop.permute.xlu0 %779
      %781 = vrot.lane.b32.xlu0 %v756, 48
      %v782 = vpop.permute.xlu0 %781
      %783 = vrot.lane.b32.xlu0 %v758, 48
      %v784 = vpop.permute.xlu0 %783
      %785 = vrot.lane.b32.xlu0 %v760, 48
      %v786 = vpop.permute.xlu0 %785
      %787 = vrot.lane.b32.xlu0 %v762, 48
      %v788 = vpop.permute.xlu0 %787
      %789 = vrot.lane.b32.xlu0 %v764, 48
      %v790 = vpop.permute.xlu0 %789
      %791 = vrot.lane.b32.xlu0 %v766, 48
      %v792 = vpop.permute.xlu0 %791
      %vm801 = vcmask 425344
      %802 = vst.msk [vmem:[#allocation3] sm:$0xff] %vm801, %v778
      %803 = vst.msk [vmem:[#allocation3 + $0x8] sm:$0xff] %vm801, %v780
      %804 = vst.msk [vmem:[#allocation3 + $0x10] sm:$0xff] %vm801, %v782
      %805 = vst.msk [vmem:[#allocation3 + $0x18] sm:$0xff] %vm801, %v784
      %806 = vst.msk [vmem:[#allocation3 + $0x20] sm:$0xff] %vm801, %v786
      %807 = vst.msk [vmem:[#allocation3 + $0x28] sm:$0xff] %vm801, %v788
      %808 = vst.msk [vmem:[#allocation3 + $0x30] sm:$0xff] %vm801, %v790
      %809 = vst.msk [vmem:[#allocation3 + $0x38] sm:$0xff] %vm801, %v792
      %vm810 = vcmask 458144
      %811 = vst.msk [vmem:[#allocation3] sm:$0xff] %vm810, %v778
      %812 = vst.msk [vmem:[#allocation3 + $0x8] sm:$0xff] %vm810, %v780
      %813 = vst.msk [vmem:[#allocation3 + $0x10] sm:$0xff] %vm810, %v782
      %814 = vst.msk [vmem:[#allocation3 + $0x18] sm:$0xff] %vm810, %v784
      %815 = vst.msk [vmem:[#allocation3 + $0x20] sm:$0xff] %vm810, %v786
      %816 = vst.msk [vmem:[#allocation3 + $0x28] sm:$0xff] %vm810, %v788
      %817 = vst.msk [vmem:[#allocation3 + $0x30] sm:$0xff] %vm810, %v790
      %818 = vst.msk [vmem:[#allocation3 + $0x38] sm:$0xff] %vm810, %v792
      %820 = vrot.lane.b32.xlu0 %v754, 56
      %v821 = vpop.permute.xlu0 %820
      %822 = vrot.lane.b32.xlu0 %v756, 56
      %v823 = vpop.permute.xlu0 %822
      %824 = vrot.lane.b32.xlu0 %v758, 56
      %v825 = vpop.permute.xlu0 %824
      %826 = vrot.lane.b32.xlu0 %v760, 56
      %v827 = vpop.permute.xlu0 %826
      %828 = vrot.lane.b32.xlu0 %v762, 56
      %v829 = vpop.permute.xlu0 %828
      %830 = vrot.lane.b32.xlu0 %v764, 56
      %v831 = vpop.permute.xlu0 %830
      %832 = vrot.lane.b32.xlu0 %v766, 56
      %v833 = vpop.permute.xlu0 %832
      %834 = vrot.lane.b32.xlu0 %v768, 56
      %v835 = vpop.permute.xlu0 %834
      %vm844 = vcmask 490944
      %845 = vst.msk [vmem:[#allocation3] sm:$0xff] %vm844, %v821
      %846 = vst.msk [vmem:[#allocation3 + $0x8] sm:$0xff] %vm844, %v823
      %847 = vst.msk [vmem:[#allocation3 + $0x10] sm:$0xff] %vm844, %v825
      %848 = vst.msk [vmem:[#allocation3 + $0x18] sm:$0xff] %vm844, %v827
      %849 = vst.msk [vmem:[#allocation3 + $0x20] sm:$0xff] %vm844, %v829
      %850 = vst.msk [vmem:[#allocation3 + $0x28] sm:$0xff] %vm844, %v831
      %851 = vst.msk [vmem:[#allocation3 + $0x30] sm:$0xff] %vm844, %v833
      %852 = vst.msk [vmem:[#allocation3 + $0x38] sm:$0xff] %vm844, %v835
      %vm853 = vcmask 523744
      %854 = vst.msk [vmem:[#allocation3] sm:$0xff] %vm853, %v821
      %855 = vst.msk [vmem:[#allocation3 + $0x8] sm:$0xff] %vm853, %v823
      %856 = vst.msk [vmem:[#allocation3 + $0x10] sm:$0xff] %vm853, %v825
      %857 = vst.msk [vmem:[#allocation3 + $0x18] sm:$0xff] %vm853, %v827
      %858 = vst.msk [vmem:[#allocation3 + $0x20] sm:$0xff] %vm853, %v829
      %859 = vst.msk [vmem:[#allocation3 + $0x28] sm:$0xff] %vm853, %v831
      %860 = vst.msk [vmem:[#allocation3 + $0x30] sm:$0xff] %vm853, %v833
      %861 = vst.msk [vmem:[#allocation3 + $0x38] sm:$0xff] %vm853, %v835
      %v862 = vld [vmem:[#allocation3] sm:$0xff]
      %v863 = vld [vmem:[#allocation3 + $0x8] sm:$0xff]
      %v864 = vld [vmem:[#allocation3 + $0x10] sm:$0xff]
      %v865 = vld [vmem:[#allocation3 + $0x18] sm:$0xff]
      %v866 = vld [vmem:[#allocation3 + $0x20] sm:$0xff]
      %v867 = vld [vmem:[#allocation3 + $0x28] sm:$0xff]
      %v868 = vld [vmem:[#allocation3 + $0x30] sm:$0xff]
      %v869 = vld [vmem:[#allocation3 + $0x38] sm:$0xff]
      %v870 = vld [vmem:[%s1] sm:$0xff]
      %v871 = vld [vmem:[%s1 + $0x8] sm:$0xff]
      %v872 = vld [vmem:[%s1 + $0x10] sm:$0xff]
      %v873 = vld [vmem:[%s1 + $0x18] sm:$0xff]
      %v874 = vld [vmem:[%s1 + $0x20] sm:$0xff]
      %v875 = vld [vmem:[%s1 + $0x28] sm:$0xff]
      %v876 = vld [vmem:[%s1 + $0x30] sm:$0xff]
      %v877 = vld [vmem:[%s1 + $0x38] sm:$0xff]
      %v878 = vld [vmem:[%s2] sm:$0x1]
      %v880 = vlaneseq
      %v881 = vshrl.u32 %v880, 7
      %v882 = vsub.s32 0, %v881
      %v883 = vrot.slane %v878, %v882
      %vm885 = vcmask 523264
      %v887 = vsel %vm885, %v862, 0
      %v890 = vsel %vm885, %v863, 0
      %v893 = vsel %vm885, %v864, 0
      %v896 = vsel %vm885, %v865, 0
      %v899 = vsel %vm885, %v866, 0
      %v902 = vsel %vm885, %v867, 0
      %v905 = vsel %vm885, %v868, 0
      %v908 = vsel %vm885, %v869, 0
      %910 = vmatprep.subr.mxu0 0.0
      %911 = vmatpush1.msra.mxu0 0.0
      %912 = vmatprep.subr.mxu0 0.0
      %913 = vmatpush1.msra.mxu0 0.0
      %914 = vmatprep.subr.mxu0 0.0
      %915 = vmatpush1.msra.mxu0 0.0
      %916 = vmatprep.subr.mxu0 0.0
      %917 = vmatpush1.msra.mxu0 0.0
      %918 = vmatprep.subr.mxu0 0.0
      %919 = vmatpush1.msra.mxu0 0.0
      %920 = vmatprep.subr.mxu0 0.0
      %921 = vmatpush1.msra.mxu0 0.0
      %922 = vmatprep.subr.mxu0 0.0
      %923 = vmatpush1.msra.mxu0 0.0
      %924 = vmatprep.subr.mxu0 0.0
      %925 = vmatpush1.msra.mxu0 0.0
      %926 = vmatprep.subr.mxu0 0.0
      %927 = vmatpush1.msra.mxu0 %v877
      %928 = vmatprep.subr.mxu0 0.0
      %929 = vmatpush1.msra.mxu0 %v876
      %930 = vmatprep.subr.mxu0 0.0
      %931 = vmatpush1.msra.mxu0 %v875
      %932 = vmatprep.subr.mxu0 0.0
      %933 = vmatpush1.msra.mxu0 %v874
      %934 = vmatprep.subr.mxu0 0.0
      %935 = vmatpush1.msra.mxu0 %v873
      %936 = vmatprep.subr.mxu0 0.0
      %937 = vmatpush1.msra.mxu0 %v872
      %938 = vmatprep.subr.mxu0 0.0
      %939 = vmatpush1.msra.mxu0 %v871
      %940 = vmatprep.subr.mxu0 0.0
      %941 = vmatpush1.msra.mxu0 %v870
      %942 = vmatprep.subr.mxu0 0.0
      %943 = vmatpush2.msra.mxu0 0.0
      %944 = vmatprep.subr.mxu0 0.0
      %945 = vmatpush2.msra.mxu0 0.0
      %946 = vmatprep.subr.mxu0 0.0
      %947 = vmatpush2.msra.mxu0 0.0
      %948 = vmatprep.subr.mxu0 0.0
      %949 = vmatpush2.msra.mxu0 0.0
      %950 = vmatprep.subr.mxu0 0.0
      %951 = vmatpush2.msra.mxu0 0.0
      %952 = vmatprep.subr.mxu0 0.0
      %953 = vmatpush2.msra.mxu0 0.0
      %954 = vmatprep.subr.mxu0 0.0
      %955 = vmatpush2.msra.mxu0 0.0
      %956 = vmatprep.subr.mxu0 0.0
      %957 = vmatpush2.msra.mxu0 0.0
      %958 = vmatprep.subr.mxu0 0.0
      %959 = vmatpush2.msra.mxu0 0.0
      %960 = vmatprep.subr.mxu0 0.0
      %961 = vmatpush2.msra.mxu0 0.0
      %962 = vmatprep.subr.mxu0 0.0
      %963 = vmatpush2.msra.mxu0 0.0
      %964 = vmatprep.subr.mxu0 0.0
      %965 = vmatpush2.msra.mxu0 0.0
      %966 = vmatprep.subr.mxu0 0.0
      %967 = vmatpush2.msra.mxu0 0.0
      %968 = vmatprep.subr.mxu0 0.0
      %969 = vmatpush2.msra.mxu0 0.0
      %970 = vmatprep.subr.mxu0 0.0
      %971 = vmatpush2.msra.mxu0 0.0
      %972 = vmatprep.subr.mxu0 0.0
      %973 = vmatpush2.msra.mxu0 0.0
      %974 = vmatprep.mubr.f32.mxu0 0.0
      %975 = vmatmul.mubr.f32.gmra.mxu0 %v887
      %v976 = vpop.f32.mrf.mxu0
      %v977 = vadd.f32 %v883, %v976
      %v978 = vpop.f32.mrf.mxu0
      %979 = vmatprep.mubr.f32.mxu0 0.0
      %980 = vmatmul.mubr.f32.gmra.mxu0 %v890
      %v981 = vpop.f32.mrf.mxu0
      %v982 = vadd.f32 %v883, %v981
      %v983 = vpop.f32.mrf.mxu0
      %984 = vmatprep.mubr.f32.mxu0 0.0
      %985 = vmatmul.mubr.f32.gmra.mxu0 %v893
      %v986 = vpop.f32.mrf.mxu0
      %v987 = vadd.f32 %v883, %v986
      %v988 = vpop.f32.mrf.mxu0
      %989 = vmatprep.mubr.f32.mxu0 0.0
      %990 = vmatmul.mubr.f32.gmra.mxu0 %v896
      %v991 = vpop.f32.mrf.mxu0
      %v992 = vadd.f32 %v883, %v991
      %v993 = vpop.f32.mrf.mxu0
      %994 = vmatprep.mubr.f32.mxu0 0.0
      %995 = vmatmul.mubr.f32.gmra.mxu0 %v899
      %v996 = vpop.f32.mrf.mxu0
      %v997 = vadd.f32 %v883, %v996
      %v998 = vpop.f32.mrf.mxu0
      %999 = vmatprep.mubr.f32.mxu0 0.0
      %1000 = vmatmul.mubr.f32.gmra.mxu0 %v902
      %v1001 = vpop.f32.mrf.mxu0
      %v1002 = vadd.f32 %v883, %v1001
      %v1003 = vpop.f32.mrf.mxu0
      %1004 = vmatprep.mubr.f32.mxu0 0.0
      %1005 = vmatmul.mubr.f32.gmra.mxu0 %v905
      %v1006 = vpop.f32.mrf.mxu0
      %v1007 = vadd.f32 %v883, %v1006
      %v1008 = vpop.f32.mrf.mxu0
      %1009 = vmatprep.mubr.f32.mxu0 0.0
      %1010 = vmatmul.mubr.f32.gmra.mxu0 %v908
      %v1011 = vpop.f32.mrf.mxu0
      %v1012 = vadd.f32 %v883, %v1011
      %v1013 = vpop.f32.mrf.mxu0
      %1014 = vdwg.mxu0
      %vm1015 = vcmp.ge.f32.partialorder %v977, 0.0
      %vm1016 = vcmp.ge.f32.partialorder %v982, 0.0
      %vm1017 = vcmp.ge.f32.partialorder %v987, 0.0
      %vm1018 = vcmp.ge.f32.partialorder %v992, 0.0
      %vm1019 = vcmp.ge.f32.partialorder %v997, 0.0
      %vm1020 = vcmp.ge.f32.partialorder %v1002, 0.0
      %vm1021 = vcmp.ge.f32.partialorder %v1007, 0.0
      %vm1022 = vcmp.ge.f32.partialorder %v1012, 0.0
      %v1023 = vmul.f32 %v977, 0.2
      %v1024 = vmul.f32 %v982, 0.2
      %v1025 = vmul.f32 %v987, 0.2
      %v1026 = vmul.f32 %v992, 0.2
      %v1027 = vmul.f32 %v997, 0.2
      %v1028 = vmul.f32 %v1002, 0.2
      %v1029 = vmul.f32 %v1007, 0.2
      %v1030 = vmul.f32 %v1012, 0.2
      %v1031 = vsel %vm1015, %v977, %v1023
      %v1032 = vsel %vm1016, %v982, %v1024
      %v1033 = vsel %vm1017, %v987, %v1025
      %v1034 = vsel %vm1018, %v992, %v1026
      %v1035 = vsel %vm1019, %v997, %v1027
      %v1036 = vsel %vm1020, %v1002, %v1028
      %v1037 = vsel %vm1021, %v1007, %v1029
      %v1038 = vsel %vm1022, %v1012, %v1030
      %vm1039 = vcmask 261120
      %1040 = vst.msk [vmem:[#allocation4] sm:$0xff] %vm1039, 0.0
      %vm1041 = vcmask 254976
      %1042 = vst.msk [vmem:[#allocation4 + $0x8] sm:$0x3] %vm1041, 0.0
      %1043 = vst.msk [vmem:[#allocation4 + $0x10] sm:$0xff] %vm1039, 0.0
      %1044 = vst.msk [vmem:[#allocation4 + $0x18] sm:$0x3] %vm1041, 0.0
      %1045 = vst.msk [vmem:[#allocation4 + $0x20] sm:$0xff] %vm1039, 0.0
      %1046 = vst.msk [vmem:[#allocation4 + $0x28] sm:$0x3] %vm1041, 0.0
      %1047 = vst.msk [vmem:[#allocation4 + $0x30] sm:$0xff] %vm1039, 0.0
      %1048 = vst.msk [vmem:[#allocation4 + $0x38] sm:$0x3] %vm1041, 0.0
      %1049 = vst.msk [vmem:[#allocation4 + $0x40] sm:$0xff] %vm1039, 0.0
      %1050 = vst.msk [vmem:[#allocation4 + $0x48] sm:$0x3] %vm1041, 0.0
      %1052 = vrot.lane.b32.xlu0 %v1031, 16
      %v1053 = vpop.permute.xlu0 %1052
      %vm1055 = vcmask 261248
      %1056 = vst.msk [vmem:[#allocation4 + $0x1] sm:$0xff] %vm1055, %v1053
      %s1057 = scalar_lea.vmem [#allocation4], 16
      %vm1058 = vcmask 130048
      %1059 = vst.msk [vmem:[%s1057 + $0x1] sm:$0xff] %vm1058, %v1032
      %1061 = vrot.lane.b32.xlu0 %v1033, 16
      %v1062 = vpop.permute.xlu0 %1061
      %1064 = vst.msk [vmem:[%s1057 + $0x1] sm:$0xff] %vm1055, %v1062
      %s1065 = scalar_lea.vmem [#allocation4], 32
      %1066 = vst.msk [vmem:[%s1065 + $0x1] sm:$0xff] %vm1058, %v1034
      %1068 = vrot.lane.b32.xlu0 %v1035, 16
      %v1069 = vpop.permute.xlu0 %1068
      %1071 = vst.msk [vmem:[%s1065 + $0x1] sm:$0xff] %vm1055, %v1069
      %s1072 = scalar_lea.vmem [#allocation4], 48
      %1073 = vst.msk [vmem:[%s1072 + $0x1] sm:$0xff] %vm1058, %v1036
      %1075 = vrot.lane.b32.xlu0 %v1037, 16
      %v1076 = vpop.permute.xlu0 %1075
      %1078 = vst.msk [vmem:[%s1072 + $0x1] sm:$0xff] %vm1055, %v1076
      %s1079 = scalar_lea.vmem [#allocation4], 64
      %1080 = vst.msk [vmem:[%s1079 + $0x1] sm:$0xff] %vm1058, %v1038
      %v1081 = vld [vmem:[#allocation4] ss:$2 sm:$0xf]
      %s1082 = scalar_lea.vmem [#allocation4], 16
      %v1083 = vld [vmem:[%s1082] ss:$2 sm:$0xf]
      %s1084 = scalar_lea.vmem [#allocation4], 32
      %v1085 = vld [vmem:[%s1084] ss:$2 sm:$0xf]
      %s1086 = scalar_lea.vmem [#allocation4], 48
      %v1087 = vld [vmem:[%s1086] ss:$2 sm:$0xf]
      %s1088 = scalar_lea.vmem [#allocation4], 64
      %v1089 = vld [vmem:[%s1088] ss:$2 sm:$0xf]
      %vm1090 = vcmask 125952
      %1091 = vst.msk [vmem:[#allocation5] sm:$0xf] %vm1090, %v1081
      %1092 = vst.msk [vmem:[#allocation5 + $0x8] sm:$0xf] %vm1090, %v1083
      %1093 = vst.msk [vmem:[#allocation5 + $0x10] sm:$0xf] %vm1090, %v1085
      %1094 = vst.msk [vmem:[#allocation5 + $0x18] sm:$0xf] %vm1090, %v1087
      %vm1095 = vcmask 257152
      %1096 = vst.msk [vmem:[#allocation5] sm:$0xf] %vm1095, %v1081
      %1097 = vst.msk [vmem:[#allocation5 + $0x8] sm:$0xf] %vm1095, %v1083
      %1098 = vst.msk [vmem:[#allocation5 + $0x10] sm:$0xf] %vm1095, %v1085
      %1099 = vst.msk [vmem:[#allocation5 + $0x18] sm:$0xf] %vm1095, %v1087
      %1104 = vrot.lane.b32.xlu0 %v1083, 32
      %v1105 = vpop.permute.xlu0 %1104
      %1106 = vrot.lane.b32.xlu0 %v1085, 32
      %v1107 = vpop.permute.xlu0 %1106
      %1108 = vrot.lane.b32.xlu0 %v1087, 32
      %v1109 = vpop.permute.xlu0 %1108
      %1110 = vrot.lane.b32.xlu0 %v1089, 32
      %v1111 = vpop.permute.xlu0 %1110
      %vm1116 = vcmask 388352
      %1117 = vst.msk [vmem:[#allocation5] sm:$0xf] %vm1116, %v1105
      %1118 = vst.msk [vmem:[#allocation5 + $0x8] sm:$0xf] %vm1116, %v1107
      %1119 = vst.msk [vmem:[#allocation5 + $0x10] sm:$0xf] %vm1116, %v1109
      %1120 = vst.msk [vmem:[#allocation5 + $0x18] sm:$0xf] %vm1116, %v1111
      %vm1121 = vcmask 519552
      %1122 = vst.msk [vmem:[#allocation5] sm:$0xf] %vm1121, %v1105
      %1123 = vst.msk [vmem:[#allocation5 + $0x8] sm:$0xf] %vm1121, %v1107
      %1124 = vst.msk [vmem:[#allocation5 + $0x10] sm:$0xf] %vm1121, %v1109
      %1125 = vst.msk [vmem:[#allocation5 + $0x18] sm:$0xf] %vm1121, %v1111
      %s1126 = scalar_lea.vmem [#allocation4], 1
      %v1127 = vld [vmem:[%s1126] ss:$2 sm:$0xf]
      %s1128 = scalar_lea.vmem [#allocation4], 17
      %v1129 = vld [vmem:[%s1128] ss:$2 sm:$0xf]
      %s1130 = scalar_lea.vmem [#allocation4], 33
      %v1131 = vld [vmem:[%s1130] ss:$2 sm:$0xf]
      %s1132 = scalar_lea.vmem [#allocation4], 49
      %v1133 = vld [vmem:[%s1132] ss:$2 sm:$0xf]
      %s1134 = scalar_lea.vmem [#allocation4], 65
      %v1135 = vld [vmem:[%s1134] ss:$2 sm:$0xf]
      %1140 = vrot.lane.b32.xlu0 %v1127, 64
      %v1141 = vpop.permute.xlu0 %1140
      %1142 = vrot.lane.b32.xlu0 %v1129, 64
      %v1143 = vpop.permute.xlu0 %1142
      %1144 = vrot.lane.b32.xlu0 %v1131, 64
      %v1145 = vpop.permute.xlu0 %1144
      %1146 = vrot.lane.b32.xlu0 %v1133, 64
      %v1147 = vpop.permute.xlu0 %1146
      %vm1152 = vcmask 650752
      %1153 = vst.msk [vmem:[#allocation5] sm:$0xf] %vm1152, %v1141
      %1154 = vst.msk [vmem:[#allocation5 + $0x8] sm:$0xf] %vm1152, %v1143
      %1155 = vst.msk [vmem:[#allocation5 + $0x10] sm:$0xf] %vm1152, %v1145
      %1156 = vst.msk [vmem:[#allocation5 + $0x18] sm:$0xf] %vm1152, %v1147
      %vm1157 = vcmask 781952
      %1158 = vst.msk [vmem:[#allocation5] sm:$0xf] %vm1157, %v1141
      %1159 = vst.msk [vmem:[#allocation5 + $0x8] sm:$0xf] %vm1157, %v1143
      %1160 = vst.msk [vmem:[#allocation5 + $0x10] sm:$0xf] %vm1157, %v1145
      %1161 = vst.msk [vmem:[#allocation5 + $0x18] sm:$0xf] %vm1157, %v1147
      %1163 = vrot.lane.b32.xlu0 %v1129, 96
      %v1164 = vpop.permute.xlu0 %1163
      %1165 = vrot.lane.b32.xlu0 %v1131, 96
      %v1166 = vpop.permute.xlu0 %1165
      %1167 = vrot.lane.b32.xlu0 %v1133, 96
      %v1168 = vpop.permute.xlu0 %1167
      %1169 = vrot.lane.b32.xlu0 %v1135, 96
      %v1170 = vpop.permute.xlu0 %1169
      %vm1175 = vcmask 913152
      %1176 = vst.msk [vmem:[#allocation5] sm:$0xf] %vm1175, %v1164
      %1177 = vst.msk [vmem:[#allocation5 + $0x8] sm:$0xf] %vm1175, %v1166
      %1178 = vst.msk [vmem:[#allocation5 + $0x10] sm:$0xf] %vm1175, %v1168
      %1179 = vst.msk [vmem:[#allocation5 + $0x18] sm:$0xf] %vm1175, %v1170
      %vm1180 = vcmask 1044352
      %1181 = vst.msk [vmem:[#allocation5] sm:$0xf] %vm1180, %v1164
      %1182 = vst.msk [vmem:[#allocation5 + $0x8] sm:$0xf] %vm1180, %v1166
      %1183 = vst.msk [vmem:[#allocation5 + $0x10] sm:$0xf] %vm1180, %v1168
      %1184 = vst.msk [vmem:[#allocation5 + $0x18] sm:$0xf] %vm1180, %v1170
      %s1185 = scalar_lea.vmem [#allocation4], 2
      %v1186 = vld [vmem:[%s1185] ss:$2 sm:$0xf]
      %s1187 = scalar_lea.vmem [#allocation4], 18
      %v1188 = vld [vmem:[%s1187] ss:$2 sm:$0xf]
      %s1189 = scalar_lea.vmem [#allocation4], 34
      %v1190 = vld [vmem:[%s1189] ss:$2 sm:$0xf]
      %s1191 = scalar_lea.vmem [#allocation4], 50
      %v1192 = vld [vmem:[%s1191] ss:$2 sm:$0xf]
      %s1193 = scalar_lea.vmem [#allocation4], 66
      %v1194 = vld [vmem:[%s1193] ss:$2 sm:$0xf]
      %1195 = vst.msk [vmem:[#allocation5 + $0x4] sm:$0xf] %vm1090, %v1186
      %1196 = vst.msk [vmem:[#allocation5 + $0xc] sm:$0xf] %vm1090, %v1188
      %1197 = vst.msk [vmem:[#allocation5 + $0x14] sm:$0xf] %vm1090, %v1190
      %1198 = vst.msk [vmem:[#allocation5 + $0x1c] sm:$0xf] %vm1090, %v1192
      %1199 = vst.msk [vmem:[#allocation5 + $0x4] sm:$0xf] %vm1095, %v1186
      %1200 = vst.msk [vmem:[#allocation5 + $0xc] sm:$0xf] %vm1095, %v1188
      %1201 = vst.msk [vmem:[#allocation5 + $0x14] sm:$0xf] %vm1095, %v1190
      %1202 = vst.msk [vmem:[#allocation5 + $0x1c] sm:$0xf] %vm1095, %v1192
      %1207 = vrot.lane.b32.xlu0 %v1188, 32
      %v1208 = vpop.permute.xlu0 %1207
      %1209 = vrot.lane.b32.xlu0 %v1190, 32
      %v1210 = vpop.permute.xlu0 %1209
      %1211 = vrot.lane.b32.xlu0 %v1192, 32
      %v1212 = vpop.permute.xlu0 %1211
      %1213 = vrot.lane.b32.xlu0 %v1194, 32
      %v1214 = vpop.permute.xlu0 %1213
      %1219 = vst.msk [vmem:[#allocation5 + $0x4] sm:$0xf] %vm1116, %v1208
      %1220 = vst.msk [vmem:[#allocation5 + $0xc] sm:$0xf] %vm1116, %v1210
      %1221 = vst.msk [vmem:[#allocation5 + $0x14] sm:$0xf] %vm1116, %v1212
      %1222 = vst.msk [vmem:[#allocation5 + $0x1c] sm:$0xf] %vm1116, %v1214
      %1223 = vst.msk [vmem:[#allocation5 + $0x4] sm:$0xf] %vm1121, %v1208
      %1224 = vst.msk [vmem:[#allocation5 + $0xc] sm:$0xf] %vm1121, %v1210
      %1225 = vst.msk [vmem:[#allocation5 + $0x14] sm:$0xf] %vm1121, %v1212
      %1226 = vst.msk [vmem:[#allocation5 + $0x1c] sm:$0xf] %vm1121, %v1214
      %s1227 = scalar_lea.vmem [#allocation4], 3
      %v1228 = vld [vmem:[%s1227] ss:$2 sm:$0xf]
      %s1229 = scalar_lea.vmem [#allocation4], 19
      %v1230 = vld [vmem:[%s1229] ss:$2 sm:$0xf]
      %s1231 = scalar_lea.vmem [#allocation4], 35
      %v1232 = vld [vmem:[%s1231] ss:$2 sm:$0xf]
      %s1233 = scalar_lea.vmem [#allocation4], 51
      %v1234 = vld [vmem:[%s1233] ss:$2 sm:$0xf]
      %s1235 = scalar_lea.vmem [#allocation4], 67
      %v1236 = vld [vmem:[%s1235] ss:$2 sm:$0xf]
      %1241 = vrot.lane.b32.xlu0 %v1228, 64
      %v1242 = vpop.permute.xlu0 %1241
      %1243 = vrot.lane.b32.xlu0 %v1230, 64
      %v1244 = vpop.permute.xlu0 %1243
      %1245 = vrot.lane.b32.xlu0 %v1232, 64
      %v1246 = vpop.permute.xlu0 %1245
      %1247 = vrot.lane.b32.xlu0 %v1234, 64
      %v1248 = vpop.permute.xlu0 %1247
      %1253 = vst.msk [vmem:[#allocation5 + $0x4] sm:$0xf] %vm1152, %v1242
      %1254 = vst.msk [vmem:[#allocation5 + $0xc] sm:$0xf] %vm1152, %v1244
      %1255 = vst.msk [vmem:[#allocation5 + $0x14] sm:$0xf] %vm1152, %v1246
      %1256 = vst.msk [vmem:[#allocation5 + $0x1c] sm:$0xf] %vm1152, %v1248
      %1257 = vst.msk [vmem:[#allocation5 + $0x4] sm:$0xf] %vm1157, %v1242
      %1258 = vst.msk [vmem:[#allocation5 + $0xc] sm:$0xf] %vm1157, %v1244
      %1259 = vst.msk [vmem:[#allocation5 + $0x14] sm:$0xf] %vm1157, %v1246
      %1260 = vst.msk [vmem:[#allocation5 + $0x1c] sm:$0xf] %vm1157, %v1248
      %1262 = vrot.lane.b32.xlu0 %v1230, 96
      %v1263 = vpop.permute.xlu0 %1262
      %1264 = vrot.lane.b32.xlu0 %v1232, 96
      %v1265 = vpop.permute.xlu0 %1264
      %1266 = vrot.lane.b32.xlu0 %v1234, 96
      %v1267 = vpop.permute.xlu0 %1266
      %1268 = vrot.lane.b32.xlu0 %v1236, 96
      %v1269 = vpop.permute.xlu0 %1268
      %1274 = vst.msk [vmem:[#allocation5 + $0x4] sm:$0xf] %vm1175, %v1263
      %1275 = vst.msk [vmem:[#allocation5 + $0xc] sm:$0xf] %vm1175, %v1265
      %1276 = vst.msk [vmem:[#allocation5 + $0x14] sm:$0xf] %vm1175, %v1267
      %1277 = vst.msk [vmem:[#allocation5 + $0x1c] sm:$0xf] %vm1175, %v1269
      %1278 = vst.msk [vmem:[#allocation5 + $0x4] sm:$0xf] %vm1180, %v1263
      %1279 = vst.msk [vmem:[#allocation5 + $0xc] sm:$0xf] %vm1180, %v1265
      %1280 = vst.msk [vmem:[#allocation5 + $0x14] sm:$0xf] %vm1180, %v1267
      %1281 = vst.msk [vmem:[#allocation5 + $0x1c] sm:$0xf] %vm1180, %v1269
      %v1282 = vld [vmem:[#allocation5] sm:$0xff]
      %v1283 = vld [vmem:[#allocation5 + $0x8] sm:$0xff]
      %v1284 = vld [vmem:[#allocation5 + $0x10] sm:$0xff]
      %v1285 = vld [vmem:[#allocation5 + $0x18] sm:$0xff]
      %v1286 = vld [vmem:[%s3] sm:$0xff]
      %v1287 = vld [vmem:[%s3 + $0x8] sm:$0xff]
      %v1288 = vld [vmem:[%s3 + $0x10] sm:$0xff]
      %v1289 = vld [vmem:[%s3 + $0x18] sm:$0xff]
      %v1290 = vld [vmem:[%s3 + $0x20] sm:$0xff]
      %v1291 = vld [vmem:[%s3 + $0x28] sm:$0xff]
      %v1292 = vld [vmem:[%s3 + $0x30] sm:$0xff]
      %v1293 = vld [vmem:[%s3 + $0x38] sm:$0xff]
      %v1294 = vld [vmem:[%s3 + $0x40] sm:$0xff]
      %v1295 = vld [vmem:[%s3 + $0x48] sm:$0xff]
      %v1296 = vld [vmem:[%s3 + $0x50] sm:$0xff]
      %v1297 = vld [vmem:[%s3 + $0x58] sm:$0xff]
      %v1298 = vld [vmem:[%s3 + $0x60] sm:$0xff]
      %v1299 = vld [vmem:[%s3 + $0x68] sm:$0xff]
      %v1300 = vld [vmem:[%s3 + $0x70] sm:$0xff]
      %v1301 = vld [vmem:[%s3 + $0x78] sm:$0xff]
      %v1302 = vld [vmem:[%s3 + $0x80] sm:$0xff]
      %v1303 = vld [vmem:[%s3 + $0x88] sm:$0xff]
      %v1304 = vld [vmem:[%s3 + $0x90] sm:$0xff]
      %v1305 = vld [vmem:[%s3 + $0x98] sm:$0xff]
      %v1306 = vld [vmem:[%s3 + $0xa0] sm:$0xff]
      %v1307 = vld [vmem:[%s3 + $0xa8] sm:$0xff]
      %v1308 = vld [vmem:[%s3 + $0xb0] sm:$0xff]
      %v1309 = vld [vmem:[%s3 + $0xb8] sm:$0xff]
      %v1310 = vld [vmem:[%s3 + $0xc0] sm:$0xff]
      %v1311 = vld [vmem:[%s3 + $0xc8] sm:$0xff]
      %v1312 = vld [vmem:[%s3 + $0xd0] sm:$0xff]
      %v1313 = vld [vmem:[%s3 + $0xd8] sm:$0xff]
      %v1314 = vld [vmem:[%s3 + $0xe0] sm:$0xff]
      %v1315 = vld [vmem:[%s3 + $0xe8] sm:$0xff]
      %v1316 = vld [vmem:[%s3 + $0xf0] sm:$0xff]
      %v1317 = vld [vmem:[%s3 + $0xf8] sm:$0xff]
      %v1318 = vld [vmem:[%s4] sm:$0x1]
      %v1320 = vlaneseq
      %v1321 = vshrl.u32 %v1320, 7
      %v1322 = vsub.s32 0, %v1321
      %v1323 = vrot.slane %v1318, %v1322
      %v1329 = vcombine.low %v1282, %v1283
      %v1330 = vcombine.high %v1282, %v1283
      %v1331 = vcombine.low %v1284, %v1285
      %v1332 = vcombine.high %v1284, %v1285
      %1337 = vmatprep.subr.mxu0 0.0
      %1338 = vmatpush1.msra.mxu0 %v1301
      %1339 = vmatprep.subr.mxu0 0.0
      %1340 = vmatpush1.msra.mxu0 %v1300
      %1341 = vmatprep.subr.mxu0 0.0
      %1342 = vmatpush1.msra.mxu0 %v1299
      %1343 = vmatprep.subr.mxu0 0.0
      %1344 = vmatpush1.msra.mxu0 %v1298
      %1345 = vmatprep.subr.mxu0 0.0
      %1346 = vmatpush1.msra.mxu0 %v1297
      %1347 = vmatprep.subr.mxu0 0.0
      %1348 = vmatpush1.msra.mxu0 %v1296
      %1349 = vmatprep.subr.mxu0 0.0
      %1350 = vmatpush1.msra.mxu0 %v1295
      %1351 = vmatprep.subr.mxu0 0.0
      %1352 = vmatpush1.msra.mxu0 %v1294
      %1353 = vmatprep.subr.mxu0 0.0
      %1354 = vmatpush1.msra.mxu0 %v1293
      %1355 = vmatprep.subr.mxu0 0.0
      %1356 = vmatpush1.msra.mxu0 %v1292
      %1357 = vmatprep.subr.mxu0 0.0
      %1358 = vmatpush1.msra.mxu0 %v1291
      %1359 = vmatprep.subr.mxu0 0.0
      %1360 = vmatpush1.msra.mxu0 %v1290
      %1361 = vmatprep.subr.mxu0 0.0
      %1362 = vmatpush1.msra.mxu0 %v1289
      %1363 = vmatprep.subr.mxu0 0.0
      %1364 = vmatpush1.msra.mxu0 %v1288
      %1365 = vmatprep.subr.mxu0 0.0
      %1366 = vmatpush1.msra.mxu0 %v1287
      %1367 = vmatprep.subr.mxu0 0.0
      %1368 = vmatpush1.msra.mxu0 %v1286
      %1369 = vmatprep.subr.mxu0 0.0
      %1370 = vmatpush2.msra.mxu0 %v1317
      %1371 = vmatprep.subr.mxu0 0.0
      %1372 = vmatpush2.msra.mxu0 %v1316
      %1373 = vmatprep.subr.mxu0 0.0
      %1374 = vmatpush2.msra.mxu0 %v1315
      %1375 = vmatprep.subr.mxu0 0.0
      %1376 = vmatpush2.msra.mxu0 %v1314
      %1377 = vmatprep.subr.mxu0 0.0
      %1378 = vmatpush2.msra.mxu0 %v1313
      %1379 = vmatprep.subr.mxu0 0.0
      %1380 = vmatpush2.msra.mxu0 %v1312
      %1381 = vmatprep.subr.mxu0 0.0
      %1382 = vmatpush2.msra.mxu0 %v1311
      %1383 = vmatprep.subr.mxu0 0.0
      %1384 = vmatpush2.msra.mxu0 %v1310
      %1385 = vmatprep.subr.mxu0 0.0
      %1386 = vmatpush2.msra.mxu0 %v1309
      %1387 = vmatprep.subr.mxu0 0.0
      %1388 = vmatpush2.msra.mxu0 %v1308
      %1389 = vmatprep.subr.mxu0 0.0
      %1390 = vmatpush2.msra.mxu0 %v1307
      %1391 = vmatprep.subr.mxu0 0.0
      %1392 = vmatpush2.msra.mxu0 %v1306
      %1393 = vmatprep.subr.mxu0 0.0
      %1394 = vmatpush2.msra.mxu0 %v1305
      %1395 = vmatprep.subr.mxu0 0.0
      %1396 = vmatpush2.msra.mxu0 %v1304
      %1397 = vmatprep.subr.mxu0 0.0
      %1398 = vmatpush2.msra.mxu0 %v1303
      %1399 = vmatprep.subr.mxu0 0.0
      %1400 = vmatpush2.msra.mxu0 %v1302
      %1401 = vmatprep.mubr.f32.mxu0 %v1330
      %1402 = vmatmul.mubr.f32.gmra.mxu0 %v1329
      %v1403 = vpop.f32.mrf.mxu0
      %v1404 = vadd.f32 %v1323, %v1403
      %v1405 = vpop.f32.mrf.mxu0
      %1406 = vmatprep.mubr.f32.mxu0 %v1332
      %1407 = vmatmul.mubr.f32.gmra.mxu0 %v1331
      %v1408 = vpop.f32.mrf.mxu0
      %v1409 = vadd.f32 %v1323, %v1408
      %v1410 = vpop.f32.mrf.mxu0
      %1411 = vdwg.mxu0
      %vm1412 = vcmp.ge.f32.partialorder %v1404, 0.0
      %vm1413 = vcmp.ge.f32.partialorder %v1409, 0.0
      %v1414 = vmul.f32 %v1404, 0.2
      %v1415 = vmul.f32 %v1409, 0.2
      %v1416 = vsel %vm1412, %v1404, %v1414
      %v1417 = vsel %vm1413, %v1409, %v1415
      %vm1418 = vcmask 521216
      %1419 = vst.msk [vmem:[#allocation6] sm:$0x3f] %vm1418, 0.0
      %1420 = vst.msk [vmem:[#allocation6 + $0x8] sm:$0x3f] %vm1418, 0.0
      %1421 = vst.msk [vmem:[#allocation6 + $0x10] sm:$0x3f] %vm1418, 0.0
      %1423 = vrot.lane.b32.xlu0 %v1416, 32
      %v1424 = vpop.permute.xlu0 %1423
      %vm1426 = vcmask 519424
      %1427 = vst.msk [vmem:[#allocation6 + $0x1] sm:$0xf] %vm1426, %v1424
      %s1428 = scalar_lea.vmem [#allocation6], 8
      %vm1429 = vcmask 261124
      %1430 = vst.msk [vmem:[%s1428 - $0x3] sm:$0xf0] %vm1429, %v1416
      %1432 = vrot.lane.b32.xlu0 %v1417, 32
      %v1433 = vpop.permute.xlu0 %1432
      %1435 = vst.msk [vmem:[%s1428 + $0x1] sm:$0xf] %vm1426, %v1433
      %s1436 = scalar_lea.vmem [#allocation6], 16
      %1437 = vst.msk [vmem:[%s1436 - $0x3] sm:$0xf0] %vm1429, %v1417
      %v1438 = vld [vmem:[#allocation6] ss:$2 sm:$0x3]
      %s1439 = scalar_lea.vmem [#allocation6], 8
      %v1440 = vld [vmem:[%s1439] ss:$2 sm:$0x3]
      %s1441 = scalar_lea.vmem [#allocation6], 16
      %v1442 = vld [vmem:[%s1441] ss:$2 sm:$0x3]
      %1443 = vst.msk [vmem:[#allocation7] sm:$0x3] %vm1041, %v1438
      %1444 = vst.msk [vmem:[#allocation7 + $0x8] sm:$0x3] %vm1041, %v1440
      %vm1445 = vcmask 517376
      %1446 = vst.msk [vmem:[#allocation7] sm:$0x3] %vm1445, %v1438
      %1447 = vst.msk [vmem:[#allocation7 + $0x8] sm:$0x3] %vm1445, %v1440
      %v1451 = vunpack.c.l.s4 1983009808
      %v1452 = vunpack.c.0.s8 %v1451
      %v1453 = vlaneseq
      %v1454 = vshrl.u32 %v1453, 7
      %v1455 = vsub.s32 %v1452, %v1454
      %v1456 = vrot.slane %v1440, %v1455
      %v1458 = vunpack.c.l.s4 1983009808
      %v1459 = vunpack.c.0.s8 %v1458
      %v1460 = vlaneseq
      %v1461 = vshrl.u32 %v1460, 7
      %v1462 = vsub.s32 %v1459, %v1461
      %v1463 = vrot.slane %v1442, %v1462
      %1464 = vrot.lane.b32.xlu0 %v1456, 64
      %v1465 = vpop.permute.xlu0 %1464
      %1466 = vrot.lane.b32.xlu0 %v1463, 64
      %v1467 = vpop.permute.xlu0 %1466
      %vm1470 = vcmask 779776
      %1471 = vst.msk [vmem:[#allocation7] sm:$0x3] %vm1470, %v1465
      %1472 = vst.msk [vmem:[#allocation7 + $0x8] sm:$0x3] %vm1470, %v1467
      %vm1473 = vcmask 1042176
      %1474 = vst.msk [vmem:[#allocation7] sm:$0x3] %vm1473, %v1465
      %1475 = vst.msk [vmem:[#allocation7 + $0x8] sm:$0x3] %vm1473, %v1467
      %s1476 = scalar_lea.vmem [#allocation6], 1
      %v1477 = vld [vmem:[%s1476] ss:$2 sm:$0x3]
      %s1478 = scalar_lea.vmem [#allocation6], 9
      %v1479 = vld [vmem:[%s1478] ss:$2 sm:$0x3]
      %s1480 = scalar_lea.vmem [#allocation6], 17
      %v1481 = vld [vmem:[%s1480] ss:$2 sm:$0x3]
      %1482 = vst.msk [vmem:[#allocation7 + $0x2] sm:$0x3] %vm1041, %v1477
      %1483 = vst.msk [vmem:[#allocation7 + $0xa] sm:$0x3] %vm1041, %v1479
      %1484 = vst.msk [vmem:[#allocation7 + $0x2] sm:$0x3] %vm1445, %v1477
      %1485 = vst.msk [vmem:[#allocation7 + $0xa] sm:$0x3] %vm1445, %v1479
      %v1489 = vunpack.c.l.s4 1983009808
      %v1490 = vunpack.c.0.s8 %v1489
      %v1491 = vlaneseq
      %v1492 = vshrl.u32 %v1491, 7
      %v1493 = vsub.s32 %v1490, %v1492
      %v1494 = vrot.slane %v1479, %v1493
      %v1496 = vunpack.c.l.s4 1983009808
      %v1497 = vunpack.c.0.s8 %v1496
      %v1498 = vlaneseq
      %v1499 = vshrl.u32 %v1498, 7
      %v1500 = vsub.s32 %v1497, %v1499
      %v1501 = vrot.slane %v1481, %v1500
      %1502 = vrot.lane.b32.xlu0 %v1494, 64
      %v1503 = vpop.permute.xlu0 %1502
      %1504 = vrot.lane.b32.xlu0 %v1501, 64
      %v1505 = vpop.permute.xlu0 %1504
      %1508 = vst.msk [vmem:[#allocation7 + $0x2] sm:$0x3] %vm1470, %v1503
      %1509 = vst.msk [vmem:[#allocation7 + $0xa] sm:$0x3] %vm1470, %v1505
      %1510 = vst.msk [vmem:[#allocation7 + $0x2] sm:$0x3] %vm1473, %v1503
      %1511 = vst.msk [vmem:[#allocation7 + $0xa] sm:$0x3] %vm1473, %v1505
      %s1512 = scalar_lea.vmem [#allocation6], 2
      %v1513 = vld [vmem:[%s1512] ss:$2 sm:$0x3]
      %s1514 = scalar_lea.vmem [#allocation6], 10
      %v1515 = vld [vmem:[%s1514] ss:$2 sm:$0x3]
      %s1516 = scalar_lea.vmem [#allocation6], 18
      %v1517 = vld [vmem:[%s1516] ss:$2 sm:$0x3]
      %1518 = vst.msk [vmem:[#allocation7 + $0x4] sm:$0x3] %vm1041, %v1513
      %1519 = vst.msk [vmem:[#allocation7 + $0xc] sm:$0x3] %vm1041, %v1515
      %1520 = vst.msk [vmem:[#allocation7 + $0x4] sm:$0x3] %vm1445, %v1513
      %1521 = vst.msk [vmem:[#allocation7 + $0xc] sm:$0x3] %vm1445, %v1515
      %v1525 = vunpack.c.l.s4 1983009808
      %v1526 = vunpack.c.0.s8 %v1525
      %v1527 = vlaneseq
      %v1528 = vshrl.u32 %v1527, 7
      %v1529 = vsub.s32 %v1526, %v1528
      %v1530 = vrot.slane %v1515, %v1529
      %v1532 = vunpack.c.l.s4 1983009808
      %v1533 = vunpack.c.0.s8 %v1532
      %v1534 = vlaneseq
      %v1535 = vshrl.u32 %v1534, 7
      %v1536 = vsub.s32 %v1533, %v1535
      %v1537 = vrot.slane %v1517, %v1536
      %1538 = vrot.lane.b32.xlu0 %v1530, 64
      %v1539 = vpop.permute.xlu0 %1538
      %1540 = vrot.lane.b32.xlu0 %v1537, 64
      %v1541 = vpop.permute.xlu0 %1540
      %1544 = vst.msk [vmem:[#allocation7 + $0x4] sm:$0x3] %vm1470, %v1539
      %1545 = vst.msk [vmem:[#allocation7 + $0xc] sm:$0x3] %vm1470, %v1541
      %1546 = vst.msk [vmem:[#allocation7 + $0x4] sm:$0x3] %vm1473, %v1539
      %1547 = vst.msk [vmem:[#allocation7 + $0xc] sm:$0x3] %vm1473, %v1541
      %s1548 = scalar_lea.vmem [#allocation6], 3
      %v1549 = vld [vmem:[%s1548] ss:$2 sm:$0x3]
      %s1550 = scalar_lea.vmem [#allocation6], 11
      %v1551 = vld [vmem:[%s1550] ss:$2 sm:$0x3]
      %s1552 = scalar_lea.vmem [#allocation6], 19
      %v1553 = vld [vmem:[%s1552] ss:$2 sm:$0x3]
      %1554 = vst.msk [vmem:[#allocation7 + $0x6] sm:$0x3] %vm1041, %v1549
      %1555 = vst.msk [vmem:[#allocation7 + $0xe] sm:$0x3] %vm1041, %v1551
      %1556 = vst.msk [vmem:[#allocation7 + $0x6] sm:$0x3] %vm1445, %v1549
      %1557 = vst.msk [vmem:[#allocation7 + $0xe] sm:$0x3] %vm1445, %v1551
      %v1561 = vunpack.c.l.s4 1983009808
      %v1562 = vunpack.c.0.s8 %v1561
      %v1563 = vlaneseq
      %v1564 = vshrl.u32 %v1563, 7
      %v1565 = vsub.s32 %v1562, %v1564
      %v1566 = vrot.slane %v1551, %v1565
      %v1568 = vunpack.c.l.s4 1983009808
      %v1569 = vunpack.c.0.s8 %v1568
      %v1570 = vlaneseq
      %v1571 = vshrl.u32 %v1570, 7
      %v1572 = vsub.s32 %v1569, %v1571
      %v1573 = vrot.slane %v1553, %v1572
      %1574 = vrot.lane.b32.xlu0 %v1566, 64
      %v1575 = vpop.permute.xlu0 %1574
      %1576 = vrot.lane.b32.xlu0 %v1573, 64
      %v1577 = vpop.permute.xlu0 %1576
      %1580 = vst.msk [vmem:[#allocation7 + $0x6] sm:$0x3] %vm1470, %v1575
      %1581 = vst.msk [vmem:[#allocation7 + $0xe] sm:$0x3] %vm1470, %v1577
      %1582 = vst.msk [vmem:[#allocation7 + $0x6] sm:$0x3] %vm1473, %v1575
      %1583 = vst.msk [vmem:[#allocation7 + $0xe] sm:$0x3] %vm1473, %v1577
      %v1584 = vld [vmem:[#allocation7] sm:$0xff]
      %v1585 = vld [vmem:[#allocation7 + $0x8] sm:$0xff]
      %v1586 = vld [vmem:[%s5] sm:$0xff]
      %v1587 = vld [vmem:[%s5 + $0x8] sm:$0xff]
      %v1588 = vld [vmem:[%s5 + $0x10] sm:$0xff]
      %v1589 = vld [vmem:[%s5 + $0x18] sm:$0xff]
      %v1590 = vld [vmem:[%s5 + $0x20] sm:$0xff]
      %v1591 = vld [vmem:[%s5 + $0x28] sm:$0xff]
      %v1592 = vld [vmem:[%s5 + $0x30] sm:$0xff]
      %v1593 = vld [vmem:[%s5 + $0x38] sm:$0xff]
      %v1594 = vld [vmem:[%s5 + $0x40] sm:$0xff]
      %v1595 = vld [vmem:[%s5 + $0x48] sm:$0xff]
      %v1596 = vld [vmem:[%s5 + $0x50] sm:$0xff]
      %v1597 = vld [vmem:[%s5 + $0x58] sm:$0xff]
      %v1598 = vld [vmem:[%s5 + $0x60] sm:$0xff]
      %v1599 = vld [vmem:[%s5 + $0x68] sm:$0xff]
      %v1600 = vld [vmem:[%s5 + $0x70] sm:$0xff]
      %v1601 = vld [vmem:[%s5 + $0x78] sm:$0xff]
      %v1602 = vld [vmem:[%s5 + $0x80] sm:$0xff]
      %v1603 = vld [vmem:[%s5 + $0x88] sm:$0xff]
      %v1604 = vld [vmem:[%s5 + $0x90] sm:$0xff]
      %v1605 = vld [vmem:[%s5 + $0x98] sm:$0xff]
      %v1606 = vld [vmem:[%s5 + $0xa0] sm:$0xff]
      %v1607 = vld [vmem:[%s5 + $0xa8] sm:$0xff]
      %v1608 = vld [vmem:[%s5 + $0xb0] sm:$0xff]
      %v1609 = vld [vmem:[%s5 + $0xb8] sm:$0xff]
      %v1610 = vld [vmem:[%s5 + $0xc0] sm:$0xff]
      %v1611 = vld [vmem:[%s5 + $0xc8] sm:$0xff]
      %v1612 = vld [vmem:[%s5 + $0xd0] sm:$0xff]
      %v1613 = vld [vmem:[%s5 + $0xd8] sm:$0xff]
      %v1614 = vld [vmem:[%s5 + $0xe0] sm:$0xff]
      %v1615 = vld [vmem:[%s5 + $0xe8] sm:$0xff]
      %v1616 = vld [vmem:[%s5 + $0xf0] sm:$0xff]
      %v1617 = vld [vmem:[%s5 + $0xf8] sm:$0xff]
      %v1618 = vld [vmem:[%s5 + $0x100] sm:$0xff]
      %v1619 = vld [vmem:[%s5 + $0x108] sm:$0xff]
      %v1620 = vld [vmem:[%s5 + $0x110] sm:$0xff]
      %v1621 = vld [vmem:[%s5 + $0x118] sm:$0xff]
      %v1622 = vld [vmem:[%s5 + $0x120] sm:$0xff]
      %v1623 = vld [vmem:[%s5 + $0x128] sm:$0xff]
      %v1624 = vld [vmem:[%s5 + $0x130] sm:$0xff]
      %v1625 = vld [vmem:[%s5 + $0x138] sm:$0xff]
      %v1626 = vld [vmem:[%s5 + $0x140] sm:$0xff]
      %v1627 = vld [vmem:[%s5 + $0x148] sm:$0xff]
      %v1628 = vld [vmem:[%s5 + $0x150] sm:$0xff]
      %v1629 = vld [vmem:[%s5 + $0x158] sm:$0xff]
      %v1630 = vld [vmem:[%s5 + $0x160] sm:$0xff]
      %v1631 = vld [vmem:[%s5 + $0x168] sm:$0xff]
      %v1632 = vld [vmem:[%s5 + $0x170] sm:$0xff]
      %v1633 = vld [vmem:[%s5 + $0x178] sm:$0xff]
      %v1634 = vld [vmem:[%s5 + $0x180] sm:$0xff]
      %v1635 = vld [vmem:[%s5 + $0x188] sm:$0xff]
      %v1636 = vld [vmem:[%s5 + $0x190] sm:$0xff]
      %v1637 = vld [vmem:[%s5 + $0x198] sm:$0xff]
      %v1638 = vld [vmem:[%s5 + $0x1a0] sm:$0xff]
      %v1639 = vld [vmem:[%s5 + $0x1a8] sm:$0xff]
      %v1640 = vld [vmem:[%s5 + $0x1b0] sm:$0xff]
      %v1641 = vld [vmem:[%s5 + $0x1b8] sm:$0xff]
      %v1642 = vld [vmem:[%s5 + $0x1c0] sm:$0xff]
      %v1643 = vld [vmem:[%s5 + $0x1c8] sm:$0xff]
      %v1644 = vld [vmem:[%s5 + $0x1d0] sm:$0xff]
      %v1645 = vld [vmem:[%s5 + $0x1d8] sm:$0xff]
      %v1646 = vld [vmem:[%s5 + $0x1e0] sm:$0xff]
      %v1647 = vld [vmem:[%s5 + $0x1e8] sm:$0xff]
      %v1648 = vld [vmem:[%s5 + $0x1f0] sm:$0xff]
      %v1649 = vld [vmem:[%s5 + $0x1f8] sm:$0xff]
      %v1650 = vld [vmem:[#allocation8] sm:$0x1]
      %v1652 = vlaneseq
      %v1653 = vshrl.u32 %v1652, 7
      %v1654 = vsub.s32 0, %v1653
      %v1655 = vrot.slane %v1650, %v1654
      %v1659 = vcombine.low %v1584, %v1585
      %v1660 = vcombine.high %v1584, %v1585
      %v1662 = vunpack.c.l.s4 1983009808
      %v1663 = vunpack.c.0.s8 %v1662
      %v1664 = vlaneseq
      %v1665 = vshrl.u32 %v1664, 7
      %v1666 = vsub.s32 %v1663, %v1665
      %v1667 = vrot.slane %v1659, %v1666
      %v1669 = vunpack.c.l.s4 1983009808
      %v1670 = vunpack.c.0.s8 %v1669
      %v1671 = vlaneseq
      %v1672 = vshrl.u32 %v1671, 7
      %v1673 = vsub.s32 %v1670, %v1672
      %v1674 = vrot.slane %v1660, %v1673
      %v1675 = vcombine.high %v1667, %v1667
      %v1676 = vcombine.high %v1674, %v1674
      %1681 = vmatprep.subr.mxu0 0.0
      %1682 = vmatpush1.msra.mxu0 %v1601
      %1683 = vmatprep.subr.mxu0 0.0
      %1684 = vmatpush1.msra.mxu0 %v1600
      %1685 = vmatprep.subr.mxu0 0.0
      %1686 = vmatpush1.msra.mxu0 %v1599
      %1687 = vmatprep.subr.mxu0 0.0
      %1688 = vmatpush1.msra.mxu0 %v1598
      %1689 = vmatprep.subr.mxu0 0.0
      %1690 = vmatpush1.msra.mxu0 %v1597
      %1691 = vmatprep.subr.mxu0 0.0
      %1692 = vmatpush1.msra.mxu0 %v1596
      %1693 = vmatprep.subr.mxu0 0.0
      %1694 = vmatpush1.msra.mxu0 %v1595
      %1695 = vmatprep.subr.mxu0 0.0
      %1696 = vmatpush1.msra.mxu0 %v1594
      %1697 = vmatprep.subr.mxu0 0.0
      %1698 = vmatpush1.msra.mxu0 %v1593
      %1699 = vmatprep.subr.mxu0 0.0
      %1700 = vmatpush1.msra.mxu0 %v1592
      %1701 = vmatprep.subr.mxu0 0.0
      %1702 = vmatpush1.msra.mxu0 %v1591
      %1703 = vmatprep.subr.mxu0 0.0
      %1704 = vmatpush1.msra.mxu0 %v1590
      %1705 = vmatprep.subr.mxu0 0.0
      %1706 = vmatpush1.msra.mxu0 %v1589
      %1707 = vmatprep.subr.mxu0 0.0
      %1708 = vmatpush1.msra.mxu0 %v1588
      %1709 = vmatprep.subr.mxu0 0.0
      %1710 = vmatpush1.msra.mxu0 %v1587
      %1711 = vmatprep.subr.mxu0 0.0
      %1712 = vmatpush1.msra.mxu0 %v1586
      %1713 = vmatprep.subr.mxu0 0.0
      %1714 = vmatpush2.msra.mxu0 %v1617
      %1715 = vmatprep.subr.mxu0 0.0
      %1716 = vmatpush2.msra.mxu0 %v1616
      %1717 = vmatprep.subr.mxu0 0.0
      %1718 = vmatpush2.msra.mxu0 %v1615
      %1719 = vmatprep.subr.mxu0 0.0
      %1720 = vmatpush2.msra.mxu0 %v1614
      %1721 = vmatprep.subr.mxu0 0.0
      %1722 = vmatpush2.msra.mxu0 %v1613
      %1723 = vmatprep.subr.mxu0 0.0
      %1724 = vmatpush2.msra.mxu0 %v1612
      %1725 = vmatprep.subr.mxu0 0.0
      %1726 = vmatpush2.msra.mxu0 %v1611
      %1727 = vmatprep.subr.mxu0 0.0
      %1728 = vmatpush2.msra.mxu0 %v1610
      %1729 = vmatprep.subr.mxu0 0.0
      %1730 = vmatpush2.msra.mxu0 %v1609
      %1731 = vmatprep.subr.mxu0 0.0
      %1732 = vmatpush2.msra.mxu0 %v1608
      %1733 = vmatprep.subr.mxu0 0.0
      %1734 = vmatpush2.msra.mxu0 %v1607
      %1735 = vmatprep.subr.mxu0 0.0
      %1736 = vmatpush2.msra.mxu0 %v1606
      %1737 = vmatprep.subr.mxu0 0.0
      %1738 = vmatpush2.msra.mxu0 %v1605
      %1739 = vmatprep.subr.mxu0 0.0
      %1740 = vmatpush2.msra.mxu0 %v1604
      %1741 = vmatprep.subr.mxu0 0.0
      %1742 = vmatpush2.msra.mxu0 %v1603
      %1743 = vmatprep.subr.mxu0 0.0
      %1744 = vmatpush2.msra.mxu0 %v1602
      %1745 = vmatprep.mubr.f32.mxu0 %v1675
      %1746 = vmatmul.mubr.f32.gmra.mxu0 %v1667
      %v1747 = vpop.f32.mrf.mxu0
      %v1748 = vadd.f32 %v1655, %v1747
      %v1749 = vpop.f32.mrf.mxu0
      %1750 = vdwg.mxu0
      %1751 = vmatprep.subr.mxu0 0.0
      %1752 = vmatpush1.msra.mxu0 %v1633
      %1753 = vmatprep.subr.mxu0 0.0
      %1754 = vmatpush1.msra.mxu0 %v1632
      %1755 = vmatprep.subr.mxu0 0.0
      %1756 = vmatpush1.msra.mxu0 %v1631
      %1757 = vmatprep.subr.mxu0 0.0
      %1758 = vmatpush1.msra.mxu0 %v1630
      %1759 = vmatprep.subr.mxu0 0.0
      %1760 = vmatpush1.msra.mxu0 %v1629
      %1761 = vmatprep.subr.mxu0 0.0
      %1762 = vmatpush1.msra.mxu0 %v1628
      %1763 = vmatprep.subr.mxu0 0.0
      %1764 = vmatpush1.msra.mxu0 %v1627
      %1765 = vmatprep.subr.mxu0 0.0
      %1766 = vmatpush1.msra.mxu0 %v1626
      %1767 = vmatprep.subr.mxu0 0.0
      %1768 = vmatpush1.msra.mxu0 %v1625
      %1769 = vmatprep.subr.mxu0 0.0
      %1770 = vmatpush1.msra.mxu0 %v1624
      %1771 = vmatprep.subr.mxu0 0.0
      %1772 = vmatpush1.msra.mxu0 %v1623
      %1773 = vmatprep.subr.mxu0 0.0
      %1774 = vmatpush1.msra.mxu0 %v1622
      %1775 = vmatprep.subr.mxu0 0.0
      %1776 = vmatpush1.msra.mxu0 %v1621
      %1777 = vmatprep.subr.mxu0 0.0
      %1778 = vmatpush1.msra.mxu0 %v1620
      %1779 = vmatprep.subr.mxu0 0.0
      %1780 = vmatpush1.msra.mxu0 %v1619
      %1781 = vmatprep.subr.mxu0 0.0
      %1782 = vmatpush1.msra.mxu0 %v1618
      %1783 = vmatprep.subr.mxu0 0.0
      %1784 = vmatpush2.msra.mxu0 %v1649
      %1785 = vmatprep.subr.mxu0 0.0
      %1786 = vmatpush2.msra.mxu0 %v1648
      %1787 = vmatprep.subr.mxu0 0.0
      %1788 = vmatpush2.msra.mxu0 %v1647
      %1789 = vmatprep.subr.mxu0 0.0
      %1790 = vmatpush2.msra.mxu0 %v1646
      %1791 = vmatprep.subr.mxu0 0.0
      %1792 = vmatpush2.msra.mxu0 %v1645
      %1793 = vmatprep.subr.mxu0 0.0
      %1794 = vmatpush2.msra.mxu0 %v1644
      %1795 = vmatprep.subr.mxu0 0.0
      %1796 = vmatpush2.msra.mxu0 %v1643
      %1797 = vmatprep.subr.mxu0 0.0
      %1798 = vmatpush2.msra.mxu0 %v1642
      %1799 = vmatprep.subr.mxu0 0.0
      %1800 = vmatpush2.msra.mxu0 %v1641
      %1801 = vmatprep.subr.mxu0 0.0
      %1802 = vmatpush2.msra.mxu0 %v1640
      %1803 = vmatprep.subr.mxu0 0.0
      %1804 = vmatpush2.msra.mxu0 %v1639
      %1805 = vmatprep.subr.mxu0 0.0
      %1806 = vmatpush2.msra.mxu0 %v1638
      %1807 = vmatprep.subr.mxu0 0.0
      %1808 = vmatpush2.msra.mxu0 %v1637
      %1809 = vmatprep.subr.mxu0 0.0
      %1810 = vmatpush2.msra.mxu0 %v1636
      %1811 = vmatprep.subr.mxu0 0.0
      %1812 = vmatpush2.msra.mxu0 %v1635
      %1813 = vmatprep.subr.mxu0 0.0
      %1814 = vmatpush2.msra.mxu0 %v1634
      %1815 = vmatprep.mubr.f32.mxu0 %v1676
      %1816 = vmatmul.mubr.f32.gmra.mxu0 %v1674
      %v1817 = vpop.f32.mrf.mxu0
      %v1818 = vadd.f32 %v1748, %v1817
      %v1819 = vpop.f32.mrf.mxu0
      %1820 = vdwg.mxu0
      %vm1821 = vcmask 3072
      %1822 = vst.msk [vmem:[%s278] sm:$0xf] %vm1821, %v1818
      %p1823 = scmp.lt.s32.totalorder %s20, 1
      %s1824 = scalar_select %p1823, %s20, 1
      %s1825 = smul.addr %s1824, 4
      %s1826 = scalar_lea.vmem %s7, %s1825
      // Predicated region
      $region49: #{forward.1} parent=47 // pred_check
        %p1827 = pneg %p190
      $region50: #{forward.1} parent=47 // pred_check_branch
        %1829 = sbr.rel (%p1827) target = $region52
      $region51: #{forward.1} parent=47 // pred_region
        _
      $region52: #{forward.1} parent=47 // pred_fallthru
        _
    $region48: #{forward.1} parent=5 // pred_fallthru
      _
    %p1830 = scmp.le.s32.totalorder 2, %s15
    // Predicated region
    $region53: #{forward.1} parent=5 // pred_check
      %p1831 = pneg %p1830
    $region54: #{forward.1} parent=5 // pred_check_branch
      %1833 = sbr.rel (%p1831) target = $region56
    $region55: #{forward.1} parent=5 // pred_region
      %s1834 = ssub.s32 %s15, 2
      // Predicated region
      $region57: #{forward.1} parent=55 // pred_check
        %p1835 = pneg %p196
      $region58: #{forward.1} parent=55 // pred_check_branch
        %1837 = sbr.rel (%p1835) target = $region60
      $region59: #{forward.1} parent=55 // pred_region
        %p1838 = scmp.lt.s32.totalorder %s21, 1
        %s1839 = scalar_select %p1838, %s21, 1
        %s1840 = smul.addr %s1839, 4
        %s1841 = scalar_lea.vmem %s7, %s1840
      $region60: #{forward.1} parent=55 // pred_fallthru
        _
    $region56: #{forward.1} parent=5 // pred_fallthru
      _
  $region6: #{forward.1} parent=0 // loop_footer
    %s19 = sadd.s32 1, %s15
  $region7: #{forward.1} parent=0 // loop_footer_branch
    %14 = sbr.rel target = $region3
  $region8: #{forward.1} parent=0 // loop_exit
    _

</llo_original>
